<compile_context>
chip_gen: v7x
topology: tpu7x:2x2x1
jax: 0.10.0
libtpu: 0.0.40
codegen_flags: <defaults>
</compile_context>

<pallas_src>
import jax
import jax.numpy as jnp
from jax import lax
from jax.experimental import pallas as pl
from jax.experimental.pallas import tpu as pltpu

# ---- small synthetic DBRX config (lane/sublane friendly) ----
D_MODEL = 128
N_HEADS = 4
HEAD_DIM = D_MODEL // N_HEADS          # 32
KV_HEADS = 2
HALF = HEAD_DIM // 2                   # 16
Q_SIZE = N_HEADS * HEAD_DIM            # 128
KV_SIZE = KV_HEADS * HEAD_DIM          # 64
QKV_OUT = Q_SIZE + 2 * KV_SIZE         # 256
CLIP_QKV = 8.0
ROPE_THETA = 10000.0
NUM_EXPERTS = 4
TOP_K = 2
FFN_HIDDEN = 128                       # intermediate size per expert
LN_EPS = 1e-5


# ---------------- fused Pallas kernel ----------------

def _dbrx_block_kernel(x_ref, cos_ref, sin_ref, ln1g_ref, ln1b_ref, wqkv_ref,
                       wo_ref, ln2g_ref, ln2b_ref, router_ref, w13_ref, w2_ref,
                       o_ref):
    f32 = jnp.float32
    x = x_ref[...].astype(f32)                                   # (T, D)
    T = x.shape[0]
    cos = cos_ref[...].astype(f32)                               # (T, HALF)
    sin = sin_ref[...].astype(f32)

    def layer_norm(v, g, b):
        mean = jnp.mean(v, axis=-1, keepdims=True)
        vc = v - mean
        var = jnp.mean(vc * vc, axis=-1, keepdims=True)
        return vc * lax.rsqrt(var + LN_EPS) * g + b

    # ---- DbrxFusedNormAttention ----
    h1 = layer_norm(x, ln1g_ref[...], ln1b_ref[...])
    qkv = jnp.dot(h1, wqkv_ref[...], preferred_element_type=f32)  # (T, QKV_OUT)
    qkv = jnp.clip(qkv, -CLIP_QKV, CLIP_QKV)                      # qkv.clamp_

    def rope_halves(x1, x2):                                      # neox rotate-half
        return x1 * cos - x2 * sin, x2 * cos + x1 * sin

    # rotated K halves and V slices per KV head (values stay in vregs)
    k_rot, v_heads = [], []
    for g in range(KV_HEADS):
        kb = Q_SIZE + g * HEAD_DIM
        vb = Q_SIZE + KV_SIZE + g * HEAD_DIM
        k_rot.append(rope_halves(qkv[:, kb:kb + HALF],
                                 qkv[:, kb + HALF:kb + HEAD_DIM]))
        v_heads.append(qkv[:, vb:vb + HEAD_DIM])

    row = lax.broadcasted_iota(jnp.int32, (T, T), 0)
    col = lax.broadcasted_iota(jnp.int32, (T, T), 1)
    causal = col <= row
    scale = HEAD_DIM ** -0.5
    group = N_HEADS // KV_HEADS

    def dot_t(a, b):  # contract last dims (avoids an explicit in-kernel transpose)
        return lax.dot_general(a, b, (((1,), (1,)), ((), ())),
                               preferred_element_type=f32)

    attn_proj = jnp.zeros((T, D_MODEL), f32)
    for hh in range(N_HEADS):                       # all heads, one grid step
        qb = hh * HEAD_DIM
        q1, q2 = rope_halves(qkv[:, qb:qb + HALF],
                             qkv[:, qb + HALF:qb + HEAD_DIM])
        k1, k2 = k_rot[hh // group]
        s = (dot_t(q1, k1) + dot_t(q2, k2)) * scale               # (T, T)
        s = jnp.where(causal, s, -1e30)                           # f32 mask value
        m = jnp.max(s, axis=-1, keepdims=True)
        p = jnp.exp(s - m)
        p = p / jnp.sum(p, axis=-1, keepdims=True)
        o_h = jnp.dot(p, v_heads[hh // group], preferred_element_type=f32)
        # fold output projection per head: attn @ Wo == sum_h o_h @ Wo[h*Dh:(h+1)*Dh]
        attn_proj += jnp.dot(o_h, wo_ref[qb:qb + HEAD_DIM, :],
                             preferred_element_type=f32)

    hidden = x + attn_proj                                        # residual 1
    h2 = layer_norm(hidden, ln2g_ref[...], ln2b_ref[...])

    # ---- DbrxRouter: router_logits = hidden_states @ W_router (no bias) ----
    logits = jnp.dot(h2, router_ref[...], preferred_element_type=f32)   # (T, E)
    lmax = jnp.max(logits, axis=-1, keepdims=True)
    pe = jnp.exp(logits - lmax)
    probs = pe / jnp.sum(pe, axis=-1, keepdims=True)

    # top-k gate, built in-kernel (VPU/XLU only; first-index tie-break like lax.top_k)
    idx_e = lax.broadcasted_iota(jnp.int32, (T, NUM_EXPERTS), 1)
    gate = jnp.zeros((T, NUM_EXPERTS), f32)
    denom = jnp.zeros((T, 1), f32)
    remaining = probs
    for _ in range(TOP_K):
        mval = jnp.max(remaining, axis=-1, keepdims=True)
        is_m = remaining == mval
        sel = jnp.min(jnp.where(is_m, idx_e, NUM_EXPERTS), axis=-1, keepdims=True)
        first = idx_e == sel
        gate = gate + jnp.where(first, probs, 0.0)
        denom = denom + mval
        remaining = jnp.where(first, -1.0, remaining)
    gate = gate / denom                                           # renormalized top-k

    # ---- DbrxMoE (dense over experts, f32 accumulation, single final store) ----
    moe = jnp.zeros((T, D_MODEL), f32)
    for e in range(NUM_EXPERTS):
        gu = jnp.dot(h2, w13_ref[e], preferred_element_type=f32)  # (T, 2I)
        gate_in = gu[:, :FFN_HIDDEN]
        up = gu[:, FFN_HIDDEN:]
        act = gate_in * (1.0 / (1.0 + jnp.exp(-gate_in))) * up    # silu(w1 x) * (v1 x)
        y = jnp.dot(act, w2_ref[e], preferred_element_type=f32)   # (T, D)
        # whole-tile select + row-reduce instead of a width-1 lane slice
        w_e = jnp.sum(jnp.where(idx_e == e, gate, 0.0), axis=-1, keepdims=True)
        moe = moe + w_e * y

    # one lane-dense store; residual folded in
    o_ref[...] = (moe + hidden).astype(o_ref.dtype)


def dbrx_block_forward(params, position_ids, hidden_states):
    T, D = hidden_states.shape
    # precomputed rotary cache (vLLM-style cos_sin_cache); rotation itself is in-kernel
    inv_freq = 1.0 / (ROPE_THETA ** (jnp.arange(HALF, dtype=jnp.float32) / HALF))
    ang = position_ids.astype(jnp.float32)[:, None] * inv_freq[None, :]
    cos, sin = jnp.cos(ang), jnp.sin(ang)

    def full(shape):
        return pl.BlockSpec(shape, lambda i, _s=shape: (0,) * len(_s))

    return pl.pallas_call(
        _dbrx_block_kernel,
        out_shape=jax.ShapeDtypeStruct((T, D), hidden_states.dtype),
        grid=(1,),
        in_specs=[
            full((T, D)), full((T, HALF)), full((T, HALF)),
            full((1, D)), full((1, D)),
            full((D, QKV_OUT)), full((Q_SIZE, D)),
            full((1, D)), full((1, D)),
            full((D, NUM_EXPERTS)),
            full((NUM_EXPERTS, D, 2 * FFN_HIDDEN)),
            full((NUM_EXPERTS, FFN_HIDDEN, D)),
        ],
        out_specs=full((T, D)),
        compiler_params=pltpu.CompilerParams(dimension_semantics=("arbitrary",)),
    )(hidden_states, cos, sin,
      params["ln1_g"].reshape(1, D), params["ln1_b"].reshape(1, D),
      params["wqkv"], params["wo"],
      params["ln2_g"].reshape(1, D), params["ln2_b"].reshape(1, D),
      params["router"], params["w13"], params["w2"])


# ---------------- reference (pure JAX) ----------------

def reference_forward(params, position_ids, hidden_states):
    def ln(v, g, b):
        mean = jnp.mean(v, axis=-1, keepdims=True)
        var = jnp.mean((v - mean) ** 2, axis=-1, keepdims=True)
        return (v - mean) / jnp.sqrt(var + LN_EPS) * g + b

    T = hidden_states.shape[0]
    inv_freq = 1.0 / (ROPE_THETA ** (jnp.arange(HALF, dtype=jnp.float32) / HALF))
    ang = position_ids.astype(jnp.float32)[:, None] * inv_freq[None, :]
    cos, sin = jnp.cos(ang)[:, None, :], jnp.sin(ang)[:, None, :]

    def rope(xh):  # (T, H, Dh), neox rotate-half
        x1, x2 = xh[..., :HALF], xh[..., HALF:]
        return jnp.concatenate([x1 * cos - x2 * sin, x2 * cos + x1 * sin], axis=-1)

    residual = hidden_states
    h = ln(hidden_states, params["ln1_g"], params["ln1_b"])
    qkv = jnp.clip(h @ params["wqkv"], -CLIP_QKV, CLIP_QKV)
    q = rope(qkv[:, :Q_SIZE].reshape(T, N_HEADS, HEAD_DIM))
    k = rope(qkv[:, Q_SIZE:Q_SIZE + KV_SIZE].reshape(T, KV_HEADS, HEAD_DIM))
    v = qkv[:, Q_SIZE + KV_SIZE:].reshape(T, KV_HEADS, HEAD_DIM)
    group = N_HEADS // KV_HEADS
    k_rep = jnp.repeat(k, group, axis=1)
    v_rep = jnp.repeat(v, group, axis=1)
    s = jnp.einsum("thd,shd->hts", q, k_rep) * HEAD_DIM ** -0.5
    mask = jnp.tril(jnp.ones((T, T), bool))
    s = jnp.where(mask[None], s, -1e30)
    p = jax.nn.softmax(s, axis=-1)
    attn = jnp.einsum("hts,shd->thd", p, v_rep).reshape(T, Q_SIZE)
    hidden = residual + attn @ params["wo"]
    residual = hidden
    h2 = ln(hidden, params["ln2_g"], params["ln2_b"])
    logits = h2 @ params["router"]
    probs = jax.nn.softmax(logits, axis=-1)
    tv, ti = lax.top_k(probs, TOP_K)
    tv = tv / jnp.sum(tv, axis=-1, keepdims=True)
    gate = jnp.sum(jax.nn.one_hot(ti, NUM_EXPERTS) * tv[..., None], axis=1)
    moe = jnp.zeros_like(h2)
    for e in range(NUM_EXPERTS):
        gu = h2 @ params["w13"][e]
        act = jax.nn.silu(gu[:, :FFN_HIDDEN]) * gu[:, FFN_HIDDEN:]
        moe = moe + gate[:, e:e + 1] * (act @ params["w2"][e])
    return moe + residual


# ---------------- params ----------------

def init_params(key):
    ks = jax.random.split(key, 5)
    scale = 0.05
    return {
        "ln1_g": jnp.ones((D_MODEL,), jnp.float32),
        "ln1_b": jnp.zeros((D_MODEL,), jnp.float32),
        "ln2_g": jnp.ones((D_MODEL,), jnp.float32),
        "ln2_b": jnp.zeros((D_MODEL,), jnp.float32),
        # stored as [in, out] so kernels compute x @ W with no in-kernel transposes
        "wqkv": scale * jax.random.normal(ks[0], (D_MODEL, QKV_OUT), jnp.float32),
        "wo": scale * jax.random.normal(ks[1], (Q_SIZE, D_MODEL), jnp.float32),
        "router": scale * jax.random.normal(ks[2], (D_MODEL, NUM_EXPERTS), jnp.float32),
        # w13[e]: [D, 2I] = [w1_e^T ; v1_e^T];  w2[e]: [I, D]
        "w13": scale * jax.random.normal(ks[3], (NUM_EXPERTS, D_MODEL, 2 * FFN_HIDDEN), jnp.float32),
        "w2": scale * jax.random.normal(ks[4], (NUM_EXPERTS, FFN_HIDDEN, D_MODEL), jnp.float32),
    }


if __name__ == "__main__":
    key = jax.random.PRNGKey(0)
    pkey, xkey = jax.random.split(key)
    params = init_params(pkey)

    T = 16
    hidden_states = jax.random.normal(xkey, (T, D_MODEL), dtype=jnp.float32)
    position_ids = jnp.arange(T, dtype=jnp.int32)

    out = dbrx_block_forward(params, position_ids, hidden_states)
    out = jax.block_until_ready(out)

    ref = reference_forward(params, position_ids, hidden_states)
    assert out.shape == hidden_states.shape
    assert bool(jnp.all(jnp.isfinite(out)))
    assert bool(jnp.allclose(out, ref, atol=2e-3, rtol=2e-3)), "mismatch vs pure-JAX reference"

    print("KERNEL_OK")
</pallas_src>

<mosaic_0001>
module attributes {stable_mosaic.version = 11 : i64} {
  func.func @_dbrx_block_kernel(%arg0: i32, %arg1: memref<16x128xf32, #tpu.memory_space<vmem>>, %arg2: memref<16x16xf32, #tpu.memory_space<vmem>>, %arg3: memref<16x16xf32, #tpu.memory_space<vmem>>, %arg4: memref<1x128xf32, #tpu.memory_space<vmem>>, %arg5: memref<1x128xf32, #tpu.memory_space<vmem>>, %arg6: memref<128x256xf32, #tpu.memory_space<vmem>>, %arg7: memref<128x128xf32, #tpu.memory_space<vmem>>, %arg8: memref<1x128xf32, #tpu.memory_space<vmem>>, %arg9: memref<1x128xf32, #tpu.memory_space<vmem>>, %arg10: memref<128x4xf32, #tpu.memory_space<vmem>>, %arg11: memref<4x128x256xf32, #tpu.memory_space<vmem>>, %arg12: memref<4x128x128xf32, #tpu.memory_space<vmem>>, %arg13: memref<16x128xf32, #tpu.memory_space<vmem>>) attributes {dimension_semantics = [#tpu.dimension_semantics<arbitrary>], iteration_bounds = array<i64: 1>, scalar_prefetch = 0 : i64, scratch_operands = 0 : i64, tpu.core_type = #tpu.core_type<tc>, window_params = [{pipeline_mode = #tpu.pipeline_mode<synchronous>, transform_indices = @transform_0, window_bounds = array<i64: 16, 128>}, {pipeline_mode = #tpu.pipeline_mode<synchronous>, transform_indices = @transform_1, window_bounds = array<i64: 16, 16>}, {pipeline_mode = #tpu.pipeline_mode<synchronous>, transform_indices = @transform_2, window_bounds = array<i64: 16, 16>}, {pipeline_mode = #tpu.pipeline_mode<synchronous>, transform_indices = @transform_3, window_bounds = array<i64: 1, 128>}, {pipeline_mode = #tpu.pipeline_mode<synchronous>, transform_indices = @transform_4, window_bounds = array<i64: 1, 128>}, {pipeline_mode = #tpu.pipeline_mode<synchronous>, transform_indices = @transform_5, window_bounds = array<i64: 128, 256>}, {pipeline_mode = #tpu.pipeline_mode<synchronous>, transform_indices = @transform_6, window_bounds = array<i64: 128, 128>}, {pipeline_mode = #tpu.pipeline_mode<synchronous>, transform_indices = @transform_7, window_bounds = array<i64: 1, 128>}, {pipeline_mode = #tpu.pipeline_mode<synchronous>, transform_indices = @transform_8, window_bounds = array<i64: 1, 128>}, {pipeline_mode = #tpu.pipeline_mode<synchronous>, transform_indices = @transform_9, window_bounds = array<i64: 128, 4>}, {pipeline_mode = #tpu.pipeline_mode<synchronous>, transform_indices = @transform_10, window_bounds = array<i64: 4, 128, 256>}, {pipeline_mode = #tpu.pipeline_mode<synchronous>, transform_indices = @transform_11, window_bounds = array<i64: 4, 128, 128>}, {pipeline_mode = #tpu.pipeline_mode<synchronous>, transform_indices = @transform_12, window_bounds = array<i64: 16, 128>}]} {
    %c0 = arith.constant 0 : index
    %c0_0 = arith.constant 0 : index
    %0 = vector.load %arg1[%c0, %c0_0] : memref<16x128xf32, #tpu.memory_space<vmem>>, vector<16x128xf32>
    %c0_1 = arith.constant 0 : index
    %c0_2 = arith.constant 0 : index
    %1 = vector.load %arg2[%c0_1, %c0_2] : memref<16x16xf32, #tpu.memory_space<vmem>>, vector<16x16xf32>
    %c0_3 = arith.constant 0 : index
    %c0_4 = arith.constant 0 : index
    %2 = vector.load %arg3[%c0_3, %c0_4] : memref<16x16xf32, #tpu.memory_space<vmem>>, vector<16x16xf32>
    %c0_5 = arith.constant 0 : index
    %c0_6 = arith.constant 0 : index
    %3 = vector.load %arg4[%c0_5, %c0_6] : memref<1x128xf32, #tpu.memory_space<vmem>>, vector<1x128xf32>
    %c0_7 = arith.constant 0 : index
    %c0_8 = arith.constant 0 : index
    %4 = vector.load %arg5[%c0_7, %c0_8] : memref<1x128xf32, #tpu.memory_space<vmem>>, vector<1x128xf32>
    %cst = arith.constant dense<0.000000e+00> : vector<16xf32>
    %5 = vector.multi_reduction <add>, %0, %cst [1] : vector<16x128xf32> to vector<16xf32>
    %6 = vector.shape_cast %5 : vector<16xf32> to vector<16x1xf32>
    %cst_9 = arith.constant 1.280000e+02 : f32
    %7 = vector.broadcast %cst_9 : f32 to vector<16x1xf32>
    %8 = arith.divf %6, %7 : vector<16x1xf32>
    %9 = vector.broadcast %8 : vector<16x1xf32> to vector<16x128xf32>
    %10 = arith.subf %0, %9 : vector<16x128xf32>
    %11 = arith.mulf %10, %10 : vector<16x128xf32>
    %cst_10 = arith.constant dense<0.000000e+00> : vector<16xf32>
    %12 = vector.multi_reduction <add>, %11, %cst_10 [1] : vector<16x128xf32> to vector<16xf32>
    %13 = vector.shape_cast %12 : vector<16xf32> to vector<16x1xf32>
    %cst_11 = arith.constant 1.280000e+02 : f32
    %14 = vector.broadcast %cst_11 : f32 to vector<16x1xf32>
    %15 = arith.divf %13, %14 : vector<16x1xf32>
    %cst_12 = arith.constant 9.99999974E-6 : f32
    %16 = vector.broadcast %cst_12 : f32 to vector<16x1xf32>
    %17 = arith.addf %15, %16 : vector<16x1xf32>
    %18 = math.rsqrt %17 : vector<16x1xf32>
    %19 = vector.broadcast %18 : vector<16x1xf32> to vector<16x128xf32>
    %20 = arith.mulf %10, %19 : vector<16x128xf32>
    %21 = vector.broadcast %3 : vector<1x128xf32> to vector<16x128xf32>
    %22 = arith.mulf %20, %21 : vector<16x128xf32>
    %23 = vector.broadcast %4 : vector<1x128xf32> to vector<16x128xf32>
    %24 = arith.addf %22, %23 : vector<16x128xf32>
    %c0_13 = arith.constant 0 : index
    %c0_14 = arith.constant 0 : index
    %25 = vector.load %arg6[%c0_13, %c0_14] : memref<128x256xf32, #tpu.memory_space<vmem>>, vector<128x256xf32>
    %cst_15 = arith.constant dense<0.000000e+00> : vector<16x256xf32>
    %26 = tpu.matmul %24, %25, %cst_15 {dimension_numbers = #tpu.dot_dimension_numbers<[1], [0], [0], [1], [0, 0, 1, 1], [], []>} : vector<16x128xf32>, vector<128x256xf32>, vector<16x256xf32> -> vector<16x256xf32>
    %cst_16 = arith.constant -8.000000e+00 : f32
    %cst_17 = arith.constant 8.000000e+00 : f32
    %27 = vector.broadcast %cst_16 : f32 to vector<16x256xf32>
    %28 = arith.maximumf %27, %26 : vector<16x256xf32>
    %29 = vector.broadcast %cst_17 : f32 to vector<16x256xf32>
    %30 = arith.minimumf %29, %28 : vector<16x256xf32>
    %31 = vector.extract_strided_slice %30 {offsets = [0, 128], sizes = [16, 16], strides = [1, 1]} : vector<16x256xf32> to vector<16x16xf32>
    %32 = vector.extract_strided_slice %30 {offsets = [0, 144], sizes = [16, 16], strides = [1, 1]} : vector<16x256xf32> to vector<16x16xf32>
    %33 = arith.mulf %31, %1 : vector<16x16xf32>
    %34 = arith.mulf %32, %2 : vector<16x16xf32>
    %35 = arith.subf %33, %34 : vector<16x16xf32>
    %36 = arith.mulf %32, %1 : vector<16x16xf32>
    %37 = arith.mulf %31, %2 : vector<16x16xf32>
    %38 = arith.addf %36, %37 : vector<16x16xf32>
    %39 = vector.extract_strided_slice %30 {offsets = [0, 192], sizes = [16, 32], strides = [1, 1]} : vector<16x256xf32> to vector<16x32xf32>
    %40 = vector.extract_strided_slice %30 {offsets = [0, 160], sizes = [16, 16], strides = [1, 1]} : vector<16x256xf32> to vector<16x16xf32>
    %41 = vector.extract_strided_slice %30 {offsets = [0, 176], sizes = [16, 16], strides = [1, 1]} : vector<16x256xf32> to vector<16x16xf32>
    %42 = arith.mulf %40, %1 : vector<16x16xf32>
    %43 = arith.mulf %41, %2 : vector<16x16xf32>
    %44 = arith.subf %42, %43 : vector<16x16xf32>
    %45 = arith.mulf %41, %1 : vector<16x16xf32>
    %46 = arith.mulf %40, %2 : vector<16x16xf32>
    %47 = arith.addf %45, %46 : vector<16x16xf32>
    %48 = vector.extract_strided_slice %30 {offsets = [0, 224], sizes = [16, 32], strides = [1, 1]} : vector<16x256xf32> to vector<16x32xf32>
    %49 = tpu.iota {dimensions = array<i32: 0>} : vector<16x16xi32>
    %50 = tpu.iota {dimensions = array<i32: 1>} : vector<16x16xi32>
    %51 = arith.cmpi sle, %50, %49 : vector<16x16xi32>
    %cst_18 = arith.constant 0.000000e+00 : f32
    %52 = vector.broadcast %cst_18 : f32 to vector<16x128xf32>
    %53 = vector.extract_strided_slice %30 {offsets = [0, 0], sizes = [16, 16], strides = [1, 1]} : vector<16x256xf32> to vector<16x16xf32>
    %54 = vector.extract_strided_slice %30 {offsets = [0, 16], sizes = [16, 16], strides = [1, 1]} : vector<16x256xf32> to vector<16x16xf32>
    %55 = arith.mulf %53, %1 : vector<16x16xf32>
    %56 = arith.mulf %54, %2 : vector<16x16xf32>
    %57 = arith.subf %55, %56 : vector<16x16xf32>
    %58 = arith.mulf %54, %1 : vector<16x16xf32>
    %59 = arith.mulf %53, %2 : vector<16x16xf32>
    %60 = arith.addf %58, %59 : vector<16x16xf32>
    %cst_19 = arith.constant dense<0.000000e+00> : vector<16x16xf32>
    %61 = tpu.matmul %57, %35, %cst_19 {dimension_numbers = #tpu.dot_dimension_numbers<[1], [1], [0], [0], [0, 0, 1, 0], [], []>} : vector<16x16xf32>, vector<16x16xf32>, vector<16x16xf32> -> vector<16x16xf32>
    %cst_20 = arith.constant dense<0.000000e+00> : vector<16x16xf32>
    %62 = tpu.matmul %60, %38, %cst_20 {dimension_numbers = #tpu.dot_dimension_numbers<[1], [1], [0], [0], [0, 0, 1, 0], [], []>} : vector<16x16xf32>, vector<16x16xf32>, vector<16x16xf32> -> vector<16x16xf32>
    %63 = arith.addf %61, %62 : vector<16x16xf32>
    %cst_21 = arith.constant 0.176776692 : f32
    %64 = vector.broadcast %cst_21 : f32 to vector<16x16xf32>
    %65 = arith.mulf %63, %64 : vector<16x16xf32>
    %cst_22 = arith.constant -1.000000e+30 : f32
    %66 = vector.broadcast %cst_22 : f32 to vector<16x16xf32>
    %67 = arith.select %51, %65, %66 : vector<16x16xi1>, vector<16x16xf32>
    %cst_23 = arith.constant dense<0xFF800000> : vector<16xf32>
    %68 = vector.multi_reduction <maximumf>, %67, %cst_23 [1] : vector<16x16xf32> to vector<16xf32>
    %69 = vector.shape_cast %68 : vector<16xf32> to vector<16x1xf32>
    %70 = vector.broadcast %69 : vector<16x1xf32> to vector<16x16xf32>
    %71 = arith.subf %67, %70 : vector<16x16xf32>
    %72 = math.exp %71 : vector<16x16xf32>
    %cst_24 = arith.constant dense<0.000000e+00> : vector<16xf32>
    %73 = vector.multi_reduction <add>, %72, %cst_24 [1] : vector<16x16xf32> to vector<16xf32>
    %74 = vector.shape_cast %73 : vector<16xf32> to vector<16x1xf32>
    %75 = vector.broadcast %74 : vector<16x1xf32> to vector<16x16xf32>
    %76 = arith.divf %72, %75 : vector<16x16xf32>
    %cst_25 = arith.constant dense<0.000000e+00> : vector<16x32xf32>
    %77 = tpu.matmul %76, %39, %cst_25 {dimension_numbers = #tpu.dot_dimension_numbers<[1], [0], [0], [1], [0, 0, 1, 1], [], []>} : vector<16x16xf32>, vector<16x32xf32>, vector<16x32xf32> -> vector<16x32xf32>
    %c0_26 = arith.constant 0 : index
    %c0_27 = arith.constant 0 : index
    %78 = vector.load %arg7[%c0_26, %c0_27] : memref<128x128xf32, #tpu.memory_space<vmem>>, vector<32x128xf32>
    %cst_28 = arith.constant dense<0.000000e+00> : vector<16x128xf32>
    %79 = tpu.matmul %77, %78, %cst_28 {dimension_numbers = #tpu.dot_dimension_numbers<[1], [0], [0], [1], [0, 0, 1, 1], [], []>} : vector<16x32xf32>, vector<32x128xf32>, vector<16x128xf32> -> vector<16x128xf32>
    %80 = arith.addf %52, %79 : vector<16x128xf32>
    %81 = vector.extract_strided_slice %30 {offsets = [0, 32], sizes = [16, 16], strides = [1, 1]} : vector<16x256xf32> to vector<16x16xf32>
    %82 = vector.extract_strided_slice %30 {offsets = [0, 48], sizes = [16, 16], strides = [1, 1]} : vector<16x256xf32> to vector<16x16xf32>
    %83 = arith.mulf %81, %1 : vector<16x16xf32>
    %84 = arith.mulf %82, %2 : vector<16x16xf32>
    %85 = arith.subf %83, %84 : vector<16x16xf32>
    %86 = arith.mulf %82, %1 : vector<16x16xf32>
    %87 = arith.mulf %81, %2 : vector<16x16xf32>
    %88 = arith.addf %86, %87 : vector<16x16xf32>
    %cst_29 = arith.constant dense<0.000000e+00> : vector<16x16xf32>
    %89 = tpu.matmul %85, %35, %cst_29 {dimension_numbers = #tpu.dot_dimension_numbers<[1], [1], [0], [0], [0, 0, 1, 0], [], []>} : vector<16x16xf32>, vector<16x16xf32>, vector<16x16xf32> -> vector<16x16xf32>
    %cst_30 = arith.constant dense<0.000000e+00> : vector<16x16xf32>
    %90 = tpu.matmul %88, %38, %cst_30 {dimension_numbers = #tpu.dot_dimension_numbers<[1], [1], [0], [0], [0, 0, 1, 0], [], []>} : vector<16x16xf32>, vector<16x16xf32>, vector<16x16xf32> -> vector<16x16xf32>
    %91 = arith.addf %89, %90 : vector<16x16xf32>
    %cst_31 = arith.constant 0.176776692 : f32
    %92 = vector.broadcast %cst_31 : f32 to vector<16x16xf32>
    %93 = arith.mulf %91, %92 : vector<16x16xf32>
    %cst_32 = arith.constant -1.000000e+30 : f32
    %94 = vector.broadcast %cst_32 : f32 to vector<16x16xf32>
    %95 = arith.select %51, %93, %94 : vector<16x16xi1>, vector<16x16xf32>
    %cst_33 = arith.constant dense<0xFF800000> : vector<16xf32>
    %96 = vector.multi_reduction <maximumf>, %95, %cst_33 [1] : vector<16x16xf32> to vector<16xf32>
    %97 = vector.shape_cast %96 : vector<16xf32> to vector<16x1xf32>
    %98 = vector.broadcast %97 : vector<16x1xf32> to vector<16x16xf32>
    %99 = arith.subf %95, %98 : vector<16x16xf32>
    %100 = math.exp %99 : vector<16x16xf32>
    %cst_34 = arith.constant dense<0.000000e+00> : vector<16xf32>
    %101 = vector.multi_reduction <add>, %100, %cst_34 [1] : vector<16x16xf32> to vector<16xf32>
    %102 = vector.shape_cast %101 : vector<16xf32> to vector<16x1xf32>
    %103 = vector.broadcast %102 : vector<16x1xf32> to vector<16x16xf32>
    %104 = arith.divf %100, %103 : vector<16x16xf32>
    %cst_35 = arith.constant dense<0.000000e+00> : vector<16x32xf32>
    %105 = tpu.matmul %104, %39, %cst_35 {dimension_numbers = #tpu.dot_dimension_numbers<[1], [0], [0], [1], [0, 0, 1, 1], [], []>} : vector<16x16xf32>, vector<16x32xf32>, vector<16x32xf32> -> vector<16x32xf32>
    %c32 = arith.constant 32 : index
    %c0_36 = arith.constant 0 : index
    %106 = vector.load %arg7[%c32, %c0_36] : memref<128x128xf32, #tpu.memory_space<vmem>>, vector<32x128xf32>
    %cst_37 = arith.constant dense<0.000000e+00> : vector<16x128xf32>
    %107 = tpu.matmul %105, %106, %cst_37 {dimension_numbers = #tpu.dot_dimension_numbers<[1], [0], [0], [1], [0, 0, 1, 1], [], []>} : vector<16x32xf32>, vector<32x128xf32>, vector<16x128xf32> -> vector<16x128xf32>
    %108 = arith.addf %80, %107 : vector<16x128xf32>
    %109 = vector.extract_strided_slice %30 {offsets = [0, 64], sizes = [16, 16], strides = [1, 1]} : vector<16x256xf32> to vector<16x16xf32>
    %110 = vector.extract_strided_slice %30 {offsets = [0, 80], sizes = [16, 16], strides = [1, 1]} : vector<16x256xf32> to vector<16x16xf32>
    %111 = arith.mulf %109, %1 : vector<16x16xf32>
    %112 = arith.mulf %110, %2 : vector<16x16xf32>
    %113 = arith.subf %111, %112 : vector<16x16xf32>
    %114 = arith.mulf %110, %1 : vector<16x16xf32>
    %115 = arith.mulf %109, %2 : vector<16x16xf32>
    %116 = arith.addf %114, %115 : vector<16x16xf32>
    %cst_38 = arith.constant dense<0.000000e+00> : vector<16x16xf32>
    %117 = tpu.matmul %113, %44, %cst_38 {dimension_numbers = #tpu.dot_dimension_numbers<[1], [1], [0], [0], [0, 0, 1, 0], [], []>} : vector<16x16xf32>, vector<16x16xf32>, vector<16x16xf32> -> vector<16x16xf32>
    %cst_39 = arith.constant dense<0.000000e+00> : vector<16x16xf32>
    %118 = tpu.matmul %116, %47, %cst_39 {dimension_numbers = #tpu.dot_dimension_numbers<[1], [1], [0], [0], [0, 0, 1, 0], [], []>} : vector<16x16xf32>, vector<16x16xf32>, vector<16x16xf32> -> vector<16x16xf32>
    %119 = arith.addf %117, %118 : vector<16x16xf32>
    %cst_40 = arith.constant 0.176776692 : f32
    %120 = vector.broadcast %cst_40 : f32 to vector<16x16xf32>
    %121 = arith.mulf %119, %120 : vector<16x16xf32>
    %cst_41 = arith.constant -1.000000e+30 : f32
    %122 = vector.broadcast %cst_41 : f32 to vector<16x16xf32>
    %123 = arith.select %51, %121, %122 : vector<16x16xi1>, vector<16x16xf32>
    %cst_42 = arith.constant dense<0xFF800000> : vector<16xf32>
    %124 = vector.multi_reduction <maximumf>, %123, %cst_42 [1] : vector<16x16xf32> to vector<16xf32>
    %125 = vector.shape_cast %124 : vector<16xf32> to vector<16x1xf32>
    %126 = vector.broadcast %125 : vector<16x1xf32> to vector<16x16xf32>
    %127 = arith.subf %123, %126 : vector<16x16xf32>
    %128 = math.exp %127 : vector<16x16xf32>
    %cst_43 = arith.constant dense<0.000000e+00> : vector<16xf32>
    %129 = vector.multi_reduction <add>, %128, %cst_43 [1] : vector<16x16xf32> to vector<16xf32>
    %130 = vector.shape_cast %129 : vector<16xf32> to vector<16x1xf32>
    %131 = vector.broadcast %130 : vector<16x1xf32> to vector<16x16xf32>
    %132 = arith.divf %128, %131 : vector<16x16xf32>
    %cst_44 = arith.constant dense<0.000000e+00> : vector<16x32xf32>
    %133 = tpu.matmul %132, %48, %cst_44 {dimension_numbers = #tpu.dot_dimension_numbers<[1], [0], [0], [1], [0, 0, 1, 1], [], []>} : vector<16x16xf32>, vector<16x32xf32>, vector<16x32xf32> -> vector<16x32xf32>
    %c64 = arith.constant 64 : index
    %c0_45 = arith.constant 0 : index
    %134 = vector.load %arg7[%c64, %c0_45] : memref<128x128xf32, #tpu.memory_space<vmem>>, vector<32x128xf32>
    %cst_46 = arith.constant dense<0.000000e+00> : vector<16x128xf32>
    %135 = tpu.matmul %133, %134, %cst_46 {dimension_numbers = #tpu.dot_dimension_numbers<[1], [0], [0], [1], [0, 0, 1, 1], [], []>} : vector<16x32xf32>, vector<32x128xf32>, vector<16x128xf32> -> vector<16x128xf32>
    %136 = arith.addf %108, %135 : vector<16x128xf32>
    %137 = vector.extract_strided_slice %30 {offsets = [0, 96], sizes = [16, 16], strides = [1, 1]} : vector<16x256xf32> to vector<16x16xf32>
    %138 = vector.extract_strided_slice %30 {offsets = [0, 112], sizes = [16, 16], strides = [1, 1]} : vector<16x256xf32> to vector<16x16xf32>
    %139 = arith.mulf %137, %1 : vector<16x16xf32>
    %140 = arith.mulf %138, %2 : vector<16x16xf32>
    %141 = arith.subf %139, %140 : vector<16x16xf32>
    %142 = arith.mulf %138, %1 : vector<16x16xf32>
    %143 = arith.mulf %137, %2 : vector<16x16xf32>
    %144 = arith.addf %142, %143 : vector<16x16xf32>
    %cst_47 = arith.constant dense<0.000000e+00> : vector<16x16xf32>
    %145 = tpu.matmul %141, %44, %cst_47 {dimension_numbers = #tpu.dot_dimension_numbers<[1], [1], [0], [0], [0, 0, 1, 0], [], []>} : vector<16x16xf32>, vector<16x16xf32>, vector<16x16xf32> -> vector<16x16xf32>
    %cst_48 = arith.constant dense<0.000000e+00> : vector<16x16xf32>
    %146 = tpu.matmul %144, %47, %cst_48 {dimension_numbers = #tpu.dot_dimension_numbers<[1], [1], [0], [0], [0, 0, 1, 0], [], []>} : vector<16x16xf32>, vector<16x16xf32>, vector<16x16xf32> -> vector<16x16xf32>
    %147 = arith.addf %145, %146 : vector<16x16xf32>
    %cst_49 = arith.constant 0.176776692 : f32
    %148 = vector.broadcast %cst_49 : f32 to vector<16x16xf32>
    %149 = arith.mulf %147, %148 : vector<16x16xf32>
    %cst_50 = arith.constant -1.000000e+30 : f32
    %150 = vector.broadcast %cst_50 : f32 to vector<16x16xf32>
    %151 = arith.select %51, %149, %150 : vector<16x16xi1>, vector<16x16xf32>
    %cst_51 = arith.constant dense<0xFF800000> : vector<16xf32>
    %152 = vector.multi_reduction <maximumf>, %151, %cst_51 [1] : vector<16x16xf32> to vector<16xf32>
    %153 = vector.shape_cast %152 : vector<16xf32> to vector<16x1xf32>
    %154 = vector.broadcast %153 : vector<16x1xf32> to vector<16x16xf32>
    %155 = arith.subf %151, %154 : vector<16x16xf32>
    %156 = math.exp %155 : vector<16x16xf32>
    %cst_52 = arith.constant dense<0.000000e+00> : vector<16xf32>
    %157 = vector.multi_reduction <add>, %156, %cst_52 [1] : vector<16x16xf32> to vector<16xf32>
    %158 = vector.shape_cast %157 : vector<16xf32> to vector<16x1xf32>
    %159 = vector.broadcast %158 : vector<16x1xf32> to vector<16x16xf32>
    %160 = arith.divf %156, %159 : vector<16x16xf32>
    %cst_53 = arith.constant dense<0.000000e+00> : vector<16x32xf32>
    %161 = tpu.matmul %160, %48, %cst_53 {dimension_numbers = #tpu.dot_dimension_numbers<[1], [0], [0], [1], [0, 0, 1, 1], [], []>} : vector<16x16xf32>, vector<16x32xf32>, vector<16x32xf32> -> vector<16x32xf32>
    %c96 = arith.constant 96 : index
    %c0_54 = arith.constant 0 : index
    %162 = vector.load %arg7[%c96, %c0_54] : memref<128x128xf32, #tpu.memory_space<vmem>>, vector<32x128xf32>
    %cst_55 = arith.constant dense<0.000000e+00> : vector<16x128xf32>
    %163 = tpu.matmul %161, %162, %cst_55 {dimension_numbers = #tpu.dot_dimension_numbers<[1], [0], [0], [1], [0, 0, 1, 1], [], []>} : vector<16x32xf32>, vector<32x128xf32>, vector<16x128xf32> -> vector<16x128xf32>
    %164 = arith.addf %136, %163 : vector<16x128xf32>
    %165 = arith.addf %0, %164 : vector<16x128xf32>
    %c0_56 = arith.constant 0 : index
    %c0_57 = arith.constant 0 : index
    %166 = vector.load %arg8[%c0_56, %c0_57] : memref<1x128xf32, #tpu.memory_space<vmem>>, vector<1x128xf32>
    %c0_58 = arith.constant 0 : index
    %c0_59 = arith.constant 0 : index
    %167 = vector.load %arg9[%c0_58, %c0_59] : memref<1x128xf32, #tpu.memory_space<vmem>>, vector<1x128xf32>
    %cst_60 = arith.constant dense<0.000000e+00> : vector<16xf32>
    %168 = vector.multi_reduction <add>, %165, %cst_60 [1] : vector<16x128xf32> to vector<16xf32>
    %169 = vector.shape_cast %168 : vector<16xf32> to vector<16x1xf32>
    %cst_61 = arith.constant 1.280000e+02 : f32
    %170 = vector.broadcast %cst_61 : f32 to vector<16x1xf32>
    %171 = arith.divf %169, %170 : vector<16x1xf32>
    %172 = vector.broadcast %171 : vector<16x1xf32> to vector<16x128xf32>
    %173 = arith.subf %165, %172 : vector<16x128xf32>
    %174 = arith.mulf %173, %173 : vector<16x128xf32>
    %cst_62 = arith.constant dense<0.000000e+00> : vector<16xf32>
    %175 = vector.multi_reduction <add>, %174, %cst_62 [1] : vector<16x128xf32> to vector<16xf32>
    %176 = vector.shape_cast %175 : vector<16xf32> to vector<16x1xf32>
    %cst_63 = arith.constant 1.280000e+02 : f32
    %177 = vector.broadcast %cst_63 : f32 to vector<16x1xf32>
    %178 = arith.divf %176, %177 : vector<16x1xf32>
    %cst_64 = arith.constant 9.99999974E-6 : f32
    %179 = vector.broadcast %cst_64 : f32 to vector<16x1xf32>
    %180 = arith.addf %178, %179 : vector<16x1xf32>
    %181 = math.rsqrt %180 : vector<16x1xf32>
    %182 = vector.broadcast %181 : vector<16x1xf32> to vector<16x128xf32>
    %183 = arith.mulf %173, %182 : vector<16x128xf32>
    %184 = vector.broadcast %166 : vector<1x128xf32> to vector<16x128xf32>
    %185 = arith.mulf %183, %184 : vector<16x128xf32>
    %186 = vector.broadcast %167 : vector<1x128xf32> to vector<16x128xf32>
    %187 = arith.addf %185, %186 : vector<16x128xf32>
    %c0_65 = arith.constant 0 : index
    %c0_66 = arith.constant 0 : index
    %188 = vector.load %arg10[%c0_65, %c0_66] : memref<128x4xf32, #tpu.memory_space<vmem>>, vector<128x4xf32>
    %cst_67 = arith.constant dense<0.000000e+00> : vector<16x4xf32>
    %189 = tpu.matmul %187, %188, %cst_67 {dimension_numbers = #tpu.dot_dimension_numbers<[1], [0], [0], [1], [0, 0, 1, 1], [], []>} : vector<16x128xf32>, vector<128x4xf32>, vector<16x4xf32> -> vector<16x4xf32>
    %cst_68 = arith.constant dense<0xFF800000> : vector<16xf32>
    %190 = vector.multi_reduction <maximumf>, %189, %cst_68 [1] : vector<16x4xf32> to vector<16xf32>
    %191 = vector.shape_cast %190 : vector<16xf32> to vector<16x1xf32>
    %192 = vector.broadcast %191 : vector<16x1xf32> to vector<16x4xf32>
    %193 = arith.subf %189, %192 : vector<16x4xf32>
    %194 = math.exp %193 : vector<16x4xf32>
    %cst_69 = arith.constant dense<0.000000e+00> : vector<16xf32>
    %195 = vector.multi_reduction <add>, %194, %cst_69 [1] : vector<16x4xf32> to vector<16xf32>
    %196 = vector.shape_cast %195 : vector<16xf32> to vector<16x1xf32>
    %197 = vector.broadcast %196 : vector<16x1xf32> to vector<16x4xf32>
    %198 = arith.divf %194, %197 : vector<16x4xf32>
    %199 = tpu.iota {dimensions = array<i32: 1>} : vector<16x4xi32>
    %cst_70 = arith.constant 0.000000e+00 : f32
    %200 = vector.broadcast %cst_70 : f32 to vector<16x4xf32>
    %cst_71 = arith.constant 0.000000e+00 : f32
    %201 = vector.broadcast %cst_71 : f32 to vector<16x1xf32>
    %cst_72 = arith.constant dense<0xFF800000> : vector<16xf32>
    %202 = vector.multi_reduction <maximumf>, %198, %cst_72 [1] : vector<16x4xf32> to vector<16xf32>
    %203 = vector.shape_cast %202 : vector<16xf32> to vector<16x1xf32>
    %204 = vector.broadcast %203 : vector<16x1xf32> to vector<16x4xf32>
    %205 = arith.cmpf oeq, %198, %204 : vector<16x4xf32>
    %c4_i32 = arith.constant 4 : i32
    %206 = vector.broadcast %c4_i32 : i32 to vector<16x4xi32>
    %207 = arith.select %205, %199, %206 : vector<16x4xi1>, vector<16x4xi32>
    %cst_73 = arith.constant dense<2147483647> : vector<16xi32>
    %208 = vector.multi_reduction <minsi>, %207, %cst_73 [1] : vector<16x4xi32> to vector<16xi32>
    %209 = vector.shape_cast %208 : vector<16xi32> to vector<16x1xi32>
    %210 = vector.broadcast %209 : vector<16x1xi32> to vector<16x4xi32>
    %211 = arith.cmpi eq, %199, %210 : vector<16x4xi32>
    %cst_74 = arith.constant 0.000000e+00 : f32
    %212 = vector.broadcast %cst_74 : f32 to vector<16x4xf32>
    %213 = arith.select %211, %198, %212 : vector<16x4xi1>, vector<16x4xf32>
    %214 = arith.addf %200, %213 : vector<16x4xf32>
    %215 = arith.addf %201, %203 : vector<16x1xf32>
    %cst_75 = arith.constant -1.000000e+00 : f32
    %216 = vector.broadcast %cst_75 : f32 to vector<16x4xf32>
    %217 = arith.select %211, %216, %198 : vector<16x4xi1>, vector<16x4xf32>
    %cst_76 = arith.constant dense<0xFF800000> : vector<16xf32>
    %218 = vector.multi_reduction <maximumf>, %217, %cst_76 [1] : vector<16x4xf32> to vector<16xf32>
    %219 = vector.shape_cast %218 : vector<16xf32> to vector<16x1xf32>
    %220 = vector.broadcast %219 : vector<16x1xf32> to vector<16x4xf32>
    %221 = arith.cmpf oeq, %217, %220 : vector<16x4xf32>
    %c4_i32_77 = arith.constant 4 : i32
    %222 = vector.broadcast %c4_i32_77 : i32 to vector<16x4xi32>
    %223 = arith.select %221, %199, %222 : vector<16x4xi1>, vector<16x4xi32>
    %cst_78 = arith.constant dense<2147483647> : vector<16xi32>
    %224 = vector.multi_reduction <minsi>, %223, %cst_78 [1] : vector<16x4xi32> to vector<16xi32>
    %225 = vector.shape_cast %224 : vector<16xi32> to vector<16x1xi32>
    %226 = vector.broadcast %225 : vector<16x1xi32> to vector<16x4xi32>
    %227 = arith.cmpi eq, %199, %226 : vector<16x4xi32>
    %cst_79 = arith.constant 0.000000e+00 : f32
    %228 = vector.broadcast %cst_79 : f32 to vector<16x4xf32>
    %229 = arith.select %227, %198, %228 : vector<16x4xi1>, vector<16x4xf32>
    %230 = arith.addf %214, %229 : vector<16x4xf32>
    %231 = arith.addf %215, %219 : vector<16x1xf32>
    %232 = vector.broadcast %231 : vector<16x1xf32> to vector<16x4xf32>
    %233 = arith.divf %230, %232 : vector<16x4xf32>
    %cst_80 = arith.constant 0.000000e+00 : f32
    %234 = vector.broadcast %cst_80 : f32 to vector<16x128xf32>
    %c0_81 = arith.constant 0 : index
    %c0_82 = arith.constant 0 : index
    %c0_83 = arith.constant 0 : index
    %235 = vector.load %arg11[%c0_81, %c0_82, %c0_83] : memref<4x128x256xf32, #tpu.memory_space<vmem>>, vector<1x128x256xf32>
    %236 = vector.shape_cast %235 : vector<1x128x256xf32> to vector<128x256xf32>
    %cst_84 = arith.constant dense<0.000000e+00> : vector<16x256xf32>
    %237 = tpu.matmul %187, %236, %cst_84 {dimension_numbers = #tpu.dot_dimension_numbers<[1], [0], [0], [1], [0, 0, 1, 1], [], []>} : vector<16x128xf32>, vector<128x256xf32>, vector<16x256xf32> -> vector<16x256xf32>
    %238 = vector.extract_strided_slice %237 {offsets = [0, 0], sizes = [16, 128], strides = [1, 1]} : vector<16x256xf32> to vector<16x128xf32>
    %239 = vector.extract_strided_slice %237 {offsets = [0, 128], sizes = [16, 128], strides = [1, 1]} : vector<16x256xf32> to vector<16x128xf32>
    %cst_85 = arith.constant 0.000000e+00 : f32
    %240 = vector.broadcast %cst_85 : f32 to vector<16x128xf32>
    %241 = arith.subf %240, %238 : vector<16x128xf32>
    %242 = math.exp %241 : vector<16x128xf32>
    %cst_86 = arith.constant 1.000000e+00 : f32
    %243 = vector.broadcast %cst_86 : f32 to vector<16x128xf32>
    %244 = arith.addf %243, %242 : vector<16x128xf32>
    %cst_87 = arith.constant 1.000000e+00 : f32
    %245 = vector.broadcast %cst_87 : f32 to vector<16x128xf32>
    %246 = arith.divf %245, %244 : vector<16x128xf32>
    %247 = arith.mulf %238, %246 : vector<16x128xf32>
    %248 = arith.mulf %247, %239 : vector<16x128xf32>
    %c0_88 = arith.constant 0 : index
    %c0_89 = arith.constant 0 : index
    %c0_90 = arith.constant 0 : index
    %249 = vector.load %arg12[%c0_88, %c0_89, %c0_90] : memref<4x128x128xf32, #tpu.memory_space<vmem>>, vector<1x128x128xf32>
    %250 = vector.shape_cast %249 : vector<1x128x128xf32> to vector<128x128xf32>
    %cst_91 = arith.constant dense<0.000000e+00> : vector<16x128xf32>
    %251 = tpu.matmul %248, %250, %cst_91 {dimension_numbers = #tpu.dot_dimension_numbers<[1], [0], [0], [1], [0, 0, 1, 1], [], []>} : vector<16x128xf32>, vector<128x128xf32>, vector<16x128xf32> -> vector<16x128xf32>
    %c0_i32 = arith.constant 0 : i32
    %252 = vector.broadcast %c0_i32 : i32 to vector<16x4xi32>
    %253 = arith.cmpi eq, %199, %252 : vector<16x4xi32>
    %cst_92 = arith.constant 0.000000e+00 : f32
    %254 = vector.broadcast %cst_92 : f32 to vector<16x4xf32>
    %255 = arith.select %253, %233, %254 : vector<16x4xi1>, vector<16x4xf32>
    %cst_93 = arith.constant dense<0.000000e+00> : vector<16xf32>
    %256 = vector.multi_reduction <add>, %255, %cst_93 [1] : vector<16x4xf32> to vector<16xf32>
    %257 = vector.shape_cast %256 : vector<16xf32> to vector<16x1xf32>
    %258 = vector.broadcast %257 : vector<16x1xf32> to vector<16x128xf32>
    %259 = arith.mulf %258, %251 : vector<16x128xf32>
    %260 = arith.addf %234, %259 : vector<16x128xf32>
    %c1 = arith.constant 1 : index
    %c0_94 = arith.constant 0 : index
    %c0_95 = arith.constant 0 : index
    %261 = vector.load %arg11[%c1, %c0_94, %c0_95] : memref<4x128x256xf32, #tpu.memory_space<vmem>>, vector<1x128x256xf32>
    %262 = vector.shape_cast %261 : vector<1x128x256xf32> to vector<128x256xf32>
    %cst_96 = arith.constant dense<0.000000e+00> : vector<16x256xf32>
    %263 = tpu.matmul %187, %262, %cst_96 {dimension_numbers = #tpu.dot_dimension_numbers<[1], [0], [0], [1], [0, 0, 1, 1], [], []>} : vector<16x128xf32>, vector<128x256xf32>, vector<16x256xf32> -> vector<16x256xf32>
    %264 = vector.extract_strided_slice %263 {offsets = [0, 0], sizes = [16, 128], strides = [1, 1]} : vector<16x256xf32> to vector<16x128xf32>
    %265 = vector.extract_strided_slice %263 {offsets = [0, 128], sizes = [16, 128], strides = [1, 1]} : vector<16x256xf32> to vector<16x128xf32>
    %cst_97 = arith.constant 0.000000e+00 : f32
    %266 = vector.broadcast %cst_97 : f32 to vector<16x128xf32>
    %267 = arith.subf %266, %264 : vector<16x128xf32>
    %268 = math.exp %267 : vector<16x128xf32>
    %cst_98 = arith.constant 1.000000e+00 : f32
    %269 = vector.broadcast %cst_98 : f32 to vector<16x128xf32>
    %270 = arith.addf %269, %268 : vector<16x128xf32>
    %cst_99 = arith.constant 1.000000e+00 : f32
    %271 = vector.broadcast %cst_99 : f32 to vector<16x128xf32>
    %272 = arith.divf %271, %270 : vector<16x128xf32>
    %273 = arith.mulf %264, %272 : vector<16x128xf32>
    %274 = arith.mulf %273, %265 : vector<16x128xf32>
    %c1_100 = arith.constant 1 : index
    %c0_101 = arith.constant 0 : index
    %c0_102 = arith.constant 0 : index
    %275 = vector.load %arg12[%c1_100, %c0_101, %c0_102] : memref<4x128x128xf32, #tpu.memory_space<vmem>>, vector<1x128x128xf32>
    %276 = vector.shape_cast %275 : vector<1x128x128xf32> to vector<128x128xf32>
    %cst_103 = arith.constant dense<0.000000e+00> : vector<16x128xf32>
    %277 = tpu.matmul %274, %276, %cst_103 {dimension_numbers = #tpu.dot_dimension_numbers<[1], [0], [0], [1], [0, 0, 1, 1], [], []>} : vector<16x128xf32>, vector<128x128xf32>, vector<16x128xf32> -> vector<16x128xf32>
    %c1_i32 = arith.constant 1 : i32
    %278 = vector.broadcast %c1_i32 : i32 to vector<16x4xi32>
    %279 = arith.cmpi eq, %199, %278 : vector<16x4xi32>
    %cst_104 = arith.constant 0.000000e+00 : f32
    %280 = vector.broadcast %cst_104 : f32 to vector<16x4xf32>
    %281 = arith.select %279, %233, %280 : vector<16x4xi1>, vector<16x4xf32>
    %cst_105 = arith.constant dense<0.000000e+00> : vector<16xf32>
    %282 = vector.multi_reduction <add>, %281, %cst_105 [1] : vector<16x4xf32> to vector<16xf32>
    %283 = vector.shape_cast %282 : vector<16xf32> to vector<16x1xf32>
    %284 = vector.broadcast %283 : vector<16x1xf32> to vector<16x128xf32>
    %285 = arith.mulf %284, %277 : vector<16x128xf32>
    %286 = arith.addf %260, %285 : vector<16x128xf32>
    %c2 = arith.constant 2 : index
    %c0_106 = arith.constant 0 : index
    %c0_107 = arith.constant 0 : index
    %287 = vector.load %arg11[%c2, %c0_106, %c0_107] : memref<4x128x256xf32, #tpu.memory_space<vmem>>, vector<1x128x256xf32>
    %288 = vector.shape_cast %287 : vector<1x128x256xf32> to vector<128x256xf32>
    %cst_108 = arith.constant dense<0.000000e+00> : vector<16x256xf32>
    %289 = tpu.matmul %187, %288, %cst_108 {dimension_numbers = #tpu.dot_dimension_numbers<[1], [0], [0], [1], [0, 0, 1, 1], [], []>} : vector<16x128xf32>, vector<128x256xf32>, vector<16x256xf32> -> vector<16x256xf32>
    %290 = vector.extract_strided_slice %289 {offsets = [0, 0], sizes = [16, 128], strides = [1, 1]} : vector<16x256xf32> to vector<16x128xf32>
    %291 = vector.extract_strided_slice %289 {offsets = [0, 128], sizes = [16, 128], strides = [1, 1]} : vector<16x256xf32> to vector<16x128xf32>
    %cst_109 = arith.constant 0.000000e+00 : f32
    %292 = vector.broadcast %cst_109 : f32 to vector<16x128xf32>
    %293 = arith.subf %292, %290 : vector<16x128xf32>
    %294 = math.exp %293 : vector<16x128xf32>
    %cst_110 = arith.constant 1.000000e+00 : f32
    %295 = vector.broadcast %cst_110 : f32 to vector<16x128xf32>
    %296 = arith.addf %295, %294 : vector<16x128xf32>
    %cst_111 = arith.constant 1.000000e+00 : f32
    %297 = vector.broadcast %cst_111 : f32 to vector<16x128xf32>
    %298 = arith.divf %297, %296 : vector<16x128xf32>
    %299 = arith.mulf %290, %298 : vector<16x128xf32>
    %300 = arith.mulf %299, %291 : vector<16x128xf32>
    %c2_112 = arith.constant 2 : index
    %c0_113 = arith.constant 0 : index
    %c0_114 = arith.constant 0 : index
    %301 = vector.load %arg12[%c2_112, %c0_113, %c0_114] : memref<4x128x128xf32, #tpu.memory_space<vmem>>, vector<1x128x128xf32>
    %302 = vector.shape_cast %301 : vector<1x128x128xf32> to vector<128x128xf32>
    %cst_115 = arith.constant dense<0.000000e+00> : vector<16x128xf32>
    %303 = tpu.matmul %300, %302, %cst_115 {dimension_numbers = #tpu.dot_dimension_numbers<[1], [0], [0], [1], [0, 0, 1, 1], [], []>} : vector<16x128xf32>, vector<128x128xf32>, vector<16x128xf32> -> vector<16x128xf32>
    %c2_i32 = arith.constant 2 : i32
    %304 = vector.broadcast %c2_i32 : i32 to vector<16x4xi32>
    %305 = arith.cmpi eq, %199, %304 : vector<16x4xi32>
    %cst_116 = arith.constant 0.000000e+00 : f32
    %306 = vector.broadcast %cst_116 : f32 to vector<16x4xf32>
    %307 = arith.select %305, %233, %306 : vector<16x4xi1>, vector<16x4xf32>
    %cst_117 = arith.constant dense<0.000000e+00> : vector<16xf32>
    %308 = vector.multi_reduction <add>, %307, %cst_117 [1] : vector<16x4xf32> to vector<16xf32>
    %309 = vector.shape_cast %308 : vector<16xf32> to vector<16x1xf32>
    %310 = vector.broadcast %309 : vector<16x1xf32> to vector<16x128xf32>
    %311 = arith.mulf %310, %303 : vector<16x128xf32>
    %312 = arith.addf %286, %311 : vector<16x128xf32>
    %c3 = arith.constant 3 : index
    %c0_118 = arith.constant 0 : index
    %c0_119 = arith.constant 0 : index
    %313 = vector.load %arg11[%c3, %c0_118, %c0_119] : memref<4x128x256xf32, #tpu.memory_space<vmem>>, vector<1x128x256xf32>
    %314 = vector.shape_cast %313 : vector<1x128x256xf32> to vector<128x256xf32>
    %cst_120 = arith.constant dense<0.000000e+00> : vector<16x256xf32>
    %315 = tpu.matmul %187, %314, %cst_120 {dimension_numbers = #tpu.dot_dimension_numbers<[1], [0], [0], [1], [0, 0, 1, 1], [], []>} : vector<16x128xf32>, vector<128x256xf32>, vector<16x256xf32> -> vector<16x256xf32>
    %316 = vector.extract_strided_slice %315 {offsets = [0, 0], sizes = [16, 128], strides = [1, 1]} : vector<16x256xf32> to vector<16x128xf32>
    %317 = vector.extract_strided_slice %315 {offsets = [0, 128], sizes = [16, 128], strides = [1, 1]} : vector<16x256xf32> to vector<16x128xf32>
    %cst_121 = arith.constant 0.000000e+00 : f32
    %318 = vector.broadcast %cst_121 : f32 to vector<16x128xf32>
    %319 = arith.subf %318, %316 : vector<16x128xf32>
    %320 = math.exp %319 : vector<16x128xf32>
    %cst_122 = arith.constant 1.000000e+00 : f32
    %321 = vector.broadcast %cst_122 : f32 to vector<16x128xf32>
    %322 = arith.addf %321, %320 : vector<16x128xf32>
    %cst_123 = arith.constant 1.000000e+00 : f32
    %323 = vector.broadcast %cst_123 : f32 to vector<16x128xf32>
    %324 = arith.divf %323, %322 : vector<16x128xf32>
    %325 = arith.mulf %316, %324 : vector<16x128xf32>
    %326 = arith.mulf %325, %317 : vector<16x128xf32>
    %c3_124 = arith.constant 3 : index
    %c0_125 = arith.constant 0 : index
    %c0_126 = arith.constant 0 : index
    %327 = vector.load %arg12[%c3_124, %c0_125, %c0_126] : memref<4x128x128xf32, #tpu.memory_space<vmem>>, vector<1x128x128xf32>
    %328 = vector.shape_cast %327 : vector<1x128x128xf32> to vector<128x128xf32>
    %cst_127 = arith.constant dense<0.000000e+00> : vector<16x128xf32>
    %329 = tpu.matmul %326, %328, %cst_127 {dimension_numbers = #tpu.dot_dimension_numbers<[1], [0], [0], [1], [0, 0, 1, 1], [], []>} : vector<16x128xf32>, vector<128x128xf32>, vector<16x128xf32> -> vector<16x128xf32>
    %c3_i32 = arith.constant 3 : i32
    %330 = vector.broadcast %c3_i32 : i32 to vector<16x4xi32>
    %331 = arith.cmpi eq, %199, %330 : vector<16x4xi32>
    %cst_128 = arith.constant 0.000000e+00 : f32
    %332 = vector.broadcast %cst_128 : f32 to vector<16x4xf32>
    %333 = arith.select %331, %233, %332 : vector<16x4xi1>, vector<16x4xf32>
    %cst_129 = arith.constant dense<0.000000e+00> : vector<16xf32>
    %334 = vector.multi_reduction <add>, %333, %cst_129 [1] : vector<16x4xf32> to vector<16xf32>
    %335 = vector.shape_cast %334 : vector<16xf32> to vector<16x1xf32>
    %336 = vector.broadcast %335 : vector<16x1xf32> to vector<16x128xf32>
    %337 = arith.mulf %336, %329 : vector<16x128xf32>
    %338 = arith.addf %312, %337 : vector<16x128xf32>
    %339 = arith.addf %338, %165 : vector<16x128xf32>
    %c0_130 = arith.constant 0 : index
    %c0_131 = arith.constant 0 : index
    %340 = vector.load %arg13[%c0_130, %c0_131] : memref<16x128xf32, #tpu.memory_space<vmem>>, vector<16x128xf32>
    tpu.vector_store %arg13[%c0_130, %c0_131], %339 {strides = array<i32>} : memref<16x128xf32, #tpu.memory_space<vmem>>, vector<16x128xf32>,
    return
  }
  func.func @transform_0(%arg0: i32) -> (i32, i32) {
    %c0_i32 = arith.constant 0 : i32
    %c0_i32_0 = arith.constant 0 : i32
    %c0_i32_1 = arith.constant 0 : i32
    return %c0_i32, %c0_i32_0 : i32, i32
  }
  func.func @transform_1(%arg0: i32) -> (i32, i32) {
    %c0_i32 = arith.constant 0 : i32
    %c0_i32_0 = arith.constant 0 : i32
    %c0_i32_1 = arith.constant 0 : i32
    return %c0_i32, %c0_i32_0 : i32, i32
  }
  func.func @transform_2(%arg0: i32) -> (i32, i32) {
    %c0_i32 = arith.constant 0 : i32
    %c0_i32_0 = arith.constant 0 : i32
    %c0_i32_1 = arith.constant 0 : i32
    return %c0_i32, %c0_i32_0 : i32, i32
  }
  func.func @transform_3(%arg0: i32) -> (i32, i32) {
    %c0_i32 = arith.constant 0 : i32
    %c0_i32_0 = arith.constant 0 : i32
    %c0_i32_1 = arith.constant 0 : i32
    return %c0_i32, %c0_i32_0 : i32, i32
  }
  func.func @transform_4(%arg0: i32) -> (i32, i32) {
    %c0_i32 = arith.constant 0 : i32
    %c0_i32_0 = arith.constant 0 : i32
    %c0_i32_1 = arith.constant 0 : i32
    return %c0_i32, %c0_i32_0 : i32, i32
  }
  func.func @transform_5(%arg0: i32) -> (i32, i32) {
    %c0_i32 = arith.constant 0 : i32
    %c0_i32_0 = arith.constant 0 : i32
    %c0_i32_1 = arith.constant 0 : i32
    return %c0_i32, %c0_i32_0 : i32, i32
  }
  func.func @transform_6(%arg0: i32) -> (i32, i32) {
    %c0_i32 = arith.constant 0 : i32
    %c0_i32_0 = arith.constant 0 : i32
    %c0_i32_1 = arith.constant 0 : i32
    return %c0_i32, %c0_i32_0 : i32, i32
  }
  func.func @transform_7(%arg0: i32) -> (i32, i32) {
    %c0_i32 = arith.constant 0 : i32
    %c0_i32_0 = arith.constant 0 : i32
    %c0_i32_1 = arith.constant 0 : i32
    return %c0_i32, %c0_i32_0 : i32, i32
  }
  func.func @transform_8(%arg0: i32) -> (i32, i32) {
    %c0_i32 = arith.constant 0 : i32
    %c0_i32_0 = arith.constant 0 : i32
    %c0_i32_1 = arith.constant 0 : i32
    return %c0_i32, %c0_i32_0 : i32, i32
  }
  func.func @transform_9(%arg0: i32) -> (i32, i32) {
    %c0_i32 = arith.constant 0 : i32
    %c0_i32_0 = arith.constant 0 : i32
    %c0_i32_1 = arith.constant 0 : i32
    return %c0_i32, %c0_i32_0 : i32, i32
  }
  func.func @transform_10(%arg0: i32) -> (i32, i32, i32) {
    %c0_i32 = arith.constant 0 : i32
    %c0_i32_0 = arith.constant 0 : i32
    %c0_i32_1 = arith.constant 0 : i32
    %c0_i32_2 = arith.constant 0 : i32
    return %c0_i32, %c0_i32_0, %c0_i32_1 : i32, i32, i32
  }
  func.func @transform_11(%arg0: i32) -> (i32, i32, i32) {
    %c0_i32 = arith.constant 0 : i32
    %c0_i32_0 = arith.constant 0 : i32
    %c0_i32_1 = arith.constant 0 : i32
    %c0_i32_2 = arith.constant 0 : i32
    return %c0_i32, %c0_i32_0, %c0_i32_1 : i32, i32, i32
  }
  func.func @transform_12(%arg0: i32) -> (i32, i32) {
    %c0_i32 = arith.constant 0 : i32
    %c0_i32_0 = arith.constant 0 : i32
    %c0_i32_1 = arith.constant 0 : i32
    return %c0_i32, %c0_i32_0 : i32, i32
  }
}

</mosaic_0001>

<llo_original>
// kernel: tpu_custom_call.1
$region0: #{tpu_custom_call.1}
  #allocation0 [shape = 'u32[]', space=smem, size = 0x4, offset = 0x4, fixed_abs, tag = 'smem constant byte address 0x4 - core index']
  #allocation1 [shape = 'u32[144,128]{1,0:T(1,128)}', space=vmem, size = 0x12000, scoped, tag = 'internal scratch']
  %s0 = inlined_call_operand.vmem [shape: f32[16,128], index: 0, kind: input, shape index: {}]
  %s1 = inlined_call_operand.hbm [shape: f32[16,16], index: 1, kind: input, shape index: {}]
  %s2 = inlined_call_operand.hbm [shape: f32[16,16], index: 2, kind: input, shape index: {}]
  %s3 = inlined_call_operand.vmem [shape: f32[1,128], index: 3, kind: input, shape index: {}]
  %s4 = inlined_call_operand.vmem [shape: f32[1,128], index: 4, kind: input, shape index: {}]
  %s5 = inlined_call_operand.hbm [shape: f32[128,256], index: 5, kind: input, shape index: {}]
  %s6 = inlined_call_operand.vmem [shape: f32[128,128], index: 6, kind: input, shape index: {}]
  %s7 = inlined_call_operand.vmem [shape: f32[1,128], index: 7, kind: input, shape index: {}]
  %s8 = inlined_call_operand.vmem [shape: f32[1,128], index: 8, kind: input, shape index: {}]
  %s9 = inlined_call_operand.vmem [shape: f32[128,4], index: 9, kind: input, shape index: {}]
  %s10 = inlined_call_operand.hbm [shape: f32[4,128,256], index: 10, kind: input, shape index: {}]
  %s11 = inlined_call_operand.hbm [shape: f32[4,128,128], index: 11, kind: input, shape index: {}]
  %s12 = inlined_call_operand.hbm [shape: f32[16,128], index: 12, kind: output, shape index: {}]
  %s13 = sld [smem:[#allocation0]]
  $region78: #{tpu_custom_call.1} parent=0
    _
  %s15 = ssub.s32 1, %s13
  %s16 = scalar_select 0, %s15, %s13
  $region1: #{tpu_custom_call.1} parent=0
    #allocation2 [shape = 'u8[8192]{0}', space=vmem, size = 0x2000, scoped, tag = 'input window, operand 1, single buffered']
    #allocation3 [shape = 's32[1]{0}', space=sflag, size = 0x4, scoped, tag = 'scoped memory for tpu_custom_call.1']
    #allocation4 [shape = 's32[1]{0}', space=sflag, size = 0x4, scoped, tag = 'scoped memory for tpu_custom_call.1']
    #allocation5 [shape = 'u8[8192]{0}', space=vmem, size = 0x2000, scoped, tag = 'input window, operand 2, single buffered']
    #allocation6 [shape = 's32[1]{0}', space=sflag, size = 0x4, scoped, tag = 'scoped memory for tpu_custom_call.1']
    #allocation7 [shape = 'u8[131072]{0}', space=vmem, size = 0x20000, scoped, tag = 'input window, operand 5, single buffered']
    #allocation8 [shape = 'u8[524288]{0}', space=vmem, size = 0x80000, scoped, tag = 'input window, operand 10, single buffered']
    #allocation9 [shape = 's32[1]{0}', space=sflag, size = 0x4, scoped, tag = 'scoped memory for tpu_custom_call.1']
    #allocation10 [shape = 'u8[262144]{0}', space=vmem, size = 0x40000, scoped, tag = 'input window, operand 11, single buffered']
    #allocation11 [shape = 'u8[8192]{0}', space=vmem, size = 0x2000, scoped, tag = 'output window, operand 0, single buffered']
    %17 = vsyncpa [#allocation3], 0
    %18 = vsyncpa [#allocation6], 0
    %19 = vsyncpa [#allocation9], 0
    %20 = vsyncpa [#allocation4], 0
    // Predicated region
    $region2: #{tpu_custom_call.1} parent=1 // pred_check
      _
    $region3: #{tpu_custom_call.1} parent=1 // pred_check_branch
      %22 = sbr.rel (0) target = $region5
    $region4: #{tpu_custom_call.1} parent=1 // pred_region
      _
    $region5: #{tpu_custom_call.1} parent=1 // pred_fallthru
      _
    // Predicated region
    $region6: #{tpu_custom_call.1} parent=1 // pred_check
      _
    $region7: #{tpu_custom_call.1} parent=1 // pred_check_branch
      %24 = sbr.rel (0) target = $region9
    $region8: #{tpu_custom_call.1} parent=1 // pred_region
      %s26 = ssub.s32 256, 256
      %27 = vsyncadd [#allocation3], %s26
      %s28 = sshll.u32 [#allocation2], 4
      %s29 = int_to_ptr.vmem [resolvable:$true] %s28
      %34 = dma.hbm_to_vmem [thread:$0]  %s1, 256, %s29, [#allocation3], 128, 128, 8
    $region9: #{tpu_custom_call.1} parent=1 // pred_fallthru
      _
    // Predicated region
    $region10: #{tpu_custom_call.1} parent=1 // pred_check
      _
    $region11: #{tpu_custom_call.1} parent=1 // pred_check_branch
      %36 = sbr.rel (0) target = $region13
    $region12: #{tpu_custom_call.1} parent=1 // pred_region
      %s38 = ssub.s32 256, 256
      %39 = vsyncadd [#allocation6], %s38
      %s40 = sshll.u32 [#allocation5], 4
      %s41 = int_to_ptr.vmem [resolvable:$true] %s40
      %46 = dma.hbm_to_vmem [thread:$0]  %s2, 256, %s41, [#allocation6], 128, 128, 8
    $region13: #{tpu_custom_call.1} parent=1 // pred_fallthru
      _
    // Predicated region
    $region14: #{tpu_custom_call.1} parent=1 // pred_check
      _
    $region15: #{tpu_custom_call.1} parent=1 // pred_check_branch
      %48 = sbr.rel (0) target = $region17
    $region16: #{tpu_custom_call.1} parent=1 // pred_region
      _
    $region17: #{tpu_custom_call.1} parent=1 // pred_fallthru
      _
    // Predicated region
    $region18: #{tpu_custom_call.1} parent=1 // pred_check
      _
    $region19: #{tpu_custom_call.1} parent=1 // pred_check_branch
      %50 = sbr.rel (0) target = $region21
    $region20: #{tpu_custom_call.1} parent=1 // pred_region
      _
    $region21: #{tpu_custom_call.1} parent=1 // pred_fallthru
      _
    // Predicated region
    $region22: #{tpu_custom_call.1} parent=1 // pred_check
      _
    $region23: #{tpu_custom_call.1} parent=1 // pred_check_branch
      %52 = sbr.rel (0) target = $region25
    $region24: #{tpu_custom_call.1} parent=1 // pred_region
      %s54 = ssub.s32 4096, 4096
      %55 = vsyncadd [#allocation6], %s54
      %s56 = sshll.u32 [#allocation7], 4
      %s57 = int_to_ptr.vmem [resolvable:$true] %s56
      %62 = dma.hbm_to_vmem [thread:$0]  %s5, 4096, %s57, [#allocation6], 256, 256, 16
    $region25: #{tpu_custom_call.1} parent=1 // pred_fallthru
      _
    // Predicated region
    $region26: #{tpu_custom_call.1} parent=1 // pred_check
      _
    $region27: #{tpu_custom_call.1} parent=1 // pred_check_branch
      %64 = sbr.rel (0) target = $region29
    $region28: #{tpu_custom_call.1} parent=1 // pred_region
      _
    $region29: #{tpu_custom_call.1} parent=1 // pred_fallthru
      _
    // Predicated region
    $region30: #{tpu_custom_call.1} parent=1 // pred_check
      _
    $region31: #{tpu_custom_call.1} parent=1 // pred_check_branch
      %66 = sbr.rel (0) target = $region33
    $region32: #{tpu_custom_call.1} parent=1 // pred_region
      _
    $region33: #{tpu_custom_call.1} parent=1 // pred_fallthru
      _
    // Predicated region
    $region34: #{tpu_custom_call.1} parent=1 // pred_check
      _
    $region35: #{tpu_custom_call.1} parent=1 // pred_check_branch
      %68 = sbr.rel (0) target = $region37
    $region36: #{tpu_custom_call.1} parent=1 // pred_region
      _
    $region37: #{tpu_custom_call.1} parent=1 // pred_fallthru
      _
    // Predicated region
    $region38: #{tpu_custom_call.1} parent=1 // pred_check
      _
    $region39: #{tpu_custom_call.1} parent=1 // pred_check_branch
      %70 = sbr.rel (0) target = $region41
    $region40: #{tpu_custom_call.1} parent=1 // pred_region
      _
    $region41: #{tpu_custom_call.1} parent=1 // pred_fallthru
      _
    // Predicated region
    $region42: #{tpu_custom_call.1} parent=1 // pred_check
      _
    $region43: #{tpu_custom_call.1} parent=1 // pred_check_branch
      %72 = sbr.rel (0) target = $region45
    $region44: #{tpu_custom_call.1} parent=1 // pred_region
      %s74 = ssub.s32 16384, 16384
      %75 = vsyncadd [#allocation9], %s74
      %s76 = sshll.u32 [#allocation8], 4
      %s77 = int_to_ptr.vmem [resolvable:$true] %s76
      %82 = dma.hbm_to_vmem [thread:$0]  %s10, 16384, %s77, [#allocation9], 256, 256, 16
    $region45: #{tpu_custom_call.1} parent=1 // pred_fallthru
      _
    // Predicated region
    $region46: #{tpu_custom_call.1} parent=1 // pred_check
      _
    $region47: #{tpu_custom_call.1} parent=1 // pred_check_branch
      %84 = sbr.rel (0) target = $region49
    $region48: #{tpu_custom_call.1} parent=1 // pred_region
      %s86 = ssub.s32 8192, 8192
      %87 = vsyncadd [#allocation9], %s86
      %s88 = sshll.u32 [#allocation10], 4
      %s89 = int_to_ptr.vmem [resolvable:$true] %s88
      %94 = dma.hbm_to_vmem [thread:$0]  %s11, 8192, %s89, [#allocation9], 128, 128, 8
    $region49: #{tpu_custom_call.1} parent=1 // pred_fallthru
      _
    // Predicated region
    $region50: #{tpu_custom_call.1} parent=1 // pred_check
      _
    $region51: #{tpu_custom_call.1} parent=1 // pred_check_branch
      %96 = sbr.rel (0) target = $region53
    $region52: #{tpu_custom_call.1} parent=1 // pred_region
      %97 = dma.done [#allocation3], 256
    $region53: #{tpu_custom_call.1} parent=1 // pred_fallthru
      _
    // Predicated region
    $region54: #{tpu_custom_call.1} parent=1 // pred_check
      _
    $region55: #{tpu_custom_call.1} parent=1 // pred_check_branch
      %99 = sbr.rel (0) target = $region57
    $region56: #{tpu_custom_call.1} parent=1 // pred_region
      %100 = dma.done [#allocation6], 256
    $region57: #{tpu_custom_call.1} parent=1 // pred_fallthru
      _
    // Predicated region
    $region58: #{tpu_custom_call.1} parent=1 // pred_check
      _
    $region59: #{tpu_custom_call.1} parent=1 // pred_check_branch
      %102 = sbr.rel (0) target = $region61
    $region60: #{tpu_custom_call.1} parent=1 // pred_region
      %103 = dma.done [#allocation6], 4096
    $region61: #{tpu_custom_call.1} parent=1 // pred_fallthru
      _
    // Predicated region
    $region62: #{tpu_custom_call.1} parent=1 // pred_check
      _
    $region63: #{tpu_custom_call.1} parent=1 // pred_check_branch
      %105 = sbr.rel (0) target = $region65
    $region64: #{tpu_custom_call.1} parent=1 // pred_region
      %106 = dma.done [#allocation9], 16384
    $region65: #{tpu_custom_call.1} parent=1 // pred_fallthru
      _
    // Predicated region
    $region66: #{tpu_custom_call.1} parent=1 // pred_check
      _
    $region67: #{tpu_custom_call.1} parent=1 // pred_check_branch
      %108 = sbr.rel (0) target = $region69
    $region68: #{tpu_custom_call.1} parent=1 // pred_region
      %109 = dma.done [#allocation9], 8192
    $region69: #{tpu_custom_call.1} parent=1 // pred_fallthru
      _
    %v110 = vld [vmem:[%s0] sm:$0xff]
    %v111 = vld [vmem:[%s0 + $0x8] sm:$0xff]
    %v112 = vld [vmem:[#allocation2] sm:$0xff]
    %v113 = vld [vmem:[#allocation2 + $0x8] sm:$0xff]
    %v114 = vld [vmem:[#allocation5] sm:$0xff]
    %v115 = vld [vmem:[#allocation5 + $0x8] sm:$0xff]
    %v116 = vld [vmem:[%s3] sm:$0x1]
    %v117 = vld [vmem:[%s4] sm:$0x1]
    %118 = vadd.xlane.f32.xlu0 %v110
    %v119 = vpop.xlane.xlu0 %118
    %120 = vadd.xlane.f32.xlu0 %v111
    %v121 = vpop.xlane.xlu0 %120
    %v122 = vrcp.pop 128.0
    %v123 = vmul.f32 %v119, %v122
    %v124 = vmul.f32 %v121, %v122
    %v125 = vsub.f32 %v110, %v123
    %v126 = vsub.f32 %v111, %v124
    %v127 = vmul.f32 %v125, %v125
    %v128 = vmul.f32 %v126, %v126
    %129 = vadd.xlane.f32.xlu0 %v127
    %v130 = vpop.xlane.xlu0 %129
    %131 = vadd.xlane.f32.xlu0 %v128
    %v132 = vpop.xlane.xlu0 %131
    %v133 = vmul.f32 %v130, %v122
    %v134 = vmul.f32 %v132, %v122
    %v135 = vadd.f32 %v133, 1e-05
    %v136 = vadd.f32 %v134, 1e-05
    %v137 = vrsqrt.pop %v135
    %v138 = vrsqrt.pop %v136
    %v139 = vmul.f32 %v125, %v137
    %v140 = vmul.f32 %v126, %v138
    %v142 = vlaneseq
    %v143 = vshrl.u32 %v142, 7
    %v144 = vsub.s32 0, %v143
    %v145 = vrot.slane %v116, %v144
    %v147 = vmul.f32 %v139, %v145
    %v148 = vmul.f32 %v140, %v145
    %v150 = vlaneseq
    %v151 = vshrl.u32 %v150, 7
    %v152 = vsub.s32 0, %v151
    %v153 = vrot.slane %v117, %v152
    %v155 = vadd.f32 %v147, %v153
    %v156 = vadd.f32 %v148, %v153
    %v157 = vld [vmem:[#allocation7] sm:$0xff]
    %v158 = vld [vmem:[#allocation7 + $0x8] sm:$0xff]
    %v159 = vld [vmem:[#allocation7 + $0x10] sm:$0xff]
    %v160 = vld [vmem:[#allocation7 + $0x18] sm:$0xff]
    %v161 = vld [vmem:[#allocation7 + $0x20] sm:$0xff]
    %v162 = vld [vmem:[#allocation7 + $0x28] sm:$0xff]
    %v163 = vld [vmem:[#allocation7 + $0x30] sm:$0xff]
    %v164 = vld [vmem:[#allocation7 + $0x38] sm:$0xff]
    %v165 = vld [vmem:[#allocation7 + $0x40] sm:$0xff]
    %v166 = vld [vmem:[#allocation7 + $0x48] sm:$0xff]
    %v167 = vld [vmem:[#allocation7 + $0x50] sm:$0xff]
    %v168 = vld [vmem:[#allocation7 + $0x58] sm:$0xff]
    %v169 = vld [vmem:[#allocation7 + $0x60] sm:$0xff]
    %v170 = vld [vmem:[#allocation7 + $0x68] sm:$0xff]
    %v171 = vld [vmem:[#allocation7 + $0x70] sm:$0xff]
    %v172 = vld [vmem:[#allocation7 + $0x78] sm:$0xff]
    %v173 = vld [vmem:[#allocation7 + $0x80] sm:$0xff]
    %v174 = vld [vmem:[#allocation7 + $0x88] sm:$0xff]
    %v175 = vld [vmem:[#allocation7 + $0x90] sm:$0xff]
    %v176 = vld [vmem:[#allocation7 + $0x98] sm:$0xff]
    %v177 = vld [vmem:[#allocation7 + $0xa0] sm:$0xff]
    %v178 = vld [vmem:[#allocation7 + $0xa8] sm:$0xff]
    %v179 = vld [vmem:[#allocation7 + $0xb0] sm:$0xff]
    %v180 = vld [vmem:[#allocation7 + $0xb8] sm:$0xff]
    %v181 = vld [vmem:[#allocation7 + $0xc0] sm:$0xff]
    %v182 = vld [vmem:[#allocation7 + $0xc8] sm:$0xff]
    %v183 = vld [vmem:[#allocation7 + $0xd0] sm:$0xff]
    %v184 = vld [vmem:[#allocation7 + $0xd8] sm:$0xff]
    %v185 = vld [vmem:[#allocation7 + $0xe0] sm:$0xff]
    %v186 = vld [vmem:[#allocation7 + $0xe8] sm:$0xff]
    %v187 = vld [vmem:[#allocation7 + $0xf0] sm:$0xff]
    %v188 = vld [vmem:[#allocation7 + $0xf8] sm:$0xff]
    %189 = vmatprep.subr.mxu0 %v158
    %190 = vmatpush1.msra.mxu0 %v157
    %191 = vmatprep.subr.mxu0 %v160
    %192 = vmatpush1.msra.mxu0 %v159
    %193 = vmatprep.subr.mxu0 %v162
    %194 = vmatpush1.msra.mxu0 %v161
    %195 = vmatprep.subr.mxu0 %v164
    %196 = vmatpush1.msra.mxu0 %v163
    %197 = vmatprep.subr.mxu0 %v166
    %198 = vmatpush1.msra.mxu0 %v165
    %199 = vmatprep.subr.mxu0 %v168
    %200 = vmatpush1.msra.mxu0 %v167
    %201 = vmatprep.subr.mxu0 %v170
    %202 = vmatpush1.msra.mxu0 %v169
    %203 = vmatprep.subr.mxu0 %v172
    %204 = vmatpush1.msra.mxu0 %v171
    %205 = vmatprep.subr.mxu0 %v174
    %206 = vmatpush1.msra.mxu0 %v173
    %207 = vmatprep.subr.mxu0 %v176
    %208 = vmatpush1.msra.mxu0 %v175
    %209 = vmatprep.subr.mxu0 %v178
    %210 = vmatpush1.msra.mxu0 %v177
    %211 = vmatprep.subr.mxu0 %v180
    %212 = vmatpush1.msra.mxu0 %v179
    %213 = vmatprep.subr.mxu0 %v182
    %214 = vmatpush1.msra.mxu0 %v181
    %215 = vmatprep.subr.mxu0 %v184
    %216 = vmatpush1.msra.mxu0 %v183
    %217 = vmatprep.subr.mxu0 %v186
    %218 = vmatpush1.msra.mxu0 %v185
    %219 = vmatprep.subr.mxu0 %v188
    %220 = vmatpush1.msra.mxu0 %v187
    %221 = vmatprep.subr.mxu0 0.0
    %222 = vmatpush1.msra.mxu0 0.0
    %223 = vmatprep.subr.mxu0 0.0
    %224 = vmatpush1.msra.mxu0 0.0
    %225 = vmatprep.subr.mxu0 0.0
    %226 = vmatpush1.msra.mxu0 0.0
    %227 = vmatprep.subr.mxu0 0.0
    %228 = vmatpush1.msra.mxu0 0.0
    %229 = vmatprep.subr.mxu0 0.0
    %230 = vmatpush1.msra.mxu0 0.0
    %231 = vmatprep.subr.mxu0 0.0
    %232 = vmatpush1.msra.mxu0 0.0
    %233 = vmatprep.subr.mxu0 0.0
    %234 = vmatpush1.msra.mxu0 0.0
    %235 = vmatprep.subr.mxu0 0.0
    %236 = vmatpush1.msra.mxu0 0.0
    %237 = vmatprep.subr.mxu0 0.0
    %238 = vmatpush1.msra.mxu0 0.0
    %239 = vmatprep.subr.mxu0 0.0
    %240 = vmatpush1.msra.mxu0 0.0
    %241 = vmatprep.subr.mxu0 0.0
    %242 = vmatpush1.msra.mxu0 0.0
    %243 = vmatprep.subr.mxu0 0.0
    %244 = vmatpush1.msra.mxu0 0.0
    %245 = vmatprep.subr.mxu0 0.0
    %246 = vmatpush1.msra.mxu0 0.0
    %247 = vmatprep.subr.mxu0 0.0
    %248 = vmatpush1.msra.mxu0 0.0
    %249 = vmatprep.subr.mxu0 0.0
    %250 = vmatpush1.msra.mxu0 0.0
    %251 = vmatprep.subr.mxu0 0.0
    %252 = vmatpush1.msra.mxu0 0.0
    %253 = vmatprep.mubr.f32.mxu0 0.0
    %254 = vmatmul.mubr.f32.gmra.mrb[0].mxu0 %v155
    %v255 = vpop.f32.mrb[0].mxu0
    %v256 = vadd.f32 0.0, %v255
    %v257 = vpop.f32.mrb[0].mxu0
    %v258 = vadd.f32 0.0, %v257
    %259 = vmatprep.mubr.f32.mxu0 0.0
    %260 = vmatmul.mubr.f32.gmra.mrb[0].mxu0 %v156
    %v261 = vpop.f32.mrb[0].mxu0
    %v262 = vadd.f32 0.0, %v261
    %v263 = vpop.f32.mrb[0].mxu0
    %v264 = vadd.f32 0.0, %v263
    %265 = vdwg.mxu0
    %v266 = vmax.f32 %v256, -8.0
    %v267 = vmax.f32 %v258, -8.0
    %v268 = vmax.f32 %v262, -8.0
    %v269 = vmax.f32 %v264, -8.0
    %v270 = vmin.f32 %v266, 8.0
    %v271 = vmin.f32 %v267, 8.0
    %v272 = vmin.f32 %v268, 8.0
    %v273 = vmin.f32 %v269, 8.0
    %v274 = vmul.f32 %v271, %v112
    %v275 = vmul.f32 %v273, %v113
    %278 = vrot.lane.b32.xlu0 %v114, 16
    %v279 = vpop.permute.xlu0 %278
    %280 = vrot.lane.b32.xlu0 %v115, 16
    %v281 = vpop.permute.xlu0 %280
    %v284 = vmul.f32 %v271, %v279
    %v285 = vmul.f32 %v273, %v281
    %288 = vrot.lane.b32.xlu0 %v284, 112
    %v289 = vpop.permute.xlu0 %288
    %290 = vrot.lane.b32.xlu0 %v285, 112
    %v291 = vpop.permute.xlu0 %290
    %v294 = vsub.f32 %v274, %v289
    %v295 = vsub.f32 %v275, %v291
    %298 = vrot.lane.b32.xlu0 %v112, 16
    %v299 = vpop.permute.xlu0 %298
    %300 = vrot.lane.b32.xlu0 %v113, 16
    %v301 = vpop.permute.xlu0 %300
    %v304 = vmul.f32 %v271, %v299
    %v305 = vmul.f32 %v273, %v301
    %v306 = vmul.f32 %v271, %v114
    %v307 = vmul.f32 %v273, %v115
    %310 = vrot.lane.b32.xlu0 %v306, 16
    %v311 = vpop.permute.xlu0 %310
    %312 = vrot.lane.b32.xlu0 %v307, 16
    %v313 = vpop.permute.xlu0 %312
    %v316 = vadd.f32 %v304, %v311
    %v317 = vadd.f32 %v305, %v313
    %318 = vrot.lane.b32.xlu0 %v112, 32
    %v319 = vpop.permute.xlu0 %318
    %320 = vrot.lane.b32.xlu0 %v113, 32
    %v321 = vpop.permute.xlu0 %320
    %v324 = vmul.f32 %v271, %v319
    %v325 = vmul.f32 %v273, %v321
    %326 = vrot.lane.b32.xlu0 %v114, 48
    %v327 = vpop.permute.xlu0 %326
    %328 = vrot.lane.b32.xlu0 %v115, 48
    %v329 = vpop.permute.xlu0 %328
    %v332 = vmul.f32 %v271, %v327
    %v333 = vmul.f32 %v273, %v329
    %336 = vrot.lane.b32.xlu0 %v332, 112
    %v337 = vpop.permute.xlu0 %336
    %338 = vrot.lane.b32.xlu0 %v333, 112
    %v339 = vpop.permute.xlu0 %338
    %v342 = vsub.f32 %v324, %v337
    %v343 = vsub.f32 %v325, %v339
    %344 = vrot.lane.b32.xlu0 %v112, 48
    %v345 = vpop.permute.xlu0 %344
    %346 = vrot.lane.b32.xlu0 %v113, 48
    %v347 = vpop.permute.xlu0 %346
    %v350 = vmul.f32 %v271, %v345
    %v351 = vmul.f32 %v273, %v347
    %352 = vrot.lane.b32.xlu0 %v114, 32
    %v353 = vpop.permute.xlu0 %352
    %354 = vrot.lane.b32.xlu0 %v115, 32
    %v355 = vpop.permute.xlu0 %354
    %v358 = vmul.f32 %v271, %v353
    %v359 = vmul.f32 %v273, %v355
    %362 = vrot.lane.b32.xlu0 %v358, 16
    %v363 = vpop.permute.xlu0 %362
    %364 = vrot.lane.b32.xlu0 %v359, 16
    %v365 = vpop.permute.xlu0 %364
    %v368 = vadd.f32 %v350, %v363
    %v369 = vadd.f32 %v351, %v365
    %v370 = vlaneseq
    %v371 = vshrl.u32 %v370, 7
    %v372 = vadd.s32 %v371, 8
    %v373 = vlaneseq
    %v374 = vand.u32 %v373, 127
    %vm375 = vcmp.le.s32.totalorder %v374, %v371
    %vm376 = vcmp.le.s32.totalorder %v374, %v372
    %v377 = vmul.f32 %v270, %v112
    %v378 = vmul.f32 %v272, %v113
    %v379 = vmul.f32 %v270, %v279
    %v380 = vmul.f32 %v272, %v281
    %383 = vrot.lane.b32.xlu0 %v379, 112
    %v384 = vpop.permute.xlu0 %383
    %385 = vrot.lane.b32.xlu0 %v380, 112
    %v386 = vpop.permute.xlu0 %385
    %v389 = vsub.f32 %v377, %v384
    %v390 = vsub.f32 %v378, %v386
    %v391 = vmul.f32 %v270, %v299
    %v392 = vmul.f32 %v272, %v301
    %v393 = vmul.f32 %v270, %v114
    %v394 = vmul.f32 %v272, %v115
    %397 = vrot.lane.b32.xlu0 %v393, 16
    %v398 = vpop.permute.xlu0 %397
    %399 = vrot.lane.b32.xlu0 %v394, 16
    %v400 = vpop.permute.xlu0 %399
    %v403 = vadd.f32 %v391, %v398
    %v404 = vadd.f32 %v392, %v400
    %407 = vrot.lane.b32.xlu0 %v403, 112
    %v408 = vpop.permute.xlu0 %407
    %409 = vrot.lane.b32.xlu0 %v404, 112
    %v410 = vpop.permute.xlu0 %409
    %413 = vrot.lane.b32.xlu0 %v316, 112
    %v414 = vpop.permute.xlu0 %413
    %415 = vrot.lane.b32.xlu0 %v317, 112
    %v416 = vpop.permute.xlu0 %415
    %vm417 = vcmask 130048
    %v418 = vsel %vm417, %v408, 0
    %v420 = vsel %vm417, %v410, 0
    %v422 = vsel %vm417, %v414, 0
    %v424 = vsel %vm417, %v416, 0
    %426 = vmatprep.subr.mxu0 0.0
    %427 = vmatpush1.xpose.msra.mxu0 %v422
    %428 = vmatprep.subr.mxu0 0.0
    %429 = vmatpush1.xpose.msra.mxu0 %v424
    %430 = vmatprep.subr.mxu0 0.0
    %431 = vmatpush1.xpose.msra.mxu0 0.0
    %432 = vmatprep.subr.mxu0 0.0
    %433 = vmatpush1.xpose.msra.mxu0 0.0
    %434 = vmatprep.subr.mxu0 0.0
    %435 = vmatpush1.xpose.msra.mxu0 0.0
    %436 = vmatprep.subr.mxu0 0.0
    %437 = vmatpush1.xpose.msra.mxu0 0.0
    %438 = vmatprep.subr.mxu0 0.0
    %439 = vmatpush1.xpose.msra.mxu0 0.0
    %440 = vmatprep.subr.mxu0 0.0
    %441 = vmatpush1.xpose.msra.mxu0 0.0
    %442 = vmatprep.subr.mxu0 0.0
    %443 = vmatpush1.xpose.msra.mxu0 0.0
    %444 = vmatprep.subr.mxu0 0.0
    %445 = vmatpush1.xpose.msra.mxu0 0.0
    %446 = vmatprep.subr.mxu0 0.0
    %447 = vmatpush1.xpose.msra.mxu0 0.0
    %448 = vmatprep.subr.mxu0 0.0
    %449 = vmatpush1.xpose.msra.mxu0 0.0
    %450 = vmatprep.subr.mxu0 0.0
    %451 = vmatpush1.xpose.msra.mxu0 0.0
    %452 = vmatprep.subr.mxu0 0.0
    %453 = vmatpush1.xpose.msra.mxu0 0.0
    %454 = vmatprep.subr.mxu0 0.0
    %455 = vmatpush1.xpose.msra.mxu0 0.0
    %456 = vmatprep.subr.mxu0 0.0
    %457 = vmatpush1.xpose.msra.mxu0 0.0
    %458 = vmatprep.subr.mxu0 0.0
    %459 = vmatpush1.xpose.msra.mxu0 0.0
    %460 = vmatprep.subr.mxu0 0.0
    %461 = vmatpush1.xpose.msra.mxu0 0.0
    %462 = vmatprep.subr.mxu0 0.0
    %463 = vmatpush1.xpose.msra.mxu0 0.0
    %464 = vmatprep.subr.mxu0 0.0
    %465 = vmatpush1.xpose.msra.mxu0 0.0
    %466 = vmatprep.subr.mxu0 0.0
    %467 = vmatpush1.xpose.msra.mxu0 0.0
    %468 = vmatprep.subr.mxu0 0.0
    %469 = vmatpush1.xpose.msra.mxu0 0.0
    %470 = vmatprep.subr.mxu0 0.0
    %471 = vmatpush1.xpose.msra.mxu0 0.0
    %472 = vmatprep.subr.mxu0 0.0
    %473 = vmatpush1.xpose.msra.mxu0 0.0
    %474 = vmatprep.subr.mxu0 0.0
    %475 = vmatpush1.xpose.msra.mxu0 0.0
    %476 = vmatprep.subr.mxu0 0.0
    %477 = vmatpush1.xpose.msra.mxu0 0.0
    %478 = vmatprep.subr.mxu0 0.0
    %479 = vmatpush1.xpose.msra.mxu0 0.0
    %480 = vmatprep.subr.mxu0 0.0
    %481 = vmatpush1.xpose.msra.mxu0 0.0
    %482 = vmatprep.subr.mxu0 0.0
    %483 = vmatpush1.xpose.msra.mxu0 0.0
    %484 = vmatprep.subr.mxu0 0.0
    %485 = vmatpush1.xpose.msra.mxu0 0.0
    %486 = vmatprep.subr.mxu0 0.0
    %487 = vmatpush1.xpose.msra.mxu0 0.0
    %488 = vmatprep.subr.mxu0 0.0
    %489 = vmatpush1.xpose.msra.mxu0 0.0
    %490 = vmatprep.mubr.f32.mxu0 0.0
    %491 = vmatmul.mubr.f32.gmra.mrb[0].mxu0 %v418
    %v492 = vpop.f32.mrb[0].mxu0
    %v493 = vadd.f32 0.0, %v492
    %v494 = vpop.f32.mrb[0].mxu0
    %495 = vmatprep.mubr.f32.mxu0 0.0
    %496 = vmatmul.mubr.f32.gmra.mrb[0].mxu0 %v420
    %v497 = vpop.f32.mrb[0].mxu0
    %v498 = vadd.f32 0.0, %v497
    %v499 = vpop.f32.mrb[0].mxu0
    %500 = vdwg.mxu0
    %v502 = vsel %vm417, %v389, 0
    %v505 = vsel %vm417, %v390, 0
    %v508 = vsel %vm417, %v294, 0
    %v511 = vsel %vm417, %v295, 0
    %513 = vmatprep.subr.mxu0 0.0
    %514 = vmatpush1.xpose.msra.mxu0 %v508
    %515 = vmatprep.subr.mxu0 0.0
    %516 = vmatpush1.xpose.msra.mxu0 %v511
    %517 = vmatprep.subr.mxu0 0.0
    %518 = vmatpush1.xpose.msra.mxu0 0.0
    %519 = vmatprep.subr.mxu0 0.0
    %520 = vmatpush1.xpose.msra.mxu0 0.0
    %521 = vmatprep.subr.mxu0 0.0
    %522 = vmatpush1.xpose.msra.mxu0 0.0
    %523 = vmatprep.subr.mxu0 0.0
    %524 = vmatpush1.xpose.msra.mxu0 0.0
    %525 = vmatprep.subr.mxu0 0.0
    %526 = vmatpush1.xpose.msra.mxu0 0.0
    %527 = vmatprep.subr.mxu0 0.0
    %528 = vmatpush1.xpose.msra.mxu0 0.0
    %529 = vmatprep.subr.mxu0 0.0
    %530 = vmatpush1.xpose.msra.mxu0 0.0
    %531 = vmatprep.subr.mxu0 0.0
    %532 = vmatpush1.xpose.msra.mxu0 0.0
    %533 = vmatprep.subr.mxu0 0.0
    %534 = vmatpush1.xpose.msra.mxu0 0.0
    %535 = vmatprep.subr.mxu0 0.0
    %536 = vmatpush1.xpose.msra.mxu0 0.0
    %537 = vmatprep.subr.mxu0 0.0
    %538 = vmatpush1.xpose.msra.mxu0 0.0
    %539 = vmatprep.subr.mxu0 0.0
    %540 = vmatpush1.xpose.msra.mxu0 0.0
    %541 = vmatprep.subr.mxu0 0.0
    %542 = vmatpush1.xpose.msra.mxu0 0.0
    %543 = vmatprep.subr.mxu0 0.0
    %544 = vmatpush1.xpose.msra.mxu0 0.0
    %545 = vmatprep.subr.mxu0 0.0
    %546 = vmatpush1.xpose.msra.mxu0 0.0
    %547 = vmatprep.subr.mxu0 0.0
    %548 = vmatpush1.xpose.msra.mxu0 0.0
    %549 = vmatprep.subr.mxu0 0.0
    %550 = vmatpush1.xpose.msra.mxu0 0.0
    %551 = vmatprep.subr.mxu0 0.0
    %552 = vmatpush1.xpose.msra.mxu0 0.0
    %553 = vmatprep.subr.mxu0 0.0
    %554 = vmatpush1.xpose.msra.mxu0 0.0
    %555 = vmatprep.subr.mxu0 0.0
    %556 = vmatpush1.xpose.msra.mxu0 0.0
    %557 = vmatprep.subr.mxu0 0.0
    %558 = vmatpush1.xpose.msra.mxu0 0.0
    %559 = vmatprep.subr.mxu0 0.0
    %560 = vmatpush1.xpose.msra.mxu0 0.0
    %561 = vmatprep.subr.mxu0 0.0
    %562 = vmatpush1.xpose.msra.mxu0 0.0
    %563 = vmatprep.subr.mxu0 0.0
    %564 = vmatpush1.xpose.msra.mxu0 0.0
    %565 = vmatprep.subr.mxu0 0.0
    %566 = vmatpush1.xpose.msra.mxu0 0.0
    %567 = vmatprep.subr.mxu0 0.0
    %568 = vmatpush1.xpose.msra.mxu0 0.0
    %569 = vmatprep.subr.mxu0 0.0
    %570 = vmatpush1.xpose.msra.mxu0 0.0
    %571 = vmatprep.subr.mxu0 0.0
    %572 = vmatpush1.xpose.msra.mxu0 0.0
    %573 = vmatprep.subr.mxu0 0.0
    %574 = vmatpush1.xpose.msra.mxu0 0.0
    %575 = vmatprep.subr.mxu0 0.0
    %576 = vmatpush1.xpose.msra.mxu0 0.0
    %577 = vmatprep.mubr.f32.mxu0 0.0
    %578 = vmatmul.mubr.f32.gmra.mrb[0].mxu0 %v502
    %v579 = vpop.f32.mrb[0].mxu0
    %v580 = vadd.f32 %v493, %v579
    %v581 = vpop.f32.mrb[0].mxu0
    %582 = vmatprep.mubr.f32.mxu0 0.0
    %583 = vmatmul.mubr.f32.gmra.mrb[0].mxu0 %v505
    %v584 = vpop.f32.mrb[0].mxu0
    %v585 = vadd.f32 %v498, %v584
    %v586 = vpop.f32.mrb[0].mxu0
    %587 = vdwg.mxu0
    %v588 = vmul.f32 %v580, 0.17677669
    %v589 = vmul.f32 %v585, 0.17677669
    %v590 = vsel %vm375, %v588, -1e+30
    %v591 = vsel %vm376, %v589, -1e+30
    %v592 = vsel %vm417, %v590, -inf
    %593 = vmax.xlane.f32.xlu0 %v592
    %v594 = vpop.xlane.xlu0 %593
    %v595 = vsel %vm417, %v591, -inf
    %596 = vmax.xlane.f32.xlu0 %v595
    %v597 = vpop.xlane.xlu0 %596
    %v598 = vsub.f32 %v590, %v594
    %v599 = vsub.f32 %v591, %v597
    %v600 = vmul.f32 %v598, 1.442695
    %v601 = vpow.pop %v600
    %v602 = vmul.f32 %v599, 1.442695
    %v603 = vpow.pop %v602
    %v604 = vsel %vm417, %v601, 0.0
    %605 = vadd.xlane.f32.xlu0 %v604
    %v606 = vpop.xlane.xlu0 %605
    %v607 = vsel %vm417, %v603, 0.0
    %608 = vadd.xlane.f32.xlu0 %v607
    %v609 = vpop.xlane.xlu0 %608
    %v610 = vrcp.pop %v606
    %v611 = vmul.f32 %v601, %v610
    %v612 = vrcp.pop %v609
    %v613 = vmul.f32 %v603, %v612
    %616 = vrot.lane.b32.xlu0 %v271, 64
    %v617 = vpop.permute.xlu0 %616
    %618 = vrot.lane.b32.xlu0 %v273, 64
    %v619 = vpop.permute.xlu0 %618
    %v623 = vsel %vm417, %v611, 0
    %v626 = vsel %vm417, %v613, 0
    %628 = vmatprep.subr.mxu0 0.0
    %629 = vmatpush1.msra.mxu0 %v617
    %630 = vmatprep.subr.mxu0 0.0
    %631 = vmatpush1.msra.mxu0 %v619
    %632 = vmatprep.subr.mxu0 0.0
    %633 = vmatpush1.msra.mxu0 0.0
    %634 = vmatprep.subr.mxu0 0.0
    %635 = vmatpush1.msra.mxu0 0.0
    %636 = vmatprep.subr.mxu0 0.0
    %637 = vmatpush1.msra.mxu0 0.0
    %638 = vmatprep.subr.mxu0 0.0
    %639 = vmatpush1.msra.mxu0 0.0
    %640 = vmatprep.subr.mxu0 0.0
    %641 = vmatpush1.msra.mxu0 0.0
    %642 = vmatprep.subr.mxu0 0.0
    %643 = vmatpush1.msra.mxu0 0.0
    %644 = vmatprep.subr.mxu0 0.0
    %645 = vmatpush1.msra.mxu0 0.0
    %646 = vmatprep.subr.mxu0 0.0
    %647 = vmatpush1.msra.mxu0 0.0
    %648 = vmatprep.subr.mxu0 0.0
    %649 = vmatpush1.msra.mxu0 0.0
    %650 = vmatprep.subr.mxu0 0.0
    %651 = vmatpush1.msra.mxu0 0.0
    %652 = vmatprep.subr.mxu0 0.0
    %653 = vmatpush1.msra.mxu0 0.0
    %654 = vmatprep.subr.mxu0 0.0
    %655 = vmatpush1.msra.mxu0 0.0
    %656 = vmatprep.subr.mxu0 0.0
    %657 = vmatpush1.msra.mxu0 0.0
    %658 = vmatprep.subr.mxu0 0.0
    %659 = vmatpush1.msra.mxu0 0.0
    %660 = vmatprep.subr.mxu0 0.0
    %661 = vmatpush1.msra.mxu0 0.0
    %662 = vmatprep.subr.mxu0 0.0
    %663 = vmatpush1.msra.mxu0 0.0
    %664 = vmatprep.subr.mxu0 0.0
    %665 = vmatpush1.msra.mxu0 0.0
    %666 = vmatprep.subr.mxu0 0.0
    %667 = vmatpush1.msra.mxu0 0.0
    %668 = vmatprep.subr.mxu0 0.0
    %669 = vmatpush1.msra.mxu0 0.0
    %670 = vmatprep.subr.mxu0 0.0
    %671 = vmatpush1.msra.mxu0 0.0
    %672 = vmatprep.subr.mxu0 0.0
    %673 = vmatpush1.msra.mxu0 0.0
    %674 = vmatprep.subr.mxu0 0.0
    %675 = vmatpush1.msra.mxu0 0.0
    %676 = vmatprep.subr.mxu0 0.0
    %677 = vmatpush1.msra.mxu0 0.0
    %678 = vmatprep.subr.mxu0 0.0
    %679 = vmatpush1.msra.mxu0 0.0
    %680 = vmatprep.subr.mxu0 0.0
    %681 = vmatpush1.msra.mxu0 0.0
    %682 = vmatprep.subr.mxu0 0.0
    %683 = vmatpush1.msra.mxu0 0.0
    %684 = vmatprep.subr.mxu0 0.0
    %685 = vmatpush1.msra.mxu0 0.0
    %686 = vmatprep.subr.mxu0 0.0
    %687 = vmatpush1.msra.mxu0 0.0
    %688 = vmatprep.subr.mxu0 0.0
    %689 = vmatpush1.msra.mxu0 0.0
    %690 = vmatprep.subr.mxu0 0.0
    %691 = vmatpush1.msra.mxu0 0.0
    %692 = vmatprep.mubr.f32.mxu0 0.0
    %693 = vmatmul.mubr.f32.gmra.mrb[0].mxu0 %v623
    %v694 = vpop.f32.mrb[0].mxu0
    %v695 = vadd.f32 0.0, %v694
    %v696 = vpop.f32.mrb[0].mxu0
    %697 = vmatprep.mubr.f32.mxu0 0.0
    %698 = vmatmul.mubr.f32.gmra.mrb[0].mxu0 %v626
    %v699 = vpop.f32.mrb[0].mxu0
    %v700 = vadd.f32 0.0, %v699
    %v701 = vpop.f32.mrb[0].mxu0
    %702 = vdwg.mxu0
    %v703 = vld [vmem:[%s6] sm:$0xff]
    %v704 = vld [vmem:[%s6 + $0x8] sm:$0xff]
    %v705 = vld [vmem:[%s6 + $0x10] sm:$0xff]
    %v706 = vld [vmem:[%s6 + $0x18] sm:$0xff]
    %v707 = vmul.f32 %v270, %v319
    %v708 = vmul.f32 %v272, %v321
    %v709 = vmul.f32 %v270, %v327
    %v710 = vmul.f32 %v272, %v329
    %713 = vrot.lane.b32.xlu0 %v709, 112
    %v714 = vpop.permute.xlu0 %713
    %715 = vrot.lane.b32.xlu0 %v710, 112
    %v716 = vpop.permute.xlu0 %715
    %v719 = vsub.f32 %v707, %v714
    %v720 = vsub.f32 %v708, %v716
    %v721 = vmul.f32 %v270, %v345
    %v722 = vmul.f32 %v272, %v347
    %v723 = vmul.f32 %v270, %v353
    %v724 = vmul.f32 %v272, %v355
    %727 = vrot.lane.b32.xlu0 %v723, 16
    %v728 = vpop.permute.xlu0 %727
    %729 = vrot.lane.b32.xlu0 %v724, 16
    %v730 = vpop.permute.xlu0 %729
    %v733 = vadd.f32 %v721, %v728
    %v734 = vadd.f32 %v722, %v730
    %737 = vrot.lane.b32.xlu0 %v733, 80
    %v738 = vpop.permute.xlu0 %737
    %739 = vrot.lane.b32.xlu0 %v734, 80
    %v740 = vpop.permute.xlu0 %739
    %v741 = vsel %vm417, %v738, 0
    %v743 = vsel %vm417, %v740, 0
    %745 = vmatprep.subr.mxu0 0.0
    %746 = vmatpush1.xpose.msra.mxu0 %v422
    %747 = vmatprep.subr.mxu0 0.0
    %748 = vmatpush1.xpose.msra.mxu0 %v424
    %749 = vmatprep.subr.mxu0 0.0
    %750 = vmatpush1.xpose.msra.mxu0 0.0
    %751 = vmatprep.subr.mxu0 0.0
    %752 = vmatpush1.xpose.msra.mxu0 0.0
    %753 = vmatprep.subr.mxu0 0.0
    %754 = vmatpush1.xpose.msra.mxu0 0.0
    %755 = vmatprep.subr.mxu0 0.0
    %756 = vmatpush1.xpose.msra.mxu0 0.0
    %757 = vmatprep.subr.mxu0 0.0
    %758 = vmatpush1.xpose.msra.mxu0 0.0
    %759 = vmatprep.subr.mxu0 0.0
    %760 = vmatpush1.xpose.msra.mxu0 0.0
    %761 = vmatprep.subr.mxu0 0.0
    %762 = vmatpush1.xpose.msra.mxu0 0.0
    %763 = vmatprep.subr.mxu0 0.0
    %764 = vmatpush1.xpose.msra.mxu0 0.0
    %765 = vmatprep.subr.mxu0 0.0
    %766 = vmatpush1.xpose.msra.mxu0 0.0
    %767 = vmatprep.subr.mxu0 0.0
    %768 = vmatpush1.xpose.msra.mxu0 0.0
    %769 = vmatprep.subr.mxu0 0.0
    %770 = vmatpush1.xpose.msra.mxu0 0.0
    %771 = vmatprep.subr.mxu0 0.0
    %772 = vmatpush1.xpose.msra.mxu0 0.0
    %773 = vmatprep.subr.mxu0 0.0
    %774 = vmatpush1.xpose.msra.mxu0 0.0
    %775 = vmatprep.subr.mxu0 0.0
    %776 = vmatpush1.xpose.msra.mxu0 0.0
    %777 = vmatprep.subr.mxu0 0.0
    %778 = vmatpush1.xpose.msra.mxu0 0.0
    %779 = vmatprep.subr.mxu0 0.0
    %780 = vmatpush1.xpose.msra.mxu0 0.0
    %781 = vmatprep.subr.mxu0 0.0
    %782 = vmatpush1.xpose.msra.mxu0 0.0
    %783 = vmatprep.subr.mxu0 0.0
    %784 = vmatpush1.xpose.msra.mxu0 0.0
    %785 = vmatprep.subr.mxu0 0.0
    %786 = vmatpush1.xpose.msra.mxu0 0.0
    %787 = vmatprep.subr.mxu0 0.0
    %788 = vmatpush1.xpose.msra.mxu0 0.0
    %789 = vmatprep.subr.mxu0 0.0
    %790 = vmatpush1.xpose.msra.mxu0 0.0
    %791 = vmatprep.subr.mxu0 0.0
    %792 = vmatpush1.xpose.msra.mxu0 0.0
    %793 = vmatprep.subr.mxu0 0.0
    %794 = vmatpush1.xpose.msra.mxu0 0.0
    %795 = vmatprep.subr.mxu0 0.0
    %796 = vmatpush1.xpose.msra.mxu0 0.0
    %797 = vmatprep.subr.mxu0 0.0
    %798 = vmatpush1.xpose.msra.mxu0 0.0
    %799 = vmatprep.subr.mxu0 0.0
    %800 = vmatpush1.xpose.msra.mxu0 0.0
    %801 = vmatprep.subr.mxu0 0.0
    %802 = vmatpush1.xpose.msra.mxu0 0.0
    %803 = vmatprep.subr.mxu0 0.0
    %804 = vmatpush1.xpose.msra.mxu0 0.0
    %805 = vmatprep.subr.mxu0 0.0
    %806 = vmatpush1.xpose.msra.mxu0 0.0
    %807 = vmatprep.subr.mxu0 0.0
    %808 = vmatpush1.xpose.msra.mxu0 0.0
    %809 = vmatprep.mubr.f32.mxu0 0.0
    %810 = vmatmul.mubr.f32.gmra.mrb[0].mxu0 %v741
    %v811 = vpop.f32.mrb[0].mxu0
    %v812 = vadd.f32 0.0, %v811
    %v813 = vpop.f32.mrb[0].mxu0
    %814 = vmatprep.mubr.f32.mxu0 0.0
    %815 = vmatmul.mubr.f32.gmra.mrb[0].mxu0 %v743
    %v816 = vpop.f32.mrb[0].mxu0
    %v817 = vadd.f32 0.0, %v816
    %v818 = vpop.f32.mrb[0].mxu0
    %819 = vdwg.mxu0
    %822 = vrot.lane.b32.xlu0 %v719, 96
    %v823 = vpop.permute.xlu0 %822
    %824 = vrot.lane.b32.xlu0 %v720, 96
    %v825 = vpop.permute.xlu0 %824
    %v826 = vsel %vm417, %v823, 0
    %v828 = vsel %vm417, %v825, 0
    %830 = vmatprep.subr.mxu0 0.0
    %831 = vmatpush1.xpose.msra.mxu0 %v508
    %832 = vmatprep.subr.mxu0 0.0
    %833 = vmatpush1.xpose.msra.mxu0 %v511
    %834 = vmatprep.subr.mxu0 0.0
    %835 = vmatpush1.xpose.msra.mxu0 0.0
    %836 = vmatprep.subr.mxu0 0.0
    %837 = vmatpush1.xpose.msra.mxu0 0.0
    %838 = vmatprep.subr.mxu0 0.0
    %839 = vmatpush1.xpose.msra.mxu0 0.0
    %840 = vmatprep.subr.mxu0 0.0
    %841 = vmatpush1.xpose.msra.mxu0 0.0
    %842 = vmatprep.subr.mxu0 0.0
    %843 = vmatpush1.xpose.msra.mxu0 0.0
    %844 = vmatprep.subr.mxu0 0.0
    %845 = vmatpush1.xpose.msra.mxu0 0.0
    %846 = vmatprep.subr.mxu0 0.0
    %847 = vmatpush1.xpose.msra.mxu0 0.0
    %848 = vmatprep.subr.mxu0 0.0
    %849 = vmatpush1.xpose.msra.mxu0 0.0
    %850 = vmatprep.subr.mxu0 0.0
    %851 = vmatpush1.xpose.msra.mxu0 0.0
    %852 = vmatprep.subr.mxu0 0.0
    %853 = vmatpush1.xpose.msra.mxu0 0.0
    %854 = vmatprep.subr.mxu0 0.0
    %855 = vmatpush1.xpose.msra.mxu0 0.0
    %856 = vmatprep.subr.mxu0 0.0
    %857 = vmatpush1.xpose.msra.mxu0 0.0
    %858 = vmatprep.subr.mxu0 0.0
    %859 = vmatpush1.xpose.msra.mxu0 0.0
    %860 = vmatprep.subr.mxu0 0.0
    %861 = vmatpush1.xpose.msra.mxu0 0.0
    %862 = vmatprep.subr.mxu0 0.0
    %863 = vmatpush1.xpose.msra.mxu0 0.0
    %864 = vmatprep.subr.mxu0 0.0
    %865 = vmatpush1.xpose.msra.mxu0 0.0
    %866 = vmatprep.subr.mxu0 0.0
    %867 = vmatpush1.xpose.msra.mxu0 0.0
    %868 = vmatprep.subr.mxu0 0.0
    %869 = vmatpush1.xpose.msra.mxu0 0.0
    %870 = vmatprep.subr.mxu0 0.0
    %871 = vmatpush1.xpose.msra.mxu0 0.0
    %872 = vmatprep.subr.mxu0 0.0
    %873 = vmatpush1.xpose.msra.mxu0 0.0
    %874 = vmatprep.subr.mxu0 0.0
    %875 = vmatpush1.xpose.msra.mxu0 0.0
    %876 = vmatprep.subr.mxu0 0.0
    %877 = vmatpush1.xpose.msra.mxu0 0.0
    %878 = vmatprep.subr.mxu0 0.0
    %879 = vmatpush1.xpose.msra.mxu0 0.0
    %880 = vmatprep.subr.mxu0 0.0
    %881 = vmatpush1.xpose.msra.mxu0 0.0
    %882 = vmatprep.subr.mxu0 0.0
    %883 = vmatpush1.xpose.msra.mxu0 0.0
    %884 = vmatprep.subr.mxu0 0.0
    %885 = vmatpush1.xpose.msra.mxu0 0.0
    %886 = vmatprep.subr.mxu0 0.0
    %887 = vmatpush1.xpose.msra.mxu0 0.0
    %888 = vmatprep.subr.mxu0 0.0
    %889 = vmatpush1.xpose.msra.mxu0 0.0
    %890 = vmatprep.subr.mxu0 0.0
    %891 = vmatpush1.xpose.msra.mxu0 0.0
    %892 = vmatprep.subr.mxu0 0.0
    %893 = vmatpush1.xpose.msra.mxu0 0.0
    %894 = vmatprep.mubr.f32.mxu0 0.0
    %895 = vmatmul.mubr.f32.gmra.mrb[0].mxu0 %v826
    %v896 = vpop.f32.mrb[0].mxu0
    %v897 = vadd.f32 %v812, %v896
    %v898 = vpop.f32.mrb[0].mxu0
    %899 = vmatprep.mubr.f32.mxu0 0.0
    %900 = vmatmul.mubr.f32.gmra.mrb[0].mxu0 %v828
    %v901 = vpop.f32.mrb[0].mxu0
    %v902 = vadd.f32 %v817, %v901
    %v903 = vpop.f32.mrb[0].mxu0
    %904 = vdwg.mxu0
    %v905 = vmul.f32 %v897, 0.17677669
    %v906 = vmul.f32 %v902, 0.17677669
    %v907 = vsel %vm375, %v905, -1e+30
    %v908 = vsel %vm376, %v906, -1e+30
    %v909 = vsel %vm417, %v907, -inf
    %910 = vmax.xlane.f32.xlu0 %v909
    %v911 = vpop.xlane.xlu0 %910
    %v912 = vsel %vm417, %v908, -inf
    %913 = vmax.xlane.f32.xlu0 %v912
    %v914 = vpop.xlane.xlu0 %913
    %v915 = vsub.f32 %v907, %v911
    %v916 = vsub.f32 %v908, %v914
    %v917 = vmul.f32 %v915, 1.442695
    %v918 = vpow.pop %v917
    %v919 = vmul.f32 %v916, 1.442695
    %v920 = vpow.pop %v919
    %v921 = vsel %vm417, %v918, 0.0
    %922 = vadd.xlane.f32.xlu0 %v921
    %v923 = vpop.xlane.xlu0 %922
    %v924 = vsel %vm417, %v920, 0.0
    %925 = vadd.xlane.f32.xlu0 %v924
    %v926 = vpop.xlane.xlu0 %925
    %v927 = vrcp.pop %v923
    %v928 = vmul.f32 %v918, %v927
    %v929 = vrcp.pop %v926
    %v930 = vmul.f32 %v920, %v929
    %v932 = vsel %vm417, %v928, 0
    %v935 = vsel %vm417, %v930, 0
    %937 = vmatprep.subr.mxu0 0.0
    %938 = vmatpush1.msra.mxu0 %v617
    %939 = vmatprep.subr.mxu0 0.0
    %940 = vmatpush1.msra.mxu0 %v619
    %941 = vmatprep.subr.mxu0 0.0
    %942 = vmatpush1.msra.mxu0 0.0
    %943 = vmatprep.subr.mxu0 0.0
    %944 = vmatpush1.msra.mxu0 0.0
    %945 = vmatprep.subr.mxu0 0.0
    %946 = vmatpush1.msra.mxu0 0.0
    %947 = vmatprep.subr.mxu0 0.0
    %948 = vmatpush1.msra.mxu0 0.0
    %949 = vmatprep.subr.mxu0 0.0
    %950 = vmatpush1.msra.mxu0 0.0
    %951 = vmatprep.subr.mxu0 0.0
    %952 = vmatpush1.msra.mxu0 0.0
    %953 = vmatprep.subr.mxu0 0.0
    %954 = vmatpush1.msra.mxu0 0.0
    %955 = vmatprep.subr.mxu0 0.0
    %956 = vmatpush1.msra.mxu0 0.0
    %957 = vmatprep.subr.mxu0 0.0
    %958 = vmatpush1.msra.mxu0 0.0
    %959 = vmatprep.subr.mxu0 0.0
    %960 = vmatpush1.msra.mxu0 0.0
    %961 = vmatprep.subr.mxu0 0.0
    %962 = vmatpush1.msra.mxu0 0.0
    %963 = vmatprep.subr.mxu0 0.0
    %964 = vmatpush1.msra.mxu0 0.0
    %965 = vmatprep.subr.mxu0 0.0
    %966 = vmatpush1.msra.mxu0 0.0
    %967 = vmatprep.subr.mxu0 0.0
    %968 = vmatpush1.msra.mxu0 0.0
    %969 = vmatprep.subr.mxu0 0.0
    %970 = vmatpush1.msra.mxu0 0.0
    %971 = vmatprep.subr.mxu0 0.0
    %972 = vmatpush1.msra.mxu0 0.0
    %973 = vmatprep.subr.mxu0 0.0
    %974 = vmatpush1.msra.mxu0 0.0
    %975 = vmatprep.subr.mxu0 0.0
    %976 = vmatpush1.msra.mxu0 0.0
    %977 = vmatprep.subr.mxu0 0.0
    %978 = vmatpush1.msra.mxu0 0.0
    %979 = vmatprep.subr.mxu0 0.0
    %980 = vmatpush1.msra.mxu0 0.0
    %981 = vmatprep.subr.mxu0 0.0
    %982 = vmatpush1.msra.mxu0 0.0
    %983 = vmatprep.subr.mxu0 0.0
    %984 = vmatpush1.msra.mxu0 0.0
    %985 = vmatprep.subr.mxu0 0.0
    %986 = vmatpush1.msra.mxu0 0.0
    %987 = vmatprep.subr.mxu0 0.0
    %988 = vmatpush1.msra.mxu0 0.0
    %989 = vmatprep.subr.mxu0 0.0
    %990 = vmatpush1.msra.mxu0 0.0
    %991 = vmatprep.subr.mxu0 0.0
    %992 = vmatpush1.msra.mxu0 0.0
    %993 = vmatprep.subr.mxu0 0.0
    %994 = vmatpush1.msra.mxu0 0.0
    %995 = vmatprep.subr.mxu0 0.0
    %996 = vmatpush1.msra.mxu0 0.0
    %997 = vmatprep.subr.mxu0 0.0
    %998 = vmatpush1.msra.mxu0 0.0
    %999 = vmatprep.subr.mxu0 0.0
    %1000 = vmatpush1.msra.mxu0 0.0
    %1001 = vmatprep.mubr.f32.mxu0 0.0
    %1002 = vmatmul.mubr.f32.gmra.mrb[0].mxu0 %v932
    %v1003 = vpop.f32.mrb[0].mxu0
    %v1004 = vadd.f32 0.0, %v1003
    %v1005 = vpop.f32.mrb[0].mxu0
    %1006 = vmatprep.mubr.f32.mxu0 0.0
    %1007 = vmatmul.mubr.f32.gmra.mrb[0].mxu0 %v935
    %v1008 = vpop.f32.mrb[0].mxu0
    %v1009 = vadd.f32 0.0, %v1008
    %v1010 = vpop.f32.mrb[0].mxu0
    %1011 = vdwg.mxu0
    %v1012 = vld [vmem:[%s6 + $0x20] sm:$0xff]
    %v1013 = vld [vmem:[%s6 + $0x28] sm:$0xff]
    %v1014 = vld [vmem:[%s6 + $0x30] sm:$0xff]
    %v1015 = vld [vmem:[%s6 + $0x38] sm:$0xff]
    %vm1016 = vcmask 261120
    %v1018 = vsel %vm1016, %v1004, 0
    %v1021 = vsel %vm1016, %v1009, 0
    %1023 = vmatprep.subr.mxu0 0.0
    %1024 = vmatpush1.msra.mxu0 %v1012
    %1025 = vmatprep.subr.mxu0 0.0
    %1026 = vmatpush1.msra.mxu0 %v1013
    %1027 = vmatprep.subr.mxu0 0.0
    %1028 = vmatpush1.msra.mxu0 %v1014
    %1029 = vmatprep.subr.mxu0 0.0
    %1030 = vmatpush1.msra.mxu0 %v1015
    %1031 = vmatprep.subr.mxu0 0.0
    %1032 = vmatpush1.msra.mxu0 0.0
    %1033 = vmatprep.subr.mxu0 0.0
    %1034 = vmatpush1.msra.mxu0 0.0
    %1035 = vmatprep.subr.mxu0 0.0
    %1036 = vmatpush1.msra.mxu0 0.0
    %1037 = vmatprep.subr.mxu0 0.0
    %1038 = vmatpush1.msra.mxu0 0.0
    %1039 = vmatprep.subr.mxu0 0.0
    %1040 = vmatpush1.msra.mxu0 0.0
    %1041 = vmatprep.subr.mxu0 0.0
    %1042 = vmatpush1.msra.mxu0 0.0
    %1043 = vmatprep.subr.mxu0 0.0
    %1044 = vmatpush1.msra.mxu0 0.0
    %1045 = vmatprep.subr.mxu0 0.0
    %1046 = vmatpush1.msra.mxu0 0.0
    %1047 = vmatprep.subr.mxu0 0.0
    %1048 = vmatpush1.msra.mxu0 0.0
    %1049 = vmatprep.subr.mxu0 0.0
    %1050 = vmatpush1.msra.mxu0 0.0
    %1051 = vmatprep.subr.mxu0 0.0
    %1052 = vmatpush1.msra.mxu0 0.0
    %1053 = vmatprep.subr.mxu0 0.0
    %1054 = vmatpush1.msra.mxu0 0.0
    %1055 = vmatprep.subr.mxu0 0.0
    %1056 = vmatpush1.msra.mxu0 0.0
    %1057 = vmatprep.subr.mxu0 0.0
    %1058 = vmatpush1.msra.mxu0 0.0
    %1059 = vmatprep.subr.mxu0 0.0
    %1060 = vmatpush1.msra.mxu0 0.0
    %1061 = vmatprep.subr.mxu0 0.0
    %1062 = vmatpush1.msra.mxu0 0.0
    %1063 = vmatprep.subr.mxu0 0.0
    %1064 = vmatpush1.msra.mxu0 0.0
    %1065 = vmatprep.subr.mxu0 0.0
    %1066 = vmatpush1.msra.mxu0 0.0
    %1067 = vmatprep.subr.mxu0 0.0
    %1068 = vmatpush1.msra.mxu0 0.0
    %1069 = vmatprep.subr.mxu0 0.0
    %1070 = vmatpush1.msra.mxu0 0.0
    %1071 = vmatprep.subr.mxu0 0.0
    %1072 = vmatpush1.msra.mxu0 0.0
    %1073 = vmatprep.subr.mxu0 0.0
    %1074 = vmatpush1.msra.mxu0 0.0
    %1075 = vmatprep.subr.mxu0 0.0
    %1076 = vmatpush1.msra.mxu0 0.0
    %1077 = vmatprep.subr.mxu0 0.0
    %1078 = vmatpush1.msra.mxu0 0.0
    %1079 = vmatprep.subr.mxu0 0.0
    %1080 = vmatpush1.msra.mxu0 0.0
    %1081 = vmatprep.subr.mxu0 0.0
    %1082 = vmatpush1.msra.mxu0 0.0
    %1083 = vmatprep.subr.mxu0 0.0
    %1084 = vmatpush1.msra.mxu0 0.0
    %1085 = vmatprep.subr.mxu0 0.0
    %1086 = vmatpush1.msra.mxu0 0.0
    %1087 = vmatprep.mubr.f32.mxu0 0.0
    %1088 = vmatmul.mubr.f32.gmra.mrb[0].mxu0 %v1018
    %v1089 = vpop.f32.mrb[0].mxu0
    %v1090 = vadd.f32 0.0, %v1089
    %v1091 = vpop.f32.mrb[0].mxu0
    %1092 = vmatprep.mubr.f32.mxu0 0.0
    %1093 = vmatmul.mubr.f32.gmra.mrb[0].mxu0 %v1021
    %v1094 = vpop.f32.mrb[0].mxu0
    %v1095 = vadd.f32 0.0, %v1094
    %v1096 = vpop.f32.mrb[0].mxu0
    %1097 = vdwg.mxu0
    %v1099 = vsel %vm1016, %v695, 0
    %v1102 = vsel %vm1016, %v700, 0
    %1104 = vmatprep.subr.mxu0 0.0
    %1105 = vmatpush1.msra.mxu0 %v703
    %1106 = vmatprep.subr.mxu0 0.0
    %1107 = vmatpush1.msra.mxu0 %v704
    %1108 = vmatprep.subr.mxu0 0.0
    %1109 = vmatpush1.msra.mxu0 %v705
    %1110 = vmatprep.subr.mxu0 0.0
    %1111 = vmatpush1.msra.mxu0 %v706
    %1112 = vmatprep.subr.mxu0 0.0
    %1113 = vmatpush1.msra.mxu0 0.0
    %1114 = vmatprep.subr.mxu0 0.0
    %1115 = vmatpush1.msra.mxu0 0.0
    %1116 = vmatprep.subr.mxu0 0.0
    %1117 = vmatpush1.msra.mxu0 0.0
    %1118 = vmatprep.subr.mxu0 0.0
    %1119 = vmatpush1.msra.mxu0 0.0
    %1120 = vmatprep.subr.mxu0 0.0
    %1121 = vmatpush1.msra.mxu0 0.0
    %1122 = vmatprep.subr.mxu0 0.0
    %1123 = vmatpush1.msra.mxu0 0.0
    %1124 = vmatprep.subr.mxu0 0.0
    %1125 = vmatpush1.msra.mxu0 0.0
    %1126 = vmatprep.subr.mxu0 0.0
    %1127 = vmatpush1.msra.mxu0 0.0
    %1128 = vmatprep.subr.mxu0 0.0
    %1129 = vmatpush1.msra.mxu0 0.0
    %1130 = vmatprep.subr.mxu0 0.0
    %1131 = vmatpush1.msra.mxu0 0.0
    %1132 = vmatprep.subr.mxu0 0.0
    %1133 = vmatpush1.msra.mxu0 0.0
    %1134 = vmatprep.subr.mxu0 0.0
    %1135 = vmatpush1.msra.mxu0 0.0
    %1136 = vmatprep.subr.mxu0 0.0
    %1137 = vmatpush1.msra.mxu0 0.0
    %1138 = vmatprep.subr.mxu0 0.0
    %1139 = vmatpush1.msra.mxu0 0.0
    %1140 = vmatprep.subr.mxu0 0.0
    %1141 = vmatpush1.msra.mxu0 0.0
    %1142 = vmatprep.subr.mxu0 0.0
    %1143 = vmatpush1.msra.mxu0 0.0
    %1144 = vmatprep.subr.mxu0 0.0
    %1145 = vmatpush1.msra.mxu0 0.0
    %1146 = vmatprep.subr.mxu0 0.0
    %1147 = vmatpush1.msra.mxu0 0.0
    %1148 = vmatprep.subr.mxu0 0.0
    %1149 = vmatpush1.msra.mxu0 0.0
    %1150 = vmatprep.subr.mxu0 0.0
    %1151 = vmatpush1.msra.mxu0 0.0
    %1152 = vmatprep.subr.mxu0 0.0
    %1153 = vmatpush1.msra.mxu0 0.0
    %1154 = vmatprep.subr.mxu0 0.0
    %1155 = vmatpush1.msra.mxu0 0.0
    %1156 = vmatprep.subr.mxu0 0.0
    %1157 = vmatpush1.msra.mxu0 0.0
    %1158 = vmatprep.subr.mxu0 0.0
    %1159 = vmatpush1.msra.mxu0 0.0
    %1160 = vmatprep.subr.mxu0 0.0
    %1161 = vmatpush1.msra.mxu0 0.0
    %1162 = vmatprep.subr.mxu0 0.0
    %1163 = vmatpush1.msra.mxu0 0.0
    %1164 = vmatprep.subr.mxu0 0.0
    %1165 = vmatpush1.msra.mxu0 0.0
    %1166 = vmatprep.subr.mxu0 0.0
    %1167 = vmatpush1.msra.mxu0 0.0
    %1168 = vmatprep.mubr.f32.mxu0 0.0
    %1169 = vmatmul.mubr.f32.gmra.mrb[0].mxu0 %v1099
    %v1170 = vpop.f32.mrb[0].mxu0
    %v1171 = vadd.f32 %v1090, %v1170
    %v1172 = vpop.f32.mrb[0].mxu0
    %1173 = vmatprep.mubr.f32.mxu0 0.0
    %1174 = vmatmul.mubr.f32.gmra.mrb[0].mxu0 %v1102
    %v1175 = vpop.f32.mrb[0].mxu0
    %v1176 = vadd.f32 %v1095, %v1175
    %v1177 = vpop.f32.mrb[0].mxu0
    %1178 = vdwg.mxu0
    %1179 = vrot.lane.b32.xlu0 %v112, 64
    %v1180 = vpop.permute.xlu0 %1179
    %1181 = vrot.lane.b32.xlu0 %v113, 64
    %v1182 = vpop.permute.xlu0 %1181
    %v1185 = vmul.f32 %v270, %v1180
    %v1186 = vmul.f32 %v272, %v1182
    %1187 = vrot.lane.b32.xlu0 %v114, 80
    %v1188 = vpop.permute.xlu0 %1187
    %1189 = vrot.lane.b32.xlu0 %v115, 80
    %v1190 = vpop.permute.xlu0 %1189
    %v1193 = vmul.f32 %v270, %v1188
    %v1194 = vmul.f32 %v272, %v1190
    %1197 = vrot.lane.b32.xlu0 %v1193, 112
    %v1198 = vpop.permute.xlu0 %1197
    %1199 = vrot.lane.b32.xlu0 %v1194, 112
    %v1200 = vpop.permute.xlu0 %1199
    %v1203 = vsub.f32 %v1185, %v1198
    %v1204 = vsub.f32 %v1186, %v1200
    %1205 = vrot.lane.b32.xlu0 %v112, 80
    %v1206 = vpop.permute.xlu0 %1205
    %1207 = vrot.lane.b32.xlu0 %v113, 80
    %v1208 = vpop.permute.xlu0 %1207
    %v1211 = vmul.f32 %v270, %v1206
    %v1212 = vmul.f32 %v272, %v1208
    %1213 = vrot.lane.b32.xlu0 %v114, 64
    %v1214 = vpop.permute.xlu0 %1213
    %1215 = vrot.lane.b32.xlu0 %v115, 64
    %v1216 = vpop.permute.xlu0 %1215
    %v1219 = vmul.f32 %v270, %v1214
    %v1220 = vmul.f32 %v272, %v1216
    %1223 = vrot.lane.b32.xlu0 %v1219, 16
    %v1224 = vpop.permute.xlu0 %1223
    %1225 = vrot.lane.b32.xlu0 %v1220, 16
    %v1226 = vpop.permute.xlu0 %1225
    %v1229 = vadd.f32 %v1211, %v1224
    %v1230 = vadd.f32 %v1212, %v1226
    %1233 = vrot.lane.b32.xlu0 %v1229, 48
    %v1234 = vpop.permute.xlu0 %1233
    %1235 = vrot.lane.b32.xlu0 %v1230, 48
    %v1236 = vpop.permute.xlu0 %1235
    %1239 = vrot.lane.b32.xlu0 %v368, 80
    %v1240 = vpop.permute.xlu0 %1239
    %1241 = vrot.lane.b32.xlu0 %v369, 80
    %v1242 = vpop.permute.xlu0 %1241
    %v1243 = vsel %vm417, %v1234, 0
    %v1245 = vsel %vm417, %v1236, 0
    %v1247 = vsel %vm417, %v1240, 0
    %v1249 = vsel %vm417, %v1242, 0
    %1251 = vmatprep.subr.mxu0 0.0
    %1252 = vmatpush1.xpose.msra.mxu0 %v1247
    %1253 = vmatprep.subr.mxu0 0.0
    %1254 = vmatpush1.xpose.msra.mxu0 %v1249
    %1255 = vmatprep.subr.mxu0 0.0
    %1256 = vmatpush1.xpose.msra.mxu0 0.0
    %1257 = vmatprep.subr.mxu0 0.0
    %1258 = vmatpush1.xpose.msra.mxu0 0.0
    %1259 = vmatprep.subr.mxu0 0.0
    %1260 = vmatpush1.xpose.msra.mxu0 0.0
    %1261 = vmatprep.subr.mxu0 0.0
    %1262 = vmatpush1.xpose.msra.mxu0 0.0
    %1263 = vmatprep.subr.mxu0 0.0
    %1264 = vmatpush1.xpose.msra.mxu0 0.0
    %1265 = vmatprep.subr.mxu0 0.0
    %1266 = vmatpush1.xpose.msra.mxu0 0.0
    %1267 = vmatprep.subr.mxu0 0.0
    %1268 = vmatpush1.xpose.msra.mxu0 0.0
    %1269 = vmatprep.subr.mxu0 0.0
    %1270 = vmatpush1.xpose.msra.mxu0 0.0
    %1271 = vmatprep.subr.mxu0 0.0
    %1272 = vmatpush1.xpose.msra.mxu0 0.0
    %1273 = vmatprep.subr.mxu0 0.0
    %1274 = vmatpush1.xpose.msra.mxu0 0.0
    %1275 = vmatprep.subr.mxu0 0.0
    %1276 = vmatpush1.xpose.msra.mxu0 0.0
    %1277 = vmatprep.subr.mxu0 0.0
    %1278 = vmatpush1.xpose.msra.mxu0 0.0
    %1279 = vmatprep.subr.mxu0 0.0
    %1280 = vmatpush1.xpose.msra.mxu0 0.0
    %1281 = vmatprep.subr.mxu0 0.0
    %1282 = vmatpush1.xpose.msra.mxu0 0.0
    %1283 = vmatprep.subr.mxu0 0.0
    %1284 = vmatpush1.xpose.msra.mxu0 0.0
    %1285 = vmatprep.subr.mxu0 0.0
    %1286 = vmatpush1.xpose.msra.mxu0 0.0
    %1287 = vmatprep.subr.mxu0 0.0
    %1288 = vmatpush1.xpose.msra.mxu0 0.0
    %1289 = vmatprep.subr.mxu0 0.0
    %1290 = vmatpush1.xpose.msra.mxu0 0.0
    %1291 = vmatprep.subr.mxu0 0.0
    %1292 = vmatpush1.xpose.msra.mxu0 0.0
    %1293 = vmatprep.subr.mxu0 0.0
    %1294 = vmatpush1.xpose.msra.mxu0 0.0
    %1295 = vmatprep.subr.mxu0 0.0
    %1296 = vmatpush1.xpose.msra.mxu0 0.0
    %1297 = vmatprep.subr.mxu0 0.0
    %1298 = vmatpush1.xpose.msra.mxu0 0.0
    %1299 = vmatprep.subr.mxu0 0.0
    %1300 = vmatpush1.xpose.msra.mxu0 0.0
    %1301 = vmatprep.subr.mxu0 0.0
    %1302 = vmatpush1.xpose.msra.mxu0 0.0
    %1303 = vmatprep.subr.mxu0 0.0
    %1304 = vmatpush1.xpose.msra.mxu0 0.0
    %1305 = vmatprep.subr.mxu0 0.0
    %1306 = vmatpush1.xpose.msra.mxu0 0.0
    %1307 = vmatprep.subr.mxu0 0.0
    %1308 = vmatpush1.xpose.msra.mxu0 0.0
    %1309 = vmatprep.subr.mxu0 0.0
    %1310 = vmatpush1.xpose.msra.mxu0 0.0
    %1311 = vmatprep.subr.mxu0 0.0
    %1312 = vmatpush1.xpose.msra.mxu0 0.0
    %1313 = vmatprep.subr.mxu0 0.0
    %1314 = vmatpush1.xpose.msra.mxu0 0.0
    %1315 = vmatprep.mubr.f32.mxu0 0.0
    %1316 = vmatmul.mubr.f32.gmra.mrb[0].mxu0 %v1243
    %v1317 = vpop.f32.mrb[0].mxu0
    %v1318 = vadd.f32 0.0, %v1317
    %v1319 = vpop.f32.mrb[0].mxu0
    %1320 = vmatprep.mubr.f32.mxu0 0.0
    %1321 = vmatmul.mubr.f32.gmra.mrb[0].mxu0 %v1245
    %v1322 = vpop.f32.mrb[0].mxu0
    %v1323 = vadd.f32 0.0, %v1322
    %v1324 = vpop.f32.mrb[0].mxu0
    %1325 = vdwg.mxu0
    %1328 = vrot.lane.b32.xlu0 %v1203, 64
    %v1329 = vpop.permute.xlu0 %1328
    %1330 = vrot.lane.b32.xlu0 %v1204, 64
    %v1331 = vpop.permute.xlu0 %1330
    %1334 = vrot.lane.b32.xlu0 %v342, 96
    %v1335 = vpop.permute.xlu0 %1334
    %1336 = vrot.lane.b32.xlu0 %v343, 96
    %v1337 = vpop.permute.xlu0 %1336
    %v1338 = vsel %vm417, %v1329, 0
    %v1340 = vsel %vm417, %v1331, 0
    %v1342 = vsel %vm417, %v1335, 0
    %v1344 = vsel %vm417, %v1337, 0
    %1346 = vmatprep.subr.mxu0 0.0
    %1347 = vmatpush1.xpose.msra.mxu0 %v1342
    %1348 = vmatprep.subr.mxu0 0.0
    %1349 = vmatpush1.xpose.msra.mxu0 %v1344
    %1350 = vmatprep.subr.mxu0 0.0
    %1351 = vmatpush1.xpose.msra.mxu0 0.0
    %1352 = vmatprep.subr.mxu0 0.0
    %1353 = vmatpush1.xpose.msra.mxu0 0.0
    %1354 = vmatprep.subr.mxu0 0.0
    %1355 = vmatpush1.xpose.msra.mxu0 0.0
    %1356 = vmatprep.subr.mxu0 0.0
    %1357 = vmatpush1.xpose.msra.mxu0 0.0
    %1358 = vmatprep.subr.mxu0 0.0
    %1359 = vmatpush1.xpose.msra.mxu0 0.0
    %1360 = vmatprep.subr.mxu0 0.0
    %1361 = vmatpush1.xpose.msra.mxu0 0.0
    %1362 = vmatprep.subr.mxu0 0.0
    %1363 = vmatpush1.xpose.msra.mxu0 0.0
    %1364 = vmatprep.subr.mxu0 0.0
    %1365 = vmatpush1.xpose.msra.mxu0 0.0
    %1366 = vmatprep.subr.mxu0 0.0
    %1367 = vmatpush1.xpose.msra.mxu0 0.0
    %1368 = vmatprep.subr.mxu0 0.0
    %1369 = vmatpush1.xpose.msra.mxu0 0.0
    %1370 = vmatprep.subr.mxu0 0.0
    %1371 = vmatpush1.xpose.msra.mxu0 0.0
    %1372 = vmatprep.subr.mxu0 0.0
    %1373 = vmatpush1.xpose.msra.mxu0 0.0
    %1374 = vmatprep.subr.mxu0 0.0
    %1375 = vmatpush1.xpose.msra.mxu0 0.0
    %1376 = vmatprep.subr.mxu0 0.0
    %1377 = vmatpush1.xpose.msra.mxu0 0.0
    %1378 = vmatprep.subr.mxu0 0.0
    %1379 = vmatpush1.xpose.msra.mxu0 0.0
    %1380 = vmatprep.subr.mxu0 0.0
    %1381 = vmatpush1.xpose.msra.mxu0 0.0
    %1382 = vmatprep.subr.mxu0 0.0
    %1383 = vmatpush1.xpose.msra.mxu0 0.0
    %1384 = vmatprep.subr.mxu0 0.0
    %1385 = vmatpush1.xpose.msra.mxu0 0.0
    %1386 = vmatprep.subr.mxu0 0.0
    %1387 = vmatpush1.xpose.msra.mxu0 0.0
    %1388 = vmatprep.subr.mxu0 0.0
    %1389 = vmatpush1.xpose.msra.mxu0 0.0
    %1390 = vmatprep.subr.mxu0 0.0
    %1391 = vmatpush1.xpose.msra.mxu0 0.0
    %1392 = vmatprep.subr.mxu0 0.0
    %1393 = vmatpush1.xpose.msra.mxu0 0.0
    %1394 = vmatprep.subr.mxu0 0.0
    %1395 = vmatpush1.xpose.msra.mxu0 0.0
    %1396 = vmatprep.subr.mxu0 0.0
    %1397 = vmatpush1.xpose.msra.mxu0 0.0
    %1398 = vmatprep.subr.mxu0 0.0
    %1399 = vmatpush1.xpose.msra.mxu0 0.0
    %1400 = vmatprep.subr.mxu0 0.0
    %1401 = vmatpush1.xpose.msra.mxu0 0.0
    %1402 = vmatprep.subr.mxu0 0.0
    %1403 = vmatpush1.xpose.msra.mxu0 0.0
    %1404 = vmatprep.subr.mxu0 0.0
    %1405 = vmatpush1.xpose.msra.mxu0 0.0
    %1406 = vmatprep.subr.mxu0 0.0
    %1407 = vmatpush1.xpose.msra.mxu0 0.0
    %1408 = vmatprep.subr.mxu0 0.0
    %1409 = vmatpush1.xpose.msra.mxu0 0.0
    %1410 = vmatprep.mubr.f32.mxu0 0.0
    %1411 = vmatmul.mubr.f32.gmra.mrb[0].mxu0 %v1338
    %v1412 = vpop.f32.mrb[0].mxu0
    %v1413 = vadd.f32 %v1318, %v1412
    %v1414 = vpop.f32.mrb[0].mxu0
    %1415 = vmatprep.mubr.f32.mxu0 0.0
    %1416 = vmatmul.mubr.f32.gmra.mrb[0].mxu0 %v1340
    %v1417 = vpop.f32.mrb[0].mxu0
    %v1418 = vadd.f32 %v1323, %v1417
    %v1419 = vpop.f32.mrb[0].mxu0
    %1420 = vdwg.mxu0
    %v1421 = vmul.f32 %v1413, 0.17677669
    %v1422 = vmul.f32 %v1418, 0.17677669
    %v1423 = vsel %vm375, %v1421, -1e+30
    %v1424 = vsel %vm376, %v1422, -1e+30
    %v1425 = vsel %vm417, %v1423, -inf
    %1426 = vmax.xlane.f32.xlu0 %v1425
    %v1427 = vpop.xlane.xlu0 %1426
    %v1428 = vsel %vm417, %v1424, -inf
    %1429 = vmax.xlane.f32.xlu0 %v1428
    %v1430 = vpop.xlane.xlu0 %1429
    %v1431 = vsub.f32 %v1423, %v1427
    %v1432 = vsub.f32 %v1424, %v1430
    %v1433 = vmul.f32 %v1431, 1.442695
    %v1434 = vpow.pop %v1433
    %v1435 = vmul.f32 %v1432, 1.442695
    %v1436 = vpow.pop %v1435
    %v1437 = vsel %vm417, %v1434, 0.0
    %1438 = vadd.xlane.f32.xlu0 %v1437
    %v1439 = vpop.xlane.xlu0 %1438
    %v1440 = vsel %vm417, %v1436, 0.0
    %1441 = vadd.xlane.f32.xlu0 %v1440
    %v1442 = vpop.xlane.xlu0 %1441
    %v1443 = vrcp.pop %v1439
    %v1444 = vmul.f32 %v1434, %v1443
    %v1445 = vrcp.pop %v1442
    %v1446 = vmul.f32 %v1436, %v1445
    %1447 = vrot.lane.b32.xlu0 %v271, 32
    %v1448 = vpop.permute.xlu0 %1447
    %1449 = vrot.lane.b32.xlu0 %v273, 32
    %v1450 = vpop.permute.xlu0 %1449
    %v1454 = vsel %vm417, %v1444, 0
    %v1457 = vsel %vm417, %v1446, 0
    %1459 = vmatprep.subr.mxu0 0.0
    %1460 = vmatpush1.msra.mxu0 %v1448
    %1461 = vmatprep.subr.mxu0 0.0
    %1462 = vmatpush1.msra.mxu0 %v1450
    %1463 = vmatprep.subr.mxu0 0.0
    %1464 = vmatpush1.msra.mxu0 0.0
    %1465 = vmatprep.subr.mxu0 0.0
    %1466 = vmatpush1.msra.mxu0 0.0
    %1467 = vmatprep.subr.mxu0 0.0
    %1468 = vmatpush1.msra.mxu0 0.0
    %1469 = vmatprep.subr.mxu0 0.0
    %1470 = vmatpush1.msra.mxu0 0.0
    %1471 = vmatprep.subr.mxu0 0.0
    %1472 = vmatpush1.msra.mxu0 0.0
    %1473 = vmatprep.subr.mxu0 0.0
    %1474 = vmatpush1.msra.mxu0 0.0
    %1475 = vmatprep.subr.mxu0 0.0
    %1476 = vmatpush1.msra.mxu0 0.0
    %1477 = vmatprep.subr.mxu0 0.0
    %1478 = vmatpush1.msra.mxu0 0.0
    %1479 = vmatprep.subr.mxu0 0.0
    %1480 = vmatpush1.msra.mxu0 0.0
    %1481 = vmatprep.subr.mxu0 0.0
    %1482 = vmatpush1.msra.mxu0 0.0
    %1483 = vmatprep.subr.mxu0 0.0
    %1484 = vmatpush1.msra.mxu0 0.0
    %1485 = vmatprep.subr.mxu0 0.0
    %1486 = vmatpush1.msra.mxu0 0.0
    %1487 = vmatprep.subr.mxu0 0.0
    %1488 = vmatpush1.msra.mxu0 0.0
    %1489 = vmatprep.subr.mxu0 0.0
    %1490 = vmatpush1.msra.mxu0 0.0
    %1491 = vmatprep.subr.mxu0 0.0
    %1492 = vmatpush1.msra.mxu0 0.0
    %1493 = vmatprep.subr.mxu0 0.0
    %1494 = vmatpush1.msra.mxu0 0.0
    %1495 = vmatprep.subr.mxu0 0.0
    %1496 = vmatpush1.msra.mxu0 0.0
    %1497 = vmatprep.subr.mxu0 0.0
    %1498 = vmatpush1.msra.mxu0 0.0
    %1499 = vmatprep.subr.mxu0 0.0
    %1500 = vmatpush1.msra.mxu0 0.0
    %1501 = vmatprep.subr.mxu0 0.0
    %1502 = vmatpush1.msra.mxu0 0.0
    %1503 = vmatprep.subr.mxu0 0.0
    %1504 = vmatpush1.msra.mxu0 0.0
    %1505 = vmatprep.subr.mxu0 0.0
    %1506 = vmatpush1.msra.mxu0 0.0
    %1507 = vmatprep.subr.mxu0 0.0
    %1508 = vmatpush1.msra.mxu0 0.0
    %1509 = vmatprep.subr.mxu0 0.0
    %1510 = vmatpush1.msra.mxu0 0.0
    %1511 = vmatprep.subr.mxu0 0.0
    %1512 = vmatpush1.msra.mxu0 0.0
    %1513 = vmatprep.subr.mxu0 0.0
    %1514 = vmatpush1.msra.mxu0 0.0
    %1515 = vmatprep.subr.mxu0 0.0
    %1516 = vmatpush1.msra.mxu0 0.0
    %1517 = vmatprep.subr.mxu0 0.0
    %1518 = vmatpush1.msra.mxu0 0.0
    %1519 = vmatprep.subr.mxu0 0.0
    %1520 = vmatpush1.msra.mxu0 0.0
    %1521 = vmatprep.subr.mxu0 0.0
    %1522 = vmatpush1.msra.mxu0 0.0
    %1523 = vmatprep.mubr.f32.mxu0 0.0
    %1524 = vmatmul.mubr.f32.gmra.mrb[0].mxu0 %v1454
    %v1525 = vpop.f32.mrb[0].mxu0
    %v1526 = vadd.f32 0.0, %v1525
    %v1527 = vpop.f32.mrb[0].mxu0
    %1528 = vmatprep.mubr.f32.mxu0 0.0
    %1529 = vmatmul.mubr.f32.gmra.mrb[0].mxu0 %v1457
    %v1530 = vpop.f32.mrb[0].mxu0
    %v1531 = vadd.f32 0.0, %v1530
    %v1532 = vpop.f32.mrb[0].mxu0
    %1533 = vdwg.mxu0
    %v1534 = vld [vmem:[%s6 + $0x40] sm:$0xff]
    %v1535 = vld [vmem:[%s6 + $0x48] sm:$0xff]
    %v1536 = vld [vmem:[%s6 + $0x50] sm:$0xff]
    %v1537 = vld [vmem:[%s6 + $0x58] sm:$0xff]
    %v1539 = vsel %vm1016, %v1526, 0
    %v1542 = vsel %vm1016, %v1531, 0
    %1544 = vmatprep.subr.mxu0 0.0
    %1545 = vmatpush1.msra.mxu0 %v1534
    %1546 = vmatprep.subr.mxu0 0.0
    %1547 = vmatpush1.msra.mxu0 %v1535
    %1548 = vmatprep.subr.mxu0 0.0
    %1549 = vmatpush1.msra.mxu0 %v1536
    %1550 = vmatprep.subr.mxu0 0.0
    %1551 = vmatpush1.msra.mxu0 %v1537
    %1552 = vmatprep.subr.mxu0 0.0
    %1553 = vmatpush1.msra.mxu0 0.0
    %1554 = vmatprep.subr.mxu0 0.0
    %1555 = vmatpush1.msra.mxu0 0.0
    %1556 = vmatprep.subr.mxu0 0.0
    %1557 = vmatpush1.msra.mxu0 0.0
    %1558 = vmatprep.subr.mxu0 0.0
    %1559 = vmatpush1.msra.mxu0 0.0
    %1560 = vmatprep.subr.mxu0 0.0
    %1561 = vmatpush1.msra.mxu0 0.0
    %1562 = vmatprep.subr.mxu0 0.0
    %1563 = vmatpush1.msra.mxu0 0.0
    %1564 = vmatprep.subr.mxu0 0.0
    %1565 = vmatpush1.msra.mxu0 0.0
    %1566 = vmatprep.subr.mxu0 0.0
    %1567 = vmatpush1.msra.mxu0 0.0
    %1568 = vmatprep.subr.mxu0 0.0
    %1569 = vmatpush1.msra.mxu0 0.0
    %1570 = vmatprep.subr.mxu0 0.0
    %1571 = vmatpush1.msra.mxu0 0.0
    %1572 = vmatprep.subr.mxu0 0.0
    %1573 = vmatpush1.msra.mxu0 0.0
    %1574 = vmatprep.subr.mxu0 0.0
    %1575 = vmatpush1.msra.mxu0 0.0
    %1576 = vmatprep.subr.mxu0 0.0
    %1577 = vmatpush1.msra.mxu0 0.0
    %1578 = vmatprep.subr.mxu0 0.0
    %1579 = vmatpush1.msra.mxu0 0.0
    %1580 = vmatprep.subr.mxu0 0.0
    %1581 = vmatpush1.msra.mxu0 0.0
    %1582 = vmatprep.subr.mxu0 0.0
    %1583 = vmatpush1.msra.mxu0 0.0
    %1584 = vmatprep.subr.mxu0 0.0
    %1585 = vmatpush1.msra.mxu0 0.0
    %1586 = vmatprep.subr.mxu0 0.0
    %1587 = vmatpush1.msra.mxu0 0.0
    %1588 = vmatprep.subr.mxu0 0.0
    %1589 = vmatpush1.msra.mxu0 0.0
    %1590 = vmatprep.subr.mxu0 0.0
    %1591 = vmatpush1.msra.mxu0 0.0
    %1592 = vmatprep.subr.mxu0 0.0
    %1593 = vmatpush1.msra.mxu0 0.0
    %1594 = vmatprep.subr.mxu0 0.0
    %1595 = vmatpush1.msra.mxu0 0.0
    %1596 = vmatprep.subr.mxu0 0.0
    %1597 = vmatpush1.msra.mxu0 0.0
    %1598 = vmatprep.subr.mxu0 0.0
    %1599 = vmatpush1.msra.mxu0 0.0
    %1600 = vmatprep.subr.mxu0 0.0
    %1601 = vmatpush1.msra.mxu0 0.0
    %1602 = vmatprep.subr.mxu0 0.0
    %1603 = vmatpush1.msra.mxu0 0.0
    %1604 = vmatprep.subr.mxu0 0.0
    %1605 = vmatpush1.msra.mxu0 0.0
    %1606 = vmatprep.subr.mxu0 0.0
    %1607 = vmatpush1.msra.mxu0 0.0
    %1608 = vmatprep.mubr.f32.mxu0 0.0
    %1609 = vmatmul.mubr.f32.gmra.mrb[0].mxu0 %v1539
    %v1610 = vpop.f32.mrb[0].mxu0
    %v1611 = vadd.f32 0.0, %v1610
    %v1612 = vpop.f32.mrb[0].mxu0
    %1613 = vmatprep.mubr.f32.mxu0 0.0
    %1614 = vmatmul.mubr.f32.gmra.mrb[0].mxu0 %v1542
    %v1615 = vpop.f32.mrb[0].mxu0
    %v1616 = vadd.f32 0.0, %v1615
    %v1617 = vpop.f32.mrb[0].mxu0
    %1618 = vdwg.mxu0
    %v1619 = vadd.f32 %v1171, %v1611
    %v1620 = vadd.f32 %v1176, %v1616
    %1621 = vrot.lane.b32.xlu0 %v112, 96
    %v1622 = vpop.permute.xlu0 %1621
    %1623 = vrot.lane.b32.xlu0 %v113, 96
    %v1624 = vpop.permute.xlu0 %1623
    %v1627 = vmul.f32 %v270, %v1622
    %v1628 = vmul.f32 %v272, %v1624
    %1629 = vrot.lane.b32.xlu0 %v114, 112
    %v1630 = vpop.permute.xlu0 %1629
    %1631 = vrot.lane.b32.xlu0 %v115, 112
    %v1632 = vpop.permute.xlu0 %1631
    %v1635 = vmul.f32 %v270, %v1630
    %v1636 = vmul.f32 %v272, %v1632
    %1639 = vrot.lane.b32.xlu0 %v1635, 112
    %v1640 = vpop.permute.xlu0 %1639
    %1641 = vrot.lane.b32.xlu0 %v1636, 112
    %v1642 = vpop.permute.xlu0 %1641
    %v1645 = vsub.f32 %v1627, %v1640
    %v1646 = vsub.f32 %v1628, %v1642
    %1647 = vrot.lane.b32.xlu0 %v112, 112
    %v1648 = vpop.permute.xlu0 %1647
    %1649 = vrot.lane.b32.xlu0 %v113, 112
    %v1650 = vpop.permute.xlu0 %1649
    %v1653 = vmul.f32 %v270, %v1648
    %v1654 = vmul.f32 %v272, %v1650
    %1655 = vrot.lane.b32.xlu0 %v114, 96
    %v1656 = vpop.permute.xlu0 %1655
    %1657 = vrot.lane.b32.xlu0 %v115, 96
    %v1658 = vpop.permute.xlu0 %1657
    %v1661 = vmul.f32 %v270, %v1656
    %v1662 = vmul.f32 %v272, %v1658
    %1665 = vrot.lane.b32.xlu0 %v1661, 16
    %v1666 = vpop.permute.xlu0 %1665
    %1667 = vrot.lane.b32.xlu0 %v1662, 16
    %v1668 = vpop.permute.xlu0 %1667
    %v1671 = vadd.f32 %v1653, %v1666
    %v1672 = vadd.f32 %v1654, %v1668
    %1675 = vrot.lane.b32.xlu0 %v1671, 16
    %v1676 = vpop.permute.xlu0 %1675
    %1677 = vrot.lane.b32.xlu0 %v1672, 16
    %v1678 = vpop.permute.xlu0 %1677
    %v1679 = vsel %vm417, %v1676, 0
    %v1681 = vsel %vm417, %v1678, 0
    %1683 = vmatprep.subr.mxu0 0.0
    %1684 = vmatpush1.xpose.msra.mxu0 %v1247
    %1685 = vmatprep.subr.mxu0 0.0
    %1686 = vmatpush1.xpose.msra.mxu0 %v1249
    %1687 = vmatprep.subr.mxu0 0.0
    %1688 = vmatpush1.xpose.msra.mxu0 0.0
    %1689 = vmatprep.subr.mxu0 0.0
    %1690 = vmatpush1.xpose.msra.mxu0 0.0
    %1691 = vmatprep.subr.mxu0 0.0
    %1692 = vmatpush1.xpose.msra.mxu0 0.0
    %1693 = vmatprep.subr.mxu0 0.0
    %1694 = vmatpush1.xpose.msra.mxu0 0.0
    %1695 = vmatprep.subr.mxu0 0.0
    %1696 = vmatpush1.xpose.msra.mxu0 0.0
    %1697 = vmatprep.subr.mxu0 0.0
    %1698 = vmatpush1.xpose.msra.mxu0 0.0
    %1699 = vmatprep.subr.mxu0 0.0
    %1700 = vmatpush1.xpose.msra.mxu0 0.0
    %1701 = vmatprep.subr.mxu0 0.0
    %1702 = vmatpush1.xpose.msra.mxu0 0.0
    %1703 = vmatprep.subr.mxu0 0.0
    %1704 = vmatpush1.xpose.msra.mxu0 0.0
    %1705 = vmatprep.subr.mxu0 0.0
    %1706 = vmatpush1.xpose.msra.mxu0 0.0
    %1707 = vmatprep.subr.mxu0 0.0
    %1708 = vmatpush1.xpose.msra.mxu0 0.0
    %1709 = vmatprep.subr.mxu0 0.0
    %1710 = vmatpush1.xpose.msra.mxu0 0.0
    %1711 = vmatprep.subr.mxu0 0.0
    %1712 = vmatpush1.xpose.msra.mxu0 0.0
    %1713 = vmatprep.subr.mxu0 0.0
    %1714 = vmatpush1.xpose.msra.mxu0 0.0
    %1715 = vmatprep.subr.mxu0 0.0
    %1716 = vmatpush1.xpose.msra.mxu0 0.0
    %1717 = vmatprep.subr.mxu0 0.0
    %1718 = vmatpush1.xpose.msra.mxu0 0.0
    %1719 = vmatprep.subr.mxu0 0.0
    %1720 = vmatpush1.xpose.msra.mxu0 0.0
    %1721 = vmatprep.subr.mxu0 0.0
    %1722 = vmatpush1.xpose.msra.mxu0 0.0
    %1723 = vmatprep.subr.mxu0 0.0
    %1724 = vmatpush1.xpose.msra.mxu0 0.0
    %1725 = vmatprep.subr.mxu0 0.0
    %1726 = vmatpush1.xpose.msra.mxu0 0.0
    %1727 = vmatprep.subr.mxu0 0.0
    %1728 = vmatpush1.xpose.msra.mxu0 0.0
    %1729 = vmatprep.subr.mxu0 0.0
    %1730 = vmatpush1.xpose.msra.mxu0 0.0
    %1731 = vmatprep.subr.mxu0 0.0
    %1732 = vmatpush1.xpose.msra.mxu0 0.0
    %1733 = vmatprep.subr.mxu0 0.0
    %1734 = vmatpush1.xpose.msra.mxu0 0.0
    %1735 = vmatprep.subr.mxu0 0.0
    %1736 = vmatpush1.xpose.msra.mxu0 0.0
    %1737 = vmatprep.subr.mxu0 0.0
    %1738 = vmatpush1.xpose.msra.mxu0 0.0
    %1739 = vmatprep.subr.mxu0 0.0
    %1740 = vmatpush1.xpose.msra.mxu0 0.0
    %1741 = vmatprep.subr.mxu0 0.0
    %1742 = vmatpush1.xpose.msra.mxu0 0.0
    %1743 = vmatprep.subr.mxu0 0.0
    %1744 = vmatpush1.xpose.msra.mxu0 0.0
    %1745 = vmatprep.subr.mxu0 0.0
    %1746 = vmatpush1.xpose.msra.mxu0 0.0
    %1747 = vmatprep.mubr.f32.mxu0 0.0
    %1748 = vmatmul.mubr.f32.gmra.mrb[0].mxu0 %v1679
    %v1749 = vpop.f32.mrb[0].mxu0
    %v1750 = vadd.f32 0.0, %v1749
    %v1751 = vpop.f32.mrb[0].mxu0
    %1752 = vmatprep.mubr.f32.mxu0 0.0
    %1753 = vmatmul.mubr.f32.gmra.mrb[0].mxu0 %v1681
    %v1754 = vpop.f32.mrb[0].mxu0
    %v1755 = vadd.f32 0.0, %v1754
    %v1756 = vpop.f32.mrb[0].mxu0
    %1757 = vdwg.mxu0
    %1760 = vrot.lane.b32.xlu0 %v1645, 32
    %v1761 = vpop.permute.xlu0 %1760
    %1762 = vrot.lane.b32.xlu0 %v1646, 32
    %v1763 = vpop.permute.xlu0 %1762
    %v1764 = vsel %vm417, %v1761, 0
    %v1766 = vsel %vm417, %v1763, 0
    %1768 = vmatprep.subr.mxu0 0.0
    %1769 = vmatpush1.xpose.msra.mxu0 %v1342
    %1770 = vmatprep.subr.mxu0 0.0
    %1771 = vmatpush1.xpose.msra.mxu0 %v1344
    %1772 = vmatprep.subr.mxu0 0.0
    %1773 = vmatpush1.xpose.msra.mxu0 0.0
    %1774 = vmatprep.subr.mxu0 0.0
    %1775 = vmatpush1.xpose.msra.mxu0 0.0
    %1776 = vmatprep.subr.mxu0 0.0
    %1777 = vmatpush1.xpose.msra.mxu0 0.0
    %1778 = vmatprep.subr.mxu0 0.0
    %1779 = vmatpush1.xpose.msra.mxu0 0.0
    %1780 = vmatprep.subr.mxu0 0.0
    %1781 = vmatpush1.xpose.msra.mxu0 0.0
    %1782 = vmatprep.subr.mxu0 0.0
    %1783 = vmatpush1.xpose.msra.mxu0 0.0
    %1784 = vmatprep.subr.mxu0 0.0
    %1785 = vmatpush1.xpose.msra.mxu0 0.0
    %1786 = vmatprep.subr.mxu0 0.0
    %1787 = vmatpush1.xpose.msra.mxu0 0.0
    %1788 = vmatprep.subr.mxu0 0.0
    %1789 = vmatpush1.xpose.msra.mxu0 0.0
    %1790 = vmatprep.subr.mxu0 0.0
    %1791 = vmatpush1.xpose.msra.mxu0 0.0
    %1792 = vmatprep.subr.mxu0 0.0
    %1793 = vmatpush1.xpose.msra.mxu0 0.0
    %1794 = vmatprep.subr.mxu0 0.0
    %1795 = vmatpush1.xpose.msra.mxu0 0.0
    %1796 = vmatprep.subr.mxu0 0.0
    %1797 = vmatpush1.xpose.msra.mxu0 0.0
    %1798 = vmatprep.subr.mxu0 0.0
    %1799 = vmatpush1.xpose.msra.mxu0 0.0
    %1800 = vmatprep.subr.mxu0 0.0
    %1801 = vmatpush1.xpose.msra.mxu0 0.0
    %1802 = vmatprep.subr.mxu0 0.0
    %1803 = vmatpush1.xpose.msra.mxu0 0.0
    %1804 = vmatprep.subr.mxu0 0.0
    %1805 = vmatpush1.xpose.msra.mxu0 0.0
    %1806 = vmatprep.subr.mxu0 0.0
    %1807 = vmatpush1.xpose.msra.mxu0 0.0
    %1808 = vmatprep.subr.mxu0 0.0
    %1809 = vmatpush1.xpose.msra.mxu0 0.0
    %1810 = vmatprep.subr.mxu0 0.0
    %1811 = vmatpush1.xpose.msra.mxu0 0.0
    %1812 = vmatprep.subr.mxu0 0.0
    %1813 = vmatpush1.xpose.msra.mxu0 0.0
    %1814 = vmatprep.subr.mxu0 0.0
    %1815 = vmatpush1.xpose.msra.mxu0 0.0
    %1816 = vmatprep.subr.mxu0 0.0
    %1817 = vmatpush1.xpose.msra.mxu0 0.0
    %1818 = vmatprep.subr.mxu0 0.0
    %1819 = vmatpush1.xpose.msra.mxu0 0.0
    %1820 = vmatprep.subr.mxu0 0.0
    %1821 = vmatpush1.xpose.msra.mxu0 0.0
    %1822 = vmatprep.subr.mxu0 0.0
    %1823 = vmatpush1.xpose.msra.mxu0 0.0
    %1824 = vmatprep.subr.mxu0 0.0
    %1825 = vmatpush1.xpose.msra.mxu0 0.0
    %1826 = vmatprep.subr.mxu0 0.0
    %1827 = vmatpush1.xpose.msra.mxu0 0.0
    %1828 = vmatprep.subr.mxu0 0.0
    %1829 = vmatpush1.xpose.msra.mxu0 0.0
    %1830 = vmatprep.subr.mxu0 0.0
    %1831 = vmatpush1.xpose.msra.mxu0 0.0
    %1832 = vmatprep.mubr.f32.mxu0 0.0
    %1833 = vmatmul.mubr.f32.gmra.mrb[0].mxu0 %v1764
    %v1834 = vpop.f32.mrb[0].mxu0
    %v1835 = vadd.f32 %v1750, %v1834
    %v1836 = vpop.f32.mrb[0].mxu0
    %1837 = vmatprep.mubr.f32.mxu0 0.0
    %1838 = vmatmul.mubr.f32.gmra.mrb[0].mxu0 %v1766
    %v1839 = vpop.f32.mrb[0].mxu0
    %v1840 = vadd.f32 %v1755, %v1839
    %v1841 = vpop.f32.mrb[0].mxu0
    %1842 = vdwg.mxu0
    %v1843 = vmul.f32 %v1835, 0.17677669
    %v1844 = vmul.f32 %v1840, 0.17677669
    %v1845 = vsel %vm375, %v1843, -1e+30
    %v1846 = vsel %vm376, %v1844, -1e+30
    %v1847 = vsel %vm417, %v1845, -inf
    %1848 = vmax.xlane.f32.xlu0 %v1847
    %v1849 = vpop.xlane.xlu0 %1848
    %v1850 = vsel %vm417, %v1846, -inf
    %1851 = vmax.xlane.f32.xlu0 %v1850
    %v1852 = vpop.xlane.xlu0 %1851
    %v1853 = vsub.f32 %v1845, %v1849
    %v1854 = vsub.f32 %v1846, %v1852
    %v1855 = vmul.f32 %v1853, 1.442695
    %v1856 = vpow.pop %v1855
    %v1857 = vmul.f32 %v1854, 1.442695
    %v1858 = vpow.pop %v1857
    %v1859 = vsel %vm417, %v1856, 0.0
    %1860 = vadd.xlane.f32.xlu0 %v1859
    %v1861 = vpop.xlane.xlu0 %1860
    %v1862 = vsel %vm417, %v1858, 0.0
    %1863 = vadd.xlane.f32.xlu0 %v1862
    %v1864 = vpop.xlane.xlu0 %1863
    %v1865 = vrcp.pop %v1861
    %v1866 = vmul.f32 %v1856, %v1865
    %v1867 = vrcp.pop %v1864
    %v1868 = vmul.f32 %v1858, %v1867
    %v1870 = vsel %vm417, %v1866, 0
    %v1873 = vsel %vm417, %v1868, 0
    %1875 = vmatprep.subr.mxu0 0.0
    %1876 = vmatpush1.msra.mxu0 %v1448
    %1877 = vmatprep.subr.mxu0 0.0
    %1878 = vmatpush1.msra.mxu0 %v1450
    %1879 = vmatprep.subr.mxu0 0.0
    %1880 = vmatpush1.msra.mxu0 0.0
    %1881 = vmatprep.subr.mxu0 0.0
    %1882 = vmatpush1.msra.mxu0 0.0
    %1883 = vmatprep.subr.mxu0 0.0
    %1884 = vmatpush1.msra.mxu0 0.0
    %1885 = vmatprep.subr.mxu0 0.0
    %1886 = vmatpush1.msra.mxu0 0.0
    %1887 = vmatprep.subr.mxu0 0.0
    %1888 = vmatpush1.msra.mxu0 0.0
    %1889 = vmatprep.subr.mxu0 0.0
    %1890 = vmatpush1.msra.mxu0 0.0
    %1891 = vmatprep.subr.mxu0 0.0
    %1892 = vmatpush1.msra.mxu0 0.0
    %1893 = vmatprep.subr.mxu0 0.0
    %1894 = vmatpush1.msra.mxu0 0.0
    %1895 = vmatprep.subr.mxu0 0.0
    %1896 = vmatpush1.msra.mxu0 0.0
    %1897 = vmatprep.subr.mxu0 0.0
    %1898 = vmatpush1.msra.mxu0 0.0
    %1899 = vmatprep.subr.mxu0 0.0
    %1900 = vmatpush1.msra.mxu0 0.0
    %1901 = vmatprep.subr.mxu0 0.0
    %1902 = vmatpush1.msra.mxu0 0.0
    %1903 = vmatprep.subr.mxu0 0.0
    %1904 = vmatpush1.msra.mxu0 0.0
    %1905 = vmatprep.subr.mxu0 0.0
    %1906 = vmatpush1.msra.mxu0 0.0
    %1907 = vmatprep.subr.mxu0 0.0
    %1908 = vmatpush1.msra.mxu0 0.0
    %1909 = vmatprep.subr.mxu0 0.0
    %1910 = vmatpush1.msra.mxu0 0.0
    %1911 = vmatprep.subr.mxu0 0.0
    %1912 = vmatpush1.msra.mxu0 0.0
    %1913 = vmatprep.subr.mxu0 0.0
    %1914 = vmatpush1.msra.mxu0 0.0
    %1915 = vmatprep.subr.mxu0 0.0
    %1916 = vmatpush1.msra.mxu0 0.0
    %1917 = vmatprep.subr.mxu0 0.0
    %1918 = vmatpush1.msra.mxu0 0.0
    %1919 = vmatprep.subr.mxu0 0.0
    %1920 = vmatpush1.msra.mxu0 0.0
    %1921 = vmatprep.subr.mxu0 0.0
    %1922 = vmatpush1.msra.mxu0 0.0
    %1923 = vmatprep.subr.mxu0 0.0
    %1924 = vmatpush1.msra.mxu0 0.0
    %1925 = vmatprep.subr.mxu0 0.0
    %1926 = vmatpush1.msra.mxu0 0.0
    %1927 = vmatprep.subr.mxu0 0.0
    %1928 = vmatpush1.msra.mxu0 0.0
    %1929 = vmatprep.subr.mxu0 0.0
    %1930 = vmatpush1.msra.mxu0 0.0
    %1931 = vmatprep.subr.mxu0 0.0
    %1932 = vmatpush1.msra.mxu0 0.0
    %1933 = vmatprep.subr.mxu0 0.0
    %1934 = vmatpush1.msra.mxu0 0.0
    %1935 = vmatprep.subr.mxu0 0.0
    %1936 = vmatpush1.msra.mxu0 0.0
    %1937 = vmatprep.subr.mxu0 0.0
    %1938 = vmatpush1.msra.mxu0 0.0
    %1939 = vmatprep.mubr.f32.mxu0 0.0
    %1940 = vmatmul.mubr.f32.gmra.mrb[0].mxu0 %v1870
    %v1941 = vpop.f32.mrb[0].mxu0
    %v1942 = vadd.f32 0.0, %v1941
    %v1943 = vpop.f32.mrb[0].mxu0
    %1944 = vmatprep.mubr.f32.mxu0 0.0
    %1945 = vmatmul.mubr.f32.gmra.mrb[0].mxu0 %v1873
    %v1946 = vpop.f32.mrb[0].mxu0
    %v1947 = vadd.f32 0.0, %v1946
    %v1948 = vpop.f32.mrb[0].mxu0
    %1949 = vdwg.mxu0
    %v1950 = vld [vmem:[%s6 + $0x60] sm:$0xff]
    %v1951 = vld [vmem:[%s6 + $0x68] sm:$0xff]
    %v1952 = vld [vmem:[%s6 + $0x70] sm:$0xff]
    %v1953 = vld [vmem:[%s6 + $0x78] sm:$0xff]
    %v1955 = vsel %vm1016, %v1942, 0
    %v1958 = vsel %vm1016, %v1947, 0
    %1960 = vmatprep.subr.mxu0 0.0
    %1961 = vmatpush1.msra.mxu0 %v1950
    %1962 = vmatprep.subr.mxu0 0.0
    %1963 = vmatpush1.msra.mxu0 %v1951
    %1964 = vmatprep.subr.mxu0 0.0
    %1965 = vmatpush1.msra.mxu0 %v1952
    %1966 = vmatprep.subr.mxu0 0.0
    %1967 = vmatpush1.msra.mxu0 %v1953
    %1968 = vmatprep.subr.mxu0 0.0
    %1969 = vmatpush1.msra.mxu0 0.0
    %1970 = vmatprep.subr.mxu0 0.0
    %1971 = vmatpush1.msra.mxu0 0.0
    %1972 = vmatprep.subr.mxu0 0.0
    %1973 = vmatpush1.msra.mxu0 0.0
    %1974 = vmatprep.subr.mxu0 0.0
    %1975 = vmatpush1.msra.mxu0 0.0
    %1976 = vmatprep.subr.mxu0 0.0
    %1977 = vmatpush1.msra.mxu0 0.0
    %1978 = vmatprep.subr.mxu0 0.0
    %1979 = vmatpush1.msra.mxu0 0.0
    %1980 = vmatprep.subr.mxu0 0.0
    %1981 = vmatpush1.msra.mxu0 0.0
    %1982 = vmatprep.subr.mxu0 0.0
    %1983 = vmatpush1.msra.mxu0 0.0
    %1984 = vmatprep.subr.mxu0 0.0
    %1985 = vmatpush1.msra.mxu0 0.0
    %1986 = vmatprep.subr.mxu0 0.0
    %1987 = vmatpush1.msra.mxu0 0.0
    %1988 = vmatprep.subr.mxu0 0.0
    %1989 = vmatpush1.msra.mxu0 0.0
    %1990 = vmatprep.subr.mxu0 0.0
    %1991 = vmatpush1.msra.mxu0 0.0
    %1992 = vmatprep.subr.mxu0 0.0
    %1993 = vmatpush1.msra.mxu0 0.0
    %1994 = vmatprep.subr.mxu0 0.0
    %1995 = vmatpush1.msra.mxu0 0.0
    %1996 = vmatprep.subr.mxu0 0.0
    %1997 = vmatpush1.msra.mxu0 0.0
    %1998 = vmatprep.subr.mxu0 0.0
    %1999 = vmatpush1.msra.mxu0 0.0
    %2000 = vmatprep.subr.mxu0 0.0
    %2001 = vmatpush1.msra.mxu0 0.0
    %2002 = vmatprep.subr.mxu0 0.0
    %2003 = vmatpush1.msra.mxu0 0.0
    %2004 = vmatprep.subr.mxu0 0.0
    %2005 = vmatpush1.msra.mxu0 0.0
    %2006 = vmatprep.subr.mxu0 0.0
    %2007 = vmatpush1.msra.mxu0 0.0
    %2008 = vmatprep.subr.mxu0 0.0
    %2009 = vmatpush1.msra.mxu0 0.0
    %2010 = vmatprep.subr.mxu0 0.0
    %2011 = vmatpush1.msra.mxu0 0.0
    %2012 = vmatprep.subr.mxu0 0.0
    %2013 = vmatpush1.msra.mxu0 0.0
    %2014 = vmatprep.subr.mxu0 0.0
    %2015 = vmatpush1.msra.mxu0 0.0
    %2016 = vmatprep.subr.mxu0 0.0
    %2017 = vmatpush1.msra.mxu0 0.0
    %2018 = vmatprep.subr.mxu0 0.0
    %2019 = vmatpush1.msra.mxu0 0.0
    %2020 = vmatprep.subr.mxu0 0.0
    %2021 = vmatpush1.msra.mxu0 0.0
    %2022 = vmatprep.subr.mxu0 0.0
    %2023 = vmatpush1.msra.mxu0 0.0
    %2024 = vmatprep.mubr.f32.mxu0 0.0
    %2025 = vmatmul.mubr.f32.gmra.mrb[0].mxu0 %v1955
    %v2026 = vpop.f32.mrb[0].mxu0
    %v2027 = vadd.f32 0.0, %v2026
    %v2028 = vpop.f32.mrb[0].mxu0
    %2029 = vmatprep.mubr.f32.mxu0 0.0
    %2030 = vmatmul.mubr.f32.gmra.mrb[0].mxu0 %v1958
    %v2031 = vpop.f32.mrb[0].mxu0
    %v2032 = vadd.f32 0.0, %v2031
    %v2033 = vpop.f32.mrb[0].mxu0
    %2034 = vdwg.mxu0
    %v2035 = vadd.f32 %v1619, %v2027
    %v2036 = vadd.f32 %v1620, %v2032
    %v2037 = vadd.f32 %v110, %v2035
    %v2038 = vadd.f32 %v111, %v2036
    %v2039 = vld [vmem:[%s7] sm:$0x1]
    %v2040 = vld [vmem:[%s8] sm:$0x1]
    %2041 = vadd.xlane.f32.xlu0 %v2037
    %v2042 = vpop.xlane.xlu0 %2041
    %2043 = vadd.xlane.f32.xlu0 %v2038
    %v2044 = vpop.xlane.xlu0 %2043
    %v2045 = vmul.f32 %v2042, %v122
    %v2046 = vmul.f32 %v2044, %v122
    %v2047 = vsub.f32 %v2037, %v2045
    %v2048 = vsub.f32 %v2038, %v2046
    %v2049 = vmul.f32 %v2047, %v2047
    %v2050 = vmul.f32 %v2048, %v2048
    %2051 = vadd.xlane.f32.xlu0 %v2049
    %v2052 = vpop.xlane.xlu0 %2051
    %2053 = vadd.xlane.f32.xlu0 %v2050
    %v2054 = vpop.xlane.xlu0 %2053
    %v2055 = vmul.f32 %v2052, %v122
    %v2056 = vmul.f32 %v2054, %v122
    %v2057 = vadd.f32 %v2055, 1e-05
    %v2058 = vadd.f32 %v2056, 1e-05
    %v2059 = vrsqrt.pop %v2057
    %v2060 = vrsqrt.pop %v2058
    %v2061 = vmul.f32 %v2047, %v2059
    %v2062 = vmul.f32 %v2048, %v2060
    %v2064 = vlaneseq
    %v2065 = vshrl.u32 %v2064, 7
    %v2066 = vsub.s32 0, %v2065
    %v2067 = vrot.slane %v2039, %v2066
    %v2069 = vmul.f32 %v2061, %v2067
    %v2070 = vmul.f32 %v2062, %v2067
    %v2072 = vlaneseq
    %v2073 = vshrl.u32 %v2072, 7
    %v2074 = vsub.s32 0, %v2073
    %v2075 = vrot.slane %v2040, %v2074
    %v2077 = vadd.f32 %v2069, %v2075
    %v2078 = vadd.f32 %v2070, %v2075
    %v2079 = vld [vmem:[%s9] sm:$0xff]
    %v2080 = vld [vmem:[%s9 + $0x8] sm:$0xff]
    %v2081 = vld [vmem:[%s9 + $0x10] sm:$0xff]
    %v2082 = vld [vmem:[%s9 + $0x18] sm:$0xff]
    %v2083 = vld [vmem:[%s9 + $0x20] sm:$0xff]
    %v2084 = vld [vmem:[%s9 + $0x28] sm:$0xff]
    %v2085 = vld [vmem:[%s9 + $0x30] sm:$0xff]
    %v2086 = vld [vmem:[%s9 + $0x38] sm:$0xff]
    %v2087 = vld [vmem:[%s9 + $0x40] sm:$0xff]
    %v2088 = vld [vmem:[%s9 + $0x48] sm:$0xff]
    %v2089 = vld [vmem:[%s9 + $0x50] sm:$0xff]
    %v2090 = vld [vmem:[%s9 + $0x58] sm:$0xff]
    %v2091 = vld [vmem:[%s9 + $0x60] sm:$0xff]
    %v2092 = vld [vmem:[%s9 + $0x68] sm:$0xff]
    %v2093 = vld [vmem:[%s9 + $0x70] sm:$0xff]
    %v2094 = vld [vmem:[%s9 + $0x78] sm:$0xff]
    %2095 = vmatprep.subr.mxu0 0.0
    %2096 = vmatpush1.msra.mxu0 %v2079
    %2097 = vmatprep.subr.mxu0 0.0
    %2098 = vmatpush1.msra.mxu0 %v2080
    %2099 = vmatprep.subr.mxu0 0.0
    %2100 = vmatpush1.msra.mxu0 %v2081
    %2101 = vmatprep.subr.mxu0 0.0
    %2102 = vmatpush1.msra.mxu0 %v2082
    %2103 = vmatprep.subr.mxu0 0.0
    %2104 = vmatpush1.msra.mxu0 %v2083
    %2105 = vmatprep.subr.mxu0 0.0
    %2106 = vmatpush1.msra.mxu0 %v2084
    %2107 = vmatprep.subr.mxu0 0.0
    %2108 = vmatpush1.msra.mxu0 %v2085
    %2109 = vmatprep.subr.mxu0 0.0
    %2110 = vmatpush1.msra.mxu0 %v2086
    %2111 = vmatprep.subr.mxu0 0.0
    %2112 = vmatpush1.msra.mxu0 %v2087
    %2113 = vmatprep.subr.mxu0 0.0
    %2114 = vmatpush1.msra.mxu0 %v2088
    %2115 = vmatprep.subr.mxu0 0.0
    %2116 = vmatpush1.msra.mxu0 %v2089
    %2117 = vmatprep.subr.mxu0 0.0
    %2118 = vmatpush1.msra.mxu0 %v2090
    %2119 = vmatprep.subr.mxu0 0.0
    %2120 = vmatpush1.msra.mxu0 %v2091
    %2121 = vmatprep.subr.mxu0 0.0
    %2122 = vmatpush1.msra.mxu0 %v2092
    %2123 = vmatprep.subr.mxu0 0.0
    %2124 = vmatpush1.msra.mxu0 %v2093
    %2125 = vmatprep.subr.mxu0 0.0
    %2126 = vmatpush1.msra.mxu0 %v2094
    %2127 = vmatprep.subr.mxu0 0.0
    %2128 = vmatpush1.msra.mxu0 0.0
    %2129 = vmatprep.subr.mxu0 0.0
    %2130 = vmatpush1.msra.mxu0 0.0
    %2131 = vmatprep.subr.mxu0 0.0
    %2132 = vmatpush1.msra.mxu0 0.0
    %2133 = vmatprep.subr.mxu0 0.0
    %2134 = vmatpush1.msra.mxu0 0.0
    %2135 = vmatprep.subr.mxu0 0.0
    %2136 = vmatpush1.msra.mxu0 0.0
    %2137 = vmatprep.subr.mxu0 0.0
    %2138 = vmatpush1.msra.mxu0 0.0
    %2139 = vmatprep.subr.mxu0 0.0
    %2140 = vmatpush1.msra.mxu0 0.0
    %2141 = vmatprep.subr.mxu0 0.0
    %2142 = vmatpush1.msra.mxu0 0.0
    %2143 = vmatprep.subr.mxu0 0.0
    %2144 = vmatpush1.msra.mxu0 0.0
    %2145 = vmatprep.subr.mxu0 0.0
    %2146 = vmatpush1.msra.mxu0 0.0
    %2147 = vmatprep.subr.mxu0 0.0
    %2148 = vmatpush1.msra.mxu0 0.0
    %2149 = vmatprep.subr.mxu0 0.0
    %2150 = vmatpush1.msra.mxu0 0.0
    %2151 = vmatprep.subr.mxu0 0.0
    %2152 = vmatpush1.msra.mxu0 0.0
    %2153 = vmatprep.subr.mxu0 0.0
    %2154 = vmatpush1.msra.mxu0 0.0
    %2155 = vmatprep.subr.mxu0 0.0
    %2156 = vmatpush1.msra.mxu0 0.0
    %2157 = vmatprep.subr.mxu0 0.0
    %2158 = vmatpush1.msra.mxu0 0.0
    %2159 = vmatprep.mubr.f32.mxu0 0.0
    %2160 = vmatmul.mubr.f32.gmra.mrb[0].mxu0 %v2077
    %v2161 = vpop.f32.mrb[0].mxu0
    %v2162 = vadd.f32 0.0, %v2161
    %v2163 = vpop.f32.mrb[0].mxu0
    %2164 = vmatprep.mubr.f32.mxu0 0.0
    %2165 = vmatmul.mubr.f32.gmra.mrb[0].mxu0 %v2078
    %v2166 = vpop.f32.mrb[0].mxu0
    %v2167 = vadd.f32 0.0, %v2166
    %v2168 = vpop.f32.mrb[0].mxu0
    %2169 = vdwg.mxu0
    %vm2170 = vcmask 31744
    %v2171 = vsel %vm2170, %v2162, -inf
    %2172 = vmax.xlane.f32.xlu0 %v2171
    %v2173 = vpop.xlane.xlu0 %2172
    %v2174 = vsel %vm2170, %v2167, -inf
    %2175 = vmax.xlane.f32.xlu0 %v2174
    %v2176 = vpop.xlane.xlu0 %2175
    %v2177 = vsub.f32 %v2162, %v2173
    %v2178 = vsub.f32 %v2167, %v2176
    %v2179 = vmul.f32 %v2177, 1.442695
    %v2180 = vpow.pop %v2179
    %v2181 = vmul.f32 %v2178, 1.442695
    %v2182 = vpow.pop %v2181
    %v2183 = vsel %vm2170, %v2180, 0.0
    %2184 = vadd.xlane.f32.xlu0 %v2183
    %v2185 = vpop.xlane.xlu0 %2184
    %v2186 = vsel %vm2170, %v2182, 0.0
    %2187 = vadd.xlane.f32.xlu0 %v2186
    %v2188 = vpop.xlane.xlu0 %2187
    %v2189 = vrcp.pop %v2185
    %v2190 = vmul.f32 %v2180, %v2189
    %v2191 = vrcp.pop %v2188
    %v2192 = vmul.f32 %v2182, %v2191
    %v2193 = vsel %vm2170, %v2190, -inf
    %2194 = vmax.xlane.f32.xlu0 %v2193
    %v2195 = vpop.xlane.xlu0 %2194
    %v2196 = vsel %vm2170, %v2192, -inf
    %2197 = vmax.xlane.f32.xlu0 %v2196
    %v2198 = vpop.xlane.xlu0 %2197
    %vm2199 = vcmp.eq.f32.partialorder %v2190, %v2195
    %vm2200 = vcmp.eq.f32.partialorder %v2192, %v2198
    %v2201 = vsel %vm2199, %v374, 4
    %v2202 = vsel %vm2200, %v374, 4
    %v2203 = vsel %vm2170, %v2201, 2147483647
    %v2204 = vand.u32 %v2203, 65535
    %v2205 = vshra.s32 %v2203, 16
    %v2206 = vcvt.s32.f32 %v2204
    %v2207 = vcvt.s32.f32 %v2205
    %2208 = vmin.xlane.f32.xlu0 %v2207
    %v2209 = vpop.xlane.xlu0 %2208
    %vm2210 = vcmp.eq.f32.partialorder %v2207, %v2209
    %v2211 = vsel %vm2210, %v2206, inf
    %2212 = vmin.xlane.f32.xlu0 %v2211
    %v2213 = vpop.xlane.xlu0 %2212
    %v2214 = vcvt.f32.s32 %v2213
    %v2215 = vcvt.f32.s32 %v2209
    %v2216 = vshll.u32 %v2215, 16
    %v2217 = vadd.s32 %v2216, %v2214
    %v2218 = vsel %vm2170, %v2202, 2147483647
    %v2219 = vand.u32 %v2218, 65535
    %v2220 = vshra.s32 %v2218, 16
    %v2221 = vcvt.s32.f32 %v2219
    %v2222 = vcvt.s32.f32 %v2220
    %2223 = vmin.xlane.f32.xlu0 %v2222
    %v2224 = vpop.xlane.xlu0 %2223
    %vm2225 = vcmp.eq.f32.partialorder %v2222, %v2224
    %v2226 = vsel %vm2225, %v2221, inf
    %2227 = vmin.xlane.f32.xlu0 %v2226
    %v2228 = vpop.xlane.xlu0 %2227
    %v2229 = vcvt.f32.s32 %v2228
    %v2230 = vcvt.f32.s32 %v2224
    %v2231 = vshll.u32 %v2230, 16
    %v2232 = vadd.s32 %v2231, %v2229
    %vm2233 = vcmp.eq.s32.totalorder %v374, %v2217
    %vm2234 = vcmp.eq.s32.totalorder %v374, %v2232
    %v2235 = vsel %vm2233, %v2190, 0.0
    %v2236 = vsel %vm2234, %v2192, 0.0
    %v2237 = vadd.f32 %v2235, 0.0
    %v2238 = vadd.f32 %v2236, 0.0
    %v2239 = vadd.f32 %v2195, 0.0
    %v2240 = vadd.f32 %v2198, 0.0
    %v2241 = vsel %vm2233, -1.0, %v2190
    %v2242 = vsel %vm2234, -1.0, %v2192
    %v2243 = vsel %vm2170, %v2241, -inf
    %2244 = vmax.xlane.f32.xlu0 %v2243
    %v2245 = vpop.xlane.xlu0 %2244
    %v2246 = vsel %vm2170, %v2242, -inf
    %2247 = vmax.xlane.f32.xlu0 %v2246
    %v2248 = vpop.xlane.xlu0 %2247
    %vm2249 = vcmp.eq.f32.partialorder %v2241, %v2245
    %vm2250 = vcmp.eq.f32.partialorder %v2242, %v2248
    %v2251 = vsel %vm2249, %v374, 4
    %v2252 = vsel %vm2250, %v374, 4
    %v2253 = vsel %vm2170, %v2251, 2147483647
    %v2254 = vand.u32 %v2253, 65535
    %v2255 = vshra.s32 %v2253, 16
    %v2256 = vcvt.s32.f32 %v2254
    %v2257 = vcvt.s32.f32 %v2255
    %2258 = vmin.xlane.f32.xlu0 %v2257
    %v2259 = vpop.xlane.xlu0 %2258
    %vm2260 = vcmp.eq.f32.partialorder %v2257, %v2259
    %v2261 = vsel %vm2260, %v2256, inf
    %2262 = vmin.xlane.f32.xlu0 %v2261
    %v2263 = vpop.xlane.xlu0 %2262
    %v2264 = vcvt.f32.s32 %v2263
    %v2265 = vcvt.f32.s32 %v2259
    %v2266 = vshll.u32 %v2265, 16
    %v2267 = vadd.s32 %v2266, %v2264
    %v2268 = vsel %vm2170, %v2252, 2147483647
    %v2269 = vand.u32 %v2268, 65535
    %v2270 = vshra.s32 %v2268, 16
    %v2271 = vcvt.s32.f32 %v2269
    %v2272 = vcvt.s32.f32 %v2270
    %2273 = vmin.xlane.f32.xlu0 %v2272
    %v2274 = vpop.xlane.xlu0 %2273
    %vm2275 = vcmp.eq.f32.partialorder %v2272, %v2274
    %v2276 = vsel %vm2275, %v2271, inf
    %2277 = vmin.xlane.f32.xlu0 %v2276
    %v2278 = vpop.xlane.xlu0 %2277
    %v2279 = vcvt.f32.s32 %v2278
    %v2280 = vcvt.f32.s32 %v2274
    %v2281 = vshll.u32 %v2280, 16
    %v2282 = vadd.s32 %v2281, %v2279
    %vm2283 = vcmp.eq.s32.totalorder %v374, %v2267
    %vm2284 = vcmp.eq.s32.totalorder %v374, %v2282
    %v2285 = vsel %vm2283, %v2190, 0.0
    %v2286 = vsel %vm2284, %v2192, 0.0
    %v2287 = vadd.f32 %v2237, %v2285
    %v2288 = vadd.f32 %v2238, %v2286
    %v2289 = vadd.f32 %v2239, %v2245
    %v2290 = vadd.f32 %v2240, %v2248
    %v2291 = vrcp.pop %v2289
    %v2292 = vmul.f32 %v2287, %v2291
    %v2293 = vrcp.pop %v2290
    %v2294 = vmul.f32 %v2288, %v2293
    %v2295 = vld [vmem:[#allocation8] sm:$0xff]
    %v2296 = vld [vmem:[#allocation8 + $0x8] sm:$0xff]
    %v2297 = vld [vmem:[#allocation8 + $0x10] sm:$0xff]
    %v2298 = vld [vmem:[#allocation8 + $0x18] sm:$0xff]
    %v2299 = vld [vmem:[#allocation8 + $0x20] sm:$0xff]
    %v2300 = vld [vmem:[#allocation8 + $0x28] sm:$0xff]
    %v2301 = vld [vmem:[#allocation8 + $0x30] sm:$0xff]
    %v2302 = vld [vmem:[#allocation8 + $0x38] sm:$0xff]
    %v2303 = vld [vmem:[#allocation8 + $0x40] sm:$0xff]
    %v2304 = vld [vmem:[#allocation8 + $0x48] sm:$0xff]
    %v2305 = vld [vmem:[#allocation8 + $0x50] sm:$0xff]
    %v2306 = vld [vmem:[#allocation8 + $0x58] sm:$0xff]
    %v2307 = vld [vmem:[#allocation8 + $0x60] sm:$0xff]
    %v2308 = vld [vmem:[#allocation8 + $0x68] sm:$0xff]
    %v2309 = vld [vmem:[#allocation8 + $0x70] sm:$0xff]
    %v2310 = vld [vmem:[#allocation8 + $0x78] sm:$0xff]
    %v2311 = vld [vmem:[#allocation8 + $0x80] sm:$0xff]
    %v2312 = vld [vmem:[#allocation8 + $0x88] sm:$0xff]
    %v2313 = vld [vmem:[#allocation8 + $0x90] sm:$0xff]
    %v2314 = vld [vmem:[#allocation8 + $0x98] sm:$0xff]
    %v2315 = vld [vmem:[#allocation8 + $0xa0] sm:$0xff]
    %v2316 = vld [vmem:[#allocation8 + $0xa8] sm:$0xff]
    %v2317 = vld [vmem:[#allocation8 + $0xb0] sm:$0xff]
    %v2318 = vld [vmem:[#allocation8 + $0xb8] sm:$0xff]
    %v2319 = vld [vmem:[#allocation8 + $0xc0] sm:$0xff]
    %v2320 = vld [vmem:[#allocation8 + $0xc8] sm:$0xff]
    %v2321 = vld [vmem:[#allocation8 + $0xd0] sm:$0xff]
    %v2322 = vld [vmem:[#allocation8 + $0xd8] sm:$0xff]
    %v2323 = vld [vmem:[#allocation8 + $0xe0] sm:$0xff]
    %v2324 = vld [vmem:[#allocation8 + $0xe8] sm:$0xff]
    %v2325 = vld [vmem:[#allocation8 + $0xf0] sm:$0xff]
    %v2326 = vld [vmem:[#allocation8 + $0xf8] sm:$0xff]
    %2327 = vmatprep.subr.mxu0 %v2296
    %2328 = vmatpush1.msra.mxu0 %v2295
    %2329 = vmatprep.subr.mxu0 %v2298
    %2330 = vmatpush1.msra.mxu0 %v2297
    %2331 = vmatprep.subr.mxu0 %v2300
    %2332 = vmatpush1.msra.mxu0 %v2299
    %2333 = vmatprep.subr.mxu0 %v2302
    %2334 = vmatpush1.msra.mxu0 %v2301
    %2335 = vmatprep.subr.mxu0 %v2304
    %2336 = vmatpush1.msra.mxu0 %v2303
    %2337 = vmatprep.subr.mxu0 %v2306
    %2338 = vmatpush1.msra.mxu0 %v2305
    %2339 = vmatprep.subr.mxu0 %v2308
    %2340 = vmatpush1.msra.mxu0 %v2307
    %2341 = vmatprep.subr.mxu0 %v2310
    %2342 = vmatpush1.msra.mxu0 %v2309
    %2343 = vmatprep.subr.mxu0 %v2312
    %2344 = vmatpush1.msra.mxu0 %v2311
    %2345 = vmatprep.subr.mxu0 %v2314
    %2346 = vmatpush1.msra.mxu0 %v2313
    %2347 = vmatprep.subr.mxu0 %v2316
    %2348 = vmatpush1.msra.mxu0 %v2315
    %2349 = vmatprep.subr.mxu0 %v2318
    %2350 = vmatpush1.msra.mxu0 %v2317
    %2351 = vmatprep.subr.mxu0 %v2320
    %2352 = vmatpush1.msra.mxu0 %v2319
    %2353 = vmatprep.subr.mxu0 %v2322
    %2354 = vmatpush1.msra.mxu0 %v2321
    %2355 = vmatprep.subr.mxu0 %v2324
    %2356 = vmatpush1.msra.mxu0 %v2323
    %2357 = vmatprep.subr.mxu0 %v2326
    %2358 = vmatpush1.msra.mxu0 %v2325
    %2359 = vmatprep.subr.mxu0 0.0
    %2360 = vmatpush1.msra.mxu0 0.0
    %2361 = vmatprep.subr.mxu0 0.0
    %2362 = vmatpush1.msra.mxu0 0.0
    %2363 = vmatprep.subr.mxu0 0.0
    %2364 = vmatpush1.msra.mxu0 0.0
    %2365 = vmatprep.subr.mxu0 0.0
    %2366 = vmatpush1.msra.mxu0 0.0
    %2367 = vmatprep.subr.mxu0 0.0
    %2368 = vmatpush1.msra.mxu0 0.0
    %2369 = vmatprep.subr.mxu0 0.0
    %2370 = vmatpush1.msra.mxu0 0.0
    %2371 = vmatprep.subr.mxu0 0.0
    %2372 = vmatpush1.msra.mxu0 0.0
    %2373 = vmatprep.subr.mxu0 0.0
    %2374 = vmatpush1.msra.mxu0 0.0
    %2375 = vmatprep.subr.mxu0 0.0
    %2376 = vmatpush1.msra.mxu0 0.0
    %2377 = vmatprep.subr.mxu0 0.0
    %2378 = vmatpush1.msra.mxu0 0.0
    %2379 = vmatprep.subr.mxu0 0.0
    %2380 = vmatpush1.msra.mxu0 0.0
    %2381 = vmatprep.subr.mxu0 0.0
    %2382 = vmatpush1.msra.mxu0 0.0
    %2383 = vmatprep.subr.mxu0 0.0
    %2384 = vmatpush1.msra.mxu0 0.0
    %2385 = vmatprep.subr.mxu0 0.0
    %2386 = vmatpush1.msra.mxu0 0.0
    %2387 = vmatprep.subr.mxu0 0.0
    %2388 = vmatpush1.msra.mxu0 0.0
    %2389 = vmatprep.subr.mxu0 0.0
    %2390 = vmatpush1.msra.mxu0 0.0
    %2391 = vmatprep.mubr.f32.mxu0 0.0
    %2392 = vmatmul.mubr.f32.gmra.mrb[0].mxu0 %v2077
    %v2393 = vpop.f32.mrb[0].mxu0
    %v2394 = vadd.f32 0.0, %v2393
    %v2395 = vpop.f32.mrb[0].mxu0
    %v2396 = vadd.f32 0.0, %v2395
    %2397 = vmatprep.mubr.f32.mxu0 0.0
    %2398 = vmatmul.mubr.f32.gmra.mrb[0].mxu0 %v2078
    %v2399 = vpop.f32.mrb[0].mxu0
    %v2400 = vadd.f32 0.0, %v2399
    %v2401 = vpop.f32.mrb[0].mxu0
    %v2402 = vadd.f32 0.0, %v2401
    %2403 = vdwg.mxu0
    %v2404 = vsub.f32 0.0, %v2394
    %v2405 = vsub.f32 0.0, %v2400
    %v2406 = vmul.f32 %v2404, 1.442695
    %v2407 = vpow.pop %v2406
    %v2408 = vmul.f32 %v2405, 1.442695
    %v2409 = vpow.pop %v2408
    %v2410 = vadd.f32 %v2407, 1.0
    %v2411 = vadd.f32 %v2409, 1.0
    %v2412 = vrcp.pop %v2410
    %v2413 = vmul.f32 1.0, %v2412
    %v2414 = vrcp.pop %v2411
    %v2415 = vmul.f32 1.0, %v2414
    %v2416 = vmul.f32 %v2394, %v2413
    %v2417 = vmul.f32 %v2400, %v2415
    %v2418 = vmul.f32 %v2416, %v2396
    %v2419 = vmul.f32 %v2417, %v2402
    %v2420 = vld [vmem:[#allocation10] sm:$0xff]
    %v2421 = vld [vmem:[#allocation10 + $0x8] sm:$0xff]
    %v2422 = vld [vmem:[#allocation10 + $0x10] sm:$0xff]
    %v2423 = vld [vmem:[#allocation10 + $0x18] sm:$0xff]
    %v2424 = vld [vmem:[#allocation10 + $0x20] sm:$0xff]
    %v2425 = vld [vmem:[#allocation10 + $0x28] sm:$0xff]
    %v2426 = vld [vmem:[#allocation10 + $0x30] sm:$0xff]
    %v2427 = vld [vmem:[#allocation10 + $0x38] sm:$0xff]
    %v2428 = vld [vmem:[#allocation10 + $0x40] sm:$0xff]
    %v2429 = vld [vmem:[#allocation10 + $0x48] sm:$0xff]
    %v2430 = vld [vmem:[#allocation10 + $0x50] sm:$0xff]
    %v2431 = vld [vmem:[#allocation10 + $0x58] sm:$0xff]
    %v2432 = vld [vmem:[#allocation10 + $0x60] sm:$0xff]
    %v2433 = vld [vmem:[#allocation10 + $0x68] sm:$0xff]
    %v2434 = vld [vmem:[#allocation10 + $0x70] sm:$0xff]
    %v2435 = vld [vmem:[#allocation10 + $0x78] sm:$0xff]
    %2436 = vmatprep.subr.mxu0 0.0
    %2437 = vmatpush1.msra.mxu0 %v2420
    %2438 = vmatprep.subr.mxu0 0.0
    %2439 = vmatpush1.msra.mxu0 %v2421
    %2440 = vmatprep.subr.mxu0 0.0
    %2441 = vmatpush1.msra.mxu0 %v2422
    %2442 = vmatprep.subr.mxu0 0.0
    %2443 = vmatpush1.msra.mxu0 %v2423
    %2444 = vmatprep.subr.mxu0 0.0
    %2445 = vmatpush1.msra.mxu0 %v2424
    %2446 = vmatprep.subr.mxu0 0.0
    %2447 = vmatpush1.msra.mxu0 %v2425
    %2448 = vmatprep.subr.mxu0 0.0
    %2449 = vmatpush1.msra.mxu0 %v2426
    %2450 = vmatprep.subr.mxu0 0.0
    %2451 = vmatpush1.msra.mxu0 %v2427
    %2452 = vmatprep.subr.mxu0 0.0
    %2453 = vmatpush1.msra.mxu0 %v2428
    %2454 = vmatprep.subr.mxu0 0.0
    %2455 = vmatpush1.msra.mxu0 %v2429
    %2456 = vmatprep.subr.mxu0 0.0
    %2457 = vmatpush1.msra.mxu0 %v2430
    %2458 = vmatprep.subr.mxu0 0.0
    %2459 = vmatpush1.msra.mxu0 %v2431
    %2460 = vmatprep.subr.mxu0 0.0
    %2461 = vmatpush1.msra.mxu0 %v2432
    %2462 = vmatprep.subr.mxu0 0.0
    %2463 = vmatpush1.msra.mxu0 %v2433
    %2464 = vmatprep.subr.mxu0 0.0
    %2465 = vmatpush1.msra.mxu0 %v2434
    %2466 = vmatprep.subr.mxu0 0.0
    %2467 = vmatpush1.msra.mxu0 %v2435
    %2468 = vmatprep.subr.mxu0 0.0
    %2469 = vmatpush1.msra.mxu0 0.0
    %2470 = vmatprep.subr.mxu0 0.0
    %2471 = vmatpush1.msra.mxu0 0.0
    %2472 = vmatprep.subr.mxu0 0.0
    %2473 = vmatpush1.msra.mxu0 0.0
    %2474 = vmatprep.subr.mxu0 0.0
    %2475 = vmatpush1.msra.mxu0 0.0
    %2476 = vmatprep.subr.mxu0 0.0
    %2477 = vmatpush1.msra.mxu0 0.0
    %2478 = vmatprep.subr.mxu0 0.0
    %2479 = vmatpush1.msra.mxu0 0.0
    %2480 = vmatprep.subr.mxu0 0.0
    %2481 = vmatpush1.msra.mxu0 0.0
    %2482 = vmatprep.subr.mxu0 0.0
    %2483 = vmatpush1.msra.mxu0 0.0
    %2484 = vmatprep.subr.mxu0 0.0
    %2485 = vmatpush1.msra.mxu0 0.0
    %2486 = vmatprep.subr.mxu0 0.0
    %2487 = vmatpush1.msra.mxu0 0.0
    %2488 = vmatprep.subr.mxu0 0.0
    %2489 = vmatpush1.msra.mxu0 0.0
    %2490 = vmatprep.subr.mxu0 0.0
    %2491 = vmatpush1.msra.mxu0 0.0
    %2492 = vmatprep.subr.mxu0 0.0
    %2493 = vmatpush1.msra.mxu0 0.0
    %2494 = vmatprep.subr.mxu0 0.0
    %2495 = vmatpush1.msra.mxu0 0.0
    %2496 = vmatprep.subr.mxu0 0.0
    %2497 = vmatpush1.msra.mxu0 0.0
    %2498 = vmatprep.subr.mxu0 0.0
    %2499 = vmatpush1.msra.mxu0 0.0
    %2500 = vmatprep.mubr.f32.mxu0 0.0
    %2501 = vmatmul.mubr.f32.gmra.mrb[0].mxu0 %v2418
    %v2502 = vpop.f32.mrb[0].mxu0
    %v2503 = vadd.f32 0.0, %v2502
    %v2504 = vpop.f32.mrb[0].mxu0
    %2505 = vmatprep.mubr.f32.mxu0 0.0
    %2506 = vmatmul.mubr.f32.gmra.mrb[0].mxu0 %v2419
    %v2507 = vpop.f32.mrb[0].mxu0
    %v2508 = vadd.f32 0.0, %v2507
    %v2509 = vpop.f32.mrb[0].mxu0
    %2510 = vdwg.mxu0
    %vm2511 = vcmp.eq.s32.totalorder %v374, 0
    %v2512 = vsel %vm2511, %v2292, 0.0
    %v2513 = vsel %vm2511, %v2294, 0.0
    %v2514 = vsel %vm2170, %v2512, 0.0
    %2515 = vadd.xlane.f32.xlu0 %v2514
    %v2516 = vpop.xlane.xlu0 %2515
    %v2517 = vsel %vm2170, %v2513, 0.0
    %2518 = vadd.xlane.f32.xlu0 %v2517
    %v2519 = vpop.xlane.xlu0 %2518
    %v2520 = vmul.f32 %v2516, %v2503
    %v2521 = vmul.f32 %v2519, %v2508
    %v2522 = vadd.f32 %v2520, 0.0
    %v2523 = vadd.f32 %v2521, 0.0
    %s2524 = scalar_lea.vmem [#allocation8], 256
    %v2525 = vld [vmem:[%s2524] sm:$0xff]
    %v2526 = vld [vmem:[%s2524 + $0x8] sm:$0xff]
    %v2527 = vld [vmem:[%s2524 + $0x10] sm:$0xff]
    %v2528 = vld [vmem:[%s2524 + $0x18] sm:$0xff]
    %v2529 = vld [vmem:[%s2524 + $0x20] sm:$0xff]
    %v2530 = vld [vmem:[%s2524 + $0x28] sm:$0xff]
    %v2531 = vld [vmem:[%s2524 + $0x30] sm:$0xff]
    %v2532 = vld [vmem:[%s2524 + $0x38] sm:$0xff]
    %v2533 = vld [vmem:[%s2524 + $0x40] sm:$0xff]
    %v2534 = vld [vmem:[%s2524 + $0x48] sm:$0xff]
    %v2535 = vld [vmem:[%s2524 + $0x50] sm:$0xff]
    %v2536 = vld [vmem:[%s2524 + $0x58] sm:$0xff]
    %v2537 = vld [vmem:[%s2524 + $0x60] sm:$0xff]
    %v2538 = vld [vmem:[%s2524 + $0x68] sm:$0xff]
    %v2539 = vld [vmem:[%s2524 + $0x70] sm:$0xff]
    %v2540 = vld [vmem:[%s2524 + $0x78] sm:$0xff]
    %v2541 = vld [vmem:[%s2524 + $0x80] sm:$0xff]
    %v2542 = vld [vmem:[%s2524 + $0x88] sm:$0xff]
    %v2543 = vld [vmem:[%s2524 + $0x90] sm:$0xff]
    %v2544 = vld [vmem:[%s2524 + $0x98] sm:$0xff]
    %v2545 = vld [vmem:[%s2524 + $0xa0] sm:$0xff]
    %v2546 = vld [vmem:[%s2524 + $0xa8] sm:$0xff]
    %v2547 = vld [vmem:[%s2524 + $0xb0] sm:$0xff]
    %v2548 = vld [vmem:[%s2524 + $0xb8] sm:$0xff]
    %v2549 = vld [vmem:[%s2524 + $0xc0] sm:$0xff]
    %v2550 = vld [vmem:[%s2524 + $0xc8] sm:$0xff]
    %v2551 = vld [vmem:[%s2524 + $0xd0] sm:$0xff]
    %v2552 = vld [vmem:[%s2524 + $0xd8] sm:$0xff]
    %v2553 = vld [vmem:[%s2524 + $0xe0] sm:$0xff]
    %v2554 = vld [vmem:[%s2524 + $0xe8] sm:$0xff]
    %v2555 = vld [vmem:[%s2524 + $0xf0] sm:$0xff]
    %v2556 = vld [vmem:[%s2524 + $0xf8] sm:$0xff]
    %2557 = vmatprep.subr.mxu0 %v2526
    %2558 = vmatpush1.msra.mxu0 %v2525
    %2559 = vmatprep.subr.mxu0 %v2528
    %2560 = vmatpush1.msra.mxu0 %v2527
    %2561 = vmatprep.subr.mxu0 %v2530
    %2562 = vmatpush1.msra.mxu0 %v2529
    %2563 = vmatprep.subr.mxu0 %v2532
    %2564 = vmatpush1.msra.mxu0 %v2531
    %2565 = vmatprep.subr.mxu0 %v2534
    %2566 = vmatpush1.msra.mxu0 %v2533
    %2567 = vmatprep.subr.mxu0 %v2536
    %2568 = vmatpush1.msra.mxu0 %v2535
    %2569 = vmatprep.subr.mxu0 %v2538
    %2570 = vmatpush1.msra.mxu0 %v2537
    %2571 = vmatprep.subr.mxu0 %v2540
    %2572 = vmatpush1.msra.mxu0 %v2539
    %2573 = vmatprep.subr.mxu0 %v2542
    %2574 = vmatpush1.msra.mxu0 %v2541
    %2575 = vmatprep.subr.mxu0 %v2544
    %2576 = vmatpush1.msra.mxu0 %v2543
    %2577 = vmatprep.subr.mxu0 %v2546
    %2578 = vmatpush1.msra.mxu0 %v2545
    %2579 = vmatprep.subr.mxu0 %v2548
    %2580 = vmatpush1.msra.mxu0 %v2547
    %2581 = vmatprep.subr.mxu0 %v2550
    %2582 = vmatpush1.msra.mxu0 %v2549
    %2583 = vmatprep.subr.mxu0 %v2552
    %2584 = vmatpush1.msra.mxu0 %v2551
    %2585 = vmatprep.subr.mxu0 %v2554
    %2586 = vmatpush1.msra.mxu0 %v2553
    %2587 = vmatprep.subr.mxu0 %v2556
    %2588 = vmatpush1.msra.mxu0 %v2555
    %2589 = vmatprep.subr.mxu0 0.0
    %2590 = vmatpush1.msra.mxu0 0.0
    %2591 = vmatprep.subr.mxu0 0.0
    %2592 = vmatpush1.msra.mxu0 0.0
    %2593 = vmatprep.subr.mxu0 0.0
    %2594 = vmatpush1.msra.mxu0 0.0
    %2595 = vmatprep.subr.mxu0 0.0
    %2596 = vmatpush1.msra.mxu0 0.0
    %2597 = vmatprep.subr.mxu0 0.0
    %2598 = vmatpush1.msra.mxu0 0.0
    %2599 = vmatprep.subr.mxu0 0.0
    %2600 = vmatpush1.msra.mxu0 0.0
    %2601 = vmatprep.subr.mxu0 0.0
    %2602 = vmatpush1.msra.mxu0 0.0
    %2603 = vmatprep.subr.mxu0 0.0
    %2604 = vmatpush1.msra.mxu0 0.0
    %2605 = vmatprep.subr.mxu0 0.0
    %2606 = vmatpush1.msra.mxu0 0.0
    %2607 = vmatprep.subr.mxu0 0.0
    %2608 = vmatpush1.msra.mxu0 0.0
    %2609 = vmatprep.subr.mxu0 0.0
    %2610 = vmatpush1.msra.mxu0 0.0
    %2611 = vmatprep.subr.mxu0 0.0
    %2612 = vmatpush1.msra.mxu0 0.0
    %2613 = vmatprep.subr.mxu0 0.0
    %2614 = vmatpush1.msra.mxu0 0.0
    %2615 = vmatprep.subr.mxu0 0.0
    %2616 = vmatpush1.msra.mxu0 0.0
    %2617 = vmatprep.subr.mxu0 0.0
    %2618 = vmatpush1.msra.mxu0 0.0
    %2619 = vmatprep.subr.mxu0 0.0
    %2620 = vmatpush1.msra.mxu0 0.0
    %2621 = vmatprep.mubr.f32.mxu0 0.0
    %2622 = vmatmul.mubr.f32.gmra.mrb[0].mxu0 %v2077
    %v2623 = vpop.f32.mrb[0].mxu0
    %v2624 = vadd.f32 0.0, %v2623
    %v2625 = vpop.f32.mrb[0].mxu0
    %v2626 = vadd.f32 0.0, %v2625
    %2627 = vmatprep.mubr.f32.mxu0 0.0
    %2628 = vmatmul.mubr.f32.gmra.mrb[0].mxu0 %v2078
    %v2629 = vpop.f32.mrb[0].mxu0
    %v2630 = vadd.f32 0.0, %v2629
    %v2631 = vpop.f32.mrb[0].mxu0
    %v2632 = vadd.f32 0.0, %v2631
    %2633 = vdwg.mxu0
    %v2634 = vsub.f32 0.0, %v2624
    %v2635 = vsub.f32 0.0, %v2630
    %v2636 = vmul.f32 %v2634, 1.442695
    %v2637 = vpow.pop %v2636
    %v2638 = vmul.f32 %v2635, 1.442695
    %v2639 = vpow.pop %v2638
    %v2640 = vadd.f32 %v2637, 1.0
    %v2641 = vadd.f32 %v2639, 1.0
    %v2642 = vrcp.pop %v2640
    %v2643 = vmul.f32 1.0, %v2642
    %v2644 = vrcp.pop %v2641
    %v2645 = vmul.f32 1.0, %v2644
    %v2646 = vmul.f32 %v2624, %v2643
    %v2647 = vmul.f32 %v2630, %v2645
    %v2648 = vmul.f32 %v2646, %v2626
    %v2649 = vmul.f32 %v2647, %v2632
    %s2650 = scalar_lea.vmem [#allocation10], 128
    %v2651 = vld [vmem:[%s2650] sm:$0xff]
    %v2652 = vld [vmem:[%s2650 + $0x8] sm:$0xff]
    %v2653 = vld [vmem:[%s2650 + $0x10] sm:$0xff]
    %v2654 = vld [vmem:[%s2650 + $0x18] sm:$0xff]
    %v2655 = vld [vmem:[%s2650 + $0x20] sm:$0xff]
    %v2656 = vld [vmem:[%s2650 + $0x28] sm:$0xff]
    %v2657 = vld [vmem:[%s2650 + $0x30] sm:$0xff]
    %v2658 = vld [vmem:[%s2650 + $0x38] sm:$0xff]
    %v2659 = vld [vmem:[%s2650 + $0x40] sm:$0xff]
    %v2660 = vld [vmem:[%s2650 + $0x48] sm:$0xff]
    %v2661 = vld [vmem:[%s2650 + $0x50] sm:$0xff]
    %v2662 = vld [vmem:[%s2650 + $0x58] sm:$0xff]
    %v2663 = vld [vmem:[%s2650 + $0x60] sm:$0xff]
    %v2664 = vld [vmem:[%s2650 + $0x68] sm:$0xff]
    %v2665 = vld [vmem:[%s2650 + $0x70] sm:$0xff]
    %v2666 = vld [vmem:[%s2650 + $0x78] sm:$0xff]
    %2667 = vmatprep.subr.mxu0 0.0
    %2668 = vmatpush1.msra.mxu0 %v2651
    %2669 = vmatprep.subr.mxu0 0.0
    %2670 = vmatpush1.msra.mxu0 %v2652
    %2671 = vmatprep.subr.mxu0 0.0
    %2672 = vmatpush1.msra.mxu0 %v2653
    %2673 = vmatprep.subr.mxu0 0.0
    %2674 = vmatpush1.msra.mxu0 %v2654
    %2675 = vmatprep.subr.mxu0 0.0
    %2676 = vmatpush1.msra.mxu0 %v2655
    %2677 = vmatprep.subr.mxu0 0.0
    %2678 = vmatpush1.msra.mxu0 %v2656
    %2679 = vmatprep.subr.mxu0 0.0
    %2680 = vmatpush1.msra.mxu0 %v2657
    %2681 = vmatprep.subr.mxu0 0.0
    %2682 = vmatpush1.msra.mxu0 %v2658
    %2683 = vmatprep.subr.mxu0 0.0
    %2684 = vmatpush1.msra.mxu0 %v2659
    %2685 = vmatprep.subr.mxu0 0.0
    %2686 = vmatpush1.msra.mxu0 %v2660
    %2687 = vmatprep.subr.mxu0 0.0
    %2688 = vmatpush1.msra.mxu0 %v2661
    %2689 = vmatprep.subr.mxu0 0.0
    %2690 = vmatpush1.msra.mxu0 %v2662
    %2691 = vmatprep.subr.mxu0 0.0
    %2692 = vmatpush1.msra.mxu0 %v2663
    %2693 = vmatprep.subr.mxu0 0.0
    %2694 = vmatpush1.msra.mxu0 %v2664
    %2695 = vmatprep.subr.mxu0 0.0
    %2696 = vmatpush1.msra.mxu0 %v2665
    %2697 = vmatprep.subr.mxu0 0.0
    %2698 = vmatpush1.msra.mxu0 %v2666
    %2699 = vmatprep.subr.mxu0 0.0
    %2700 = vmatpush1.msra.mxu0 0.0
    %2701 = vmatprep.subr.mxu0 0.0
    %2702 = vmatpush1.msra.mxu0 0.0
    %2703 = vmatprep.subr.mxu0 0.0
    %2704 = vmatpush1.msra.mxu0 0.0
    %2705 = vmatprep.subr.mxu0 0.0
    %2706 = vmatpush1.msra.mxu0 0.0
    %2707 = vmatprep.subr.mxu0 0.0
    %2708 = vmatpush1.msra.mxu0 0.0
    %2709 = vmatprep.subr.mxu0 0.0
    %2710 = vmatpush1.msra.mxu0 0.0
    %2711 = vmatprep.subr.mxu0 0.0
    %2712 = vmatpush1.msra.mxu0 0.0
    %2713 = vmatprep.subr.mxu0 0.0
    %2714 = vmatpush1.msra.mxu0 0.0
    %2715 = vmatprep.subr.mxu0 0.0
    %2716 = vmatpush1.msra.mxu0 0.0
    %2717 = vmatprep.subr.mxu0 0.0
    %2718 = vmatpush1.msra.mxu0 0.0
    %2719 = vmatprep.subr.mxu0 0.0
    %2720 = vmatpush1.msra.mxu0 0.0
    %2721 = vmatprep.subr.mxu0 0.0
    %2722 = vmatpush1.msra.mxu0 0.0
    %2723 = vmatprep.subr.mxu0 0.0
    %2724 = vmatpush1.msra.mxu0 0.0
    %2725 = vmatprep.subr.mxu0 0.0
    %2726 = vmatpush1.msra.mxu0 0.0
    %2727 = vmatprep.subr.mxu0 0.0
    %2728 = vmatpush1.msra.mxu0 0.0
    %2729 = vmatprep.subr.mxu0 0.0
    %2730 = vmatpush1.msra.mxu0 0.0
    %2731 = vmatprep.mubr.f32.mxu0 0.0
    %2732 = vmatmul.mubr.f32.gmra.mrb[0].mxu0 %v2648
    %v2733 = vpop.f32.mrb[0].mxu0
    %v2734 = vadd.f32 0.0, %v2733
    %v2735 = vpop.f32.mrb[0].mxu0
    %2736 = vmatprep.mubr.f32.mxu0 0.0
    %2737 = vmatmul.mubr.f32.gmra.mrb[0].mxu0 %v2649
    %v2738 = vpop.f32.mrb[0].mxu0
    %v2739 = vadd.f32 0.0, %v2738
    %v2740 = vpop.f32.mrb[0].mxu0
    %2741 = vdwg.mxu0
    %vm2742 = vcmp.eq.s32.totalorder %v374, 1
    %v2743 = vsel %vm2742, %v2292, 0.0
    %v2744 = vsel %vm2742, %v2294, 0.0
    %v2745 = vsel %vm2170, %v2743, 0.0
    %2746 = vadd.xlane.f32.xlu0 %v2745
    %v2747 = vpop.xlane.xlu0 %2746
    %v2748 = vsel %vm2170, %v2744, 0.0
    %2749 = vadd.xlane.f32.xlu0 %v2748
    %v2750 = vpop.xlane.xlu0 %2749
    %v2751 = vmul.f32 %v2747, %v2734
    %v2752 = vmul.f32 %v2750, %v2739
    %v2753 = vadd.f32 %v2522, %v2751
    %v2754 = vadd.f32 %v2523, %v2752
    %s2755 = scalar_lea.vmem [#allocation8], 512
    %v2756 = vld [vmem:[%s2755] sm:$0xff]
    %v2757 = vld [vmem:[%s2755 + $0x8] sm:$0xff]
    %v2758 = vld [vmem:[%s2755 + $0x10] sm:$0xff]
    %v2759 = vld [vmem:[%s2755 + $0x18] sm:$0xff]
    %v2760 = vld [vmem:[%s2755 + $0x20] sm:$0xff]
    %v2761 = vld [vmem:[%s2755 + $0x28] sm:$0xff]
    %v2762 = vld [vmem:[%s2755 + $0x30] sm:$0xff]
    %v2763 = vld [vmem:[%s2755 + $0x38] sm:$0xff]
    %v2764 = vld [vmem:[%s2755 + $0x40] sm:$0xff]
    %v2765 = vld [vmem:[%s2755 + $0x48] sm:$0xff]
    %v2766 = vld [vmem:[%s2755 + $0x50] sm:$0xff]
    %v2767 = vld [vmem:[%s2755 + $0x58] sm:$0xff]
    %v2768 = vld [vmem:[%s2755 + $0x60] sm:$0xff]
    %v2769 = vld [vmem:[%s2755 + $0x68] sm:$0xff]
    %v2770 = vld [vmem:[%s2755 + $0x70] sm:$0xff]
    %v2771 = vld [vmem:[%s2755 + $0x78] sm:$0xff]
    %v2772 = vld [vmem:[%s2755 + $0x80] sm:$0xff]
    %v2773 = vld [vmem:[%s2755 + $0x88] sm:$0xff]
    %v2774 = vld [vmem:[%s2755 + $0x90] sm:$0xff]
    %v2775 = vld [vmem:[%s2755 + $0x98] sm:$0xff]
    %v2776 = vld [vmem:[%s2755 + $0xa0] sm:$0xff]
    %v2777 = vld [vmem:[%s2755 + $0xa8] sm:$0xff]
    %v2778 = vld [vmem:[%s2755 + $0xb0] sm:$0xff]
    %v2779 = vld [vmem:[%s2755 + $0xb8] sm:$0xff]
    %v2780 = vld [vmem:[%s2755 + $0xc0] sm:$0xff]
    %v2781 = vld [vmem:[%s2755 + $0xc8] sm:$0xff]
    %v2782 = vld [vmem:[%s2755 + $0xd0] sm:$0xff]
    %v2783 = vld [vmem:[%s2755 + $0xd8] sm:$0xff]
    %v2784 = vld [vmem:[%s2755 + $0xe0] sm:$0xff]
    %v2785 = vld [vmem:[%s2755 + $0xe8] sm:$0xff]
    %v2786 = vld [vmem:[%s2755 + $0xf0] sm:$0xff]
    %v2787 = vld [vmem:[%s2755 + $0xf8] sm:$0xff]
    %2788 = vmatprep.subr.mxu0 %v2757
    %2789 = vmatpush1.msra.mxu0 %v2756
    %2790 = vmatprep.subr.mxu0 %v2759
    %2791 = vmatpush1.msra.mxu0 %v2758
    %2792 = vmatprep.subr.mxu0 %v2761
    %2793 = vmatpush1.msra.mxu0 %v2760
    %2794 = vmatprep.subr.mxu0 %v2763
    %2795 = vmatpush1.msra.mxu0 %v2762
    %2796 = vmatprep.subr.mxu0 %v2765
    %2797 = vmatpush1.msra.mxu0 %v2764
    %2798 = vmatprep.subr.mxu0 %v2767
    %2799 = vmatpush1.msra.mxu0 %v2766
    %2800 = vmatprep.subr.mxu0 %v2769
    %2801 = vmatpush1.msra.mxu0 %v2768
    %2802 = vmatprep.subr.mxu0 %v2771
    %2803 = vmatpush1.msra.mxu0 %v2770
    %2804 = vmatprep.subr.mxu0 %v2773
    %2805 = vmatpush1.msra.mxu0 %v2772
    %2806 = vmatprep.subr.mxu0 %v2775
    %2807 = vmatpush1.msra.mxu0 %v2774
    %2808 = vmatprep.subr.mxu0 %v2777
    %2809 = vmatpush1.msra.mxu0 %v2776
    %2810 = vmatprep.subr.mxu0 %v2779
    %2811 = vmatpush1.msra.mxu0 %v2778
    %2812 = vmatprep.subr.mxu0 %v2781
    %2813 = vmatpush1.msra.mxu0 %v2780
    %2814 = vmatprep.subr.mxu0 %v2783
    %2815 = vmatpush1.msra.mxu0 %v2782
    %2816 = vmatprep.subr.mxu0 %v2785
    %2817 = vmatpush1.msra.mxu0 %v2784
    %2818 = vmatprep.subr.mxu0 %v2787
    %2819 = vmatpush1.msra.mxu0 %v2786
    %2820 = vmatprep.subr.mxu0 0.0
    %2821 = vmatpush1.msra.mxu0 0.0
    %2822 = vmatprep.subr.mxu0 0.0
    %2823 = vmatpush1.msra.mxu0 0.0
    %2824 = vmatprep.subr.mxu0 0.0
    %2825 = vmatpush1.msra.mxu0 0.0
    %2826 = vmatprep.subr.mxu0 0.0
    %2827 = vmatpush1.msra.mxu0 0.0
    %2828 = vmatprep.subr.mxu0 0.0
    %2829 = vmatpush1.msra.mxu0 0.0
    %2830 = vmatprep.subr.mxu0 0.0
    %2831 = vmatpush1.msra.mxu0 0.0
    %2832 = vmatprep.subr.mxu0 0.0
    %2833 = vmatpush1.msra.mxu0 0.0
    %2834 = vmatprep.subr.mxu0 0.0
    %2835 = vmatpush1.msra.mxu0 0.0
    %2836 = vmatprep.subr.mxu0 0.0
    %2837 = vmatpush1.msra.mxu0 0.0
    %2838 = vmatprep.subr.mxu0 0.0
    %2839 = vmatpush1.msra.mxu0 0.0
    %2840 = vmatprep.subr.mxu0 0.0
    %2841 = vmatpush1.msra.mxu0 0.0
    %2842 = vmatprep.subr.mxu0 0.0
    %2843 = vmatpush1.msra.mxu0 0.0
    %2844 = vmatprep.subr.mxu0 0.0
    %2845 = vmatpush1.msra.mxu0 0.0
    %2846 = vmatprep.subr.mxu0 0.0
    %2847 = vmatpush1.msra.mxu0 0.0
    %2848 = vmatprep.subr.mxu0 0.0
    %2849 = vmatpush1.msra.mxu0 0.0
    %2850 = vmatprep.subr.mxu0 0.0
    %2851 = vmatpush1.msra.mxu0 0.0
    %2852 = vmatprep.mubr.f32.mxu0 0.0
    %2853 = vmatmul.mubr.f32.gmra.mrb[0].mxu0 %v2077
    %v2854 = vpop.f32.mrb[0].mxu0
    %v2855 = vadd.f32 0.0, %v2854
    %v2856 = vpop.f32.mrb[0].mxu0
    %v2857 = vadd.f32 0.0, %v2856
    %2858 = vmatprep.mubr.f32.mxu0 0.0
    %2859 = vmatmul.mubr.f32.gmra.mrb[0].mxu0 %v2078
    %v2860 = vpop.f32.mrb[0].mxu0
    %v2861 = vadd.f32 0.0, %v2860
    %v2862 = vpop.f32.mrb[0].mxu0
    %v2863 = vadd.f32 0.0, %v2862
    %2864 = vdwg.mxu0
    %v2865 = vsub.f32 0.0, %v2855
    %v2866 = vsub.f32 0.0, %v2861
    %v2867 = vmul.f32 %v2865, 1.442695
    %v2868 = vpow.pop %v2867
    %v2869 = vmul.f32 %v2866, 1.442695
    %v2870 = vpow.pop %v2869
    %v2871 = vadd.f32 %v2868, 1.0
    %v2872 = vadd.f32 %v2870, 1.0
    %v2873 = vrcp.pop %v2871
    %v2874 = vmul.f32 1.0, %v2873
    %v2875 = vrcp.pop %v2872
    %v2876 = vmul.f32 1.0, %v2875
    %v2877 = vmul.f32 %v2855, %v2874
    %v2878 = vmul.f32 %v2861, %v2876
    %v2879 = vmul.f32 %v2877, %v2857
    %v2880 = vmul.f32 %v2878, %v2863
    %s2881 = scalar_lea.vmem [#allocation10], 256
    %v2882 = vld [vmem:[%s2881] sm:$0xff]
    %v2883 = vld [vmem:[%s2881 + $0x8] sm:$0xff]
    %v2884 = vld [vmem:[%s2881 + $0x10] sm:$0xff]
    %v2885 = vld [vmem:[%s2881 + $0x18] sm:$0xff]
    %v2886 = vld [vmem:[%s2881 + $0x20] sm:$0xff]
    %v2887 = vld [vmem:[%s2881 + $0x28] sm:$0xff]
    %v2888 = vld [vmem:[%s2881 + $0x30] sm:$0xff]
    %v2889 = vld [vmem:[%s2881 + $0x38] sm:$0xff]
    %v2890 = vld [vmem:[%s2881 + $0x40] sm:$0xff]
    %v2891 = vld [vmem:[%s2881 + $0x48] sm:$0xff]
    %v2892 = vld [vmem:[%s2881 + $0x50] sm:$0xff]
    %v2893 = vld [vmem:[%s2881 + $0x58] sm:$0xff]
    %v2894 = vld [vmem:[%s2881 + $0x60] sm:$0xff]
    %v2895 = vld [vmem:[%s2881 + $0x68] sm:$0xff]
    %v2896 = vld [vmem:[%s2881 + $0x70] sm:$0xff]
    %v2897 = vld [vmem:[%s2881 + $0x78] sm:$0xff]
    %2898 = vmatprep.subr.mxu0 0.0
    %2899 = vmatpush1.msra.mxu0 %v2882
    %2900 = vmatprep.subr.mxu0 0.0
    %2901 = vmatpush1.msra.mxu0 %v2883
    %2902 = vmatprep.subr.mxu0 0.0
    %2903 = vmatpush1.msra.mxu0 %v2884
    %2904 = vmatprep.subr.mxu0 0.0
    %2905 = vmatpush1.msra.mxu0 %v2885
    %2906 = vmatprep.subr.mxu0 0.0
    %2907 = vmatpush1.msra.mxu0 %v2886
    %2908 = vmatprep.subr.mxu0 0.0
    %2909 = vmatpush1.msra.mxu0 %v2887
    %2910 = vmatprep.subr.mxu0 0.0
    %2911 = vmatpush1.msra.mxu0 %v2888
    %2912 = vmatprep.subr.mxu0 0.0
    %2913 = vmatpush1.msra.mxu0 %v2889
    %2914 = vmatprep.subr.mxu0 0.0
    %2915 = vmatpush1.msra.mxu0 %v2890
    %2916 = vmatprep.subr.mxu0 0.0
    %2917 = vmatpush1.msra.mxu0 %v2891
    %2918 = vmatprep.subr.mxu0 0.0
    %2919 = vmatpush1.msra.mxu0 %v2892
    %2920 = vmatprep.subr.mxu0 0.0
    %2921 = vmatpush1.msra.mxu0 %v2893
    %2922 = vmatprep.subr.mxu0 0.0
    %2923 = vmatpush1.msra.mxu0 %v2894
    %2924 = vmatprep.subr.mxu0 0.0
    %2925 = vmatpush1.msra.mxu0 %v2895
    %2926 = vmatprep.subr.mxu0 0.0
    %2927 = vmatpush1.msra.mxu0 %v2896
    %2928 = vmatprep.subr.mxu0 0.0
    %2929 = vmatpush1.msra.mxu0 %v2897
    %2930 = vmatprep.subr.mxu0 0.0
    %2931 = vmatpush1.msra.mxu0 0.0
    %2932 = vmatprep.subr.mxu0 0.0
    %2933 = vmatpush1.msra.mxu0 0.0
    %2934 = vmatprep.subr.mxu0 0.0
    %2935 = vmatpush1.msra.mxu0 0.0
    %2936 = vmatprep.subr.mxu0 0.0
    %2937 = vmatpush1.msra.mxu0 0.0
    %2938 = vmatprep.subr.mxu0 0.0
    %2939 = vmatpush1.msra.mxu0 0.0
    %2940 = vmatprep.subr.mxu0 0.0
    %2941 = vmatpush1.msra.mxu0 0.0
    %2942 = vmatprep.subr.mxu0 0.0
    %2943 = vmatpush1.msra.mxu0 0.0
    %2944 = vmatprep.subr.mxu0 0.0
    %2945 = vmatpush1.msra.mxu0 0.0
    %2946 = vmatprep.subr.mxu0 0.0
    %2947 = vmatpush1.msra.mxu0 0.0
    %2948 = vmatprep.subr.mxu0 0.0
    %2949 = vmatpush1.msra.mxu0 0.0
    %2950 = vmatprep.subr.mxu0 0.0
    %2951 = vmatpush1.msra.mxu0 0.0
    %2952 = vmatprep.subr.mxu0 0.0
    %2953 = vmatpush1.msra.mxu0 0.0
    %2954 = vmatprep.subr.mxu0 0.0
    %2955 = vmatpush1.msra.mxu0 0.0
    %2956 = vmatprep.subr.mxu0 0.0
    %2957 = vmatpush1.msra.mxu0 0.0
    %2958 = vmatprep.subr.mxu0 0.0
    %2959 = vmatpush1.msra.mxu0 0.0
    %2960 = vmatprep.subr.mxu0 0.0
    %2961 = vmatpush1.msra.mxu0 0.0
    %2962 = vmatprep.mubr.f32.mxu0 0.0
    %2963 = vmatmul.mubr.f32.gmra.mrb[0].mxu0 %v2879
    %v2964 = vpop.f32.mrb[0].mxu0
    %v2965 = vadd.f32 0.0, %v2964
    %v2966 = vpop.f32.mrb[0].mxu0
    %2967 = vmatprep.mubr.f32.mxu0 0.0
    %2968 = vmatmul.mubr.f32.gmra.mrb[0].mxu0 %v2880
    %v2969 = vpop.f32.mrb[0].mxu0
    %v2970 = vadd.f32 0.0, %v2969
    %v2971 = vpop.f32.mrb[0].mxu0
    %2972 = vdwg.mxu0
    %vm2973 = vcmp.eq.s32.totalorder %v374, 2
    %v2974 = vsel %vm2973, %v2292, 0.0
    %v2975 = vsel %vm2973, %v2294, 0.0
    %v2976 = vsel %vm2170, %v2974, 0.0
    %2977 = vadd.xlane.f32.xlu0 %v2976
    %v2978 = vpop.xlane.xlu0 %2977
    %v2979 = vsel %vm2170, %v2975, 0.0
    %2980 = vadd.xlane.f32.xlu0 %v2979
    %v2981 = vpop.xlane.xlu0 %2980
    %v2982 = vmul.f32 %v2978, %v2965
    %v2983 = vmul.f32 %v2981, %v2970
    %v2984 = vadd.f32 %v2753, %v2982
    %v2985 = vadd.f32 %v2754, %v2983
    %s2986 = scalar_lea.vmem [#allocation8], 768
    %v2987 = vld [vmem:[%s2986] sm:$0xff]
    %v2988 = vld [vmem:[%s2986 + $0x8] sm:$0xff]
    %v2989 = vld [vmem:[%s2986 + $0x10] sm:$0xff]
    %v2990 = vld [vmem:[%s2986 + $0x18] sm:$0xff]
    %v2991 = vld [vmem:[%s2986 + $0x20] sm:$0xff]
    %v2992 = vld [vmem:[%s2986 + $0x28] sm:$0xff]
    %v2993 = vld [vmem:[%s2986 + $0x30] sm:$0xff]
    %v2994 = vld [vmem:[%s2986 + $0x38] sm:$0xff]
    %v2995 = vld [vmem:[%s2986 + $0x40] sm:$0xff]
    %v2996 = vld [vmem:[%s2986 + $0x48] sm:$0xff]
    %v2997 = vld [vmem:[%s2986 + $0x50] sm:$0xff]
    %v2998 = vld [vmem:[%s2986 + $0x58] sm:$0xff]
    %v2999 = vld [vmem:[%s2986 + $0x60] sm:$0xff]
    %v3000 = vld [vmem:[%s2986 + $0x68] sm:$0xff]
    %v3001 = vld [vmem:[%s2986 + $0x70] sm:$0xff]
    %v3002 = vld [vmem:[%s2986 + $0x78] sm:$0xff]
    %v3003 = vld [vmem:[%s2986 + $0x80] sm:$0xff]
    %v3004 = vld [vmem:[%s2986 + $0x88] sm:$0xff]
    %v3005 = vld [vmem:[%s2986 + $0x90] sm:$0xff]
    %v3006 = vld [vmem:[%s2986 + $0x98] sm:$0xff]
    %v3007 = vld [vmem:[%s2986 + $0xa0] sm:$0xff]
    %v3008 = vld [vmem:[%s2986 + $0xa8] sm:$0xff]
    %v3009 = vld [vmem:[%s2986 + $0xb0] sm:$0xff]
    %v3010 = vld [vmem:[%s2986 + $0xb8] sm:$0xff]
    %v3011 = vld [vmem:[%s2986 + $0xc0] sm:$0xff]
    %v3012 = vld [vmem:[%s2986 + $0xc8] sm:$0xff]
    %v3013 = vld [vmem:[%s2986 + $0xd0] sm:$0xff]
    %v3014 = vld [vmem:[%s2986 + $0xd8] sm:$0xff]
    %v3015 = vld [vmem:[%s2986 + $0xe0] sm:$0xff]
    %v3016 = vld [vmem:[%s2986 + $0xe8] sm:$0xff]
    %v3017 = vld [vmem:[%s2986 + $0xf0] sm:$0xff]
    %v3018 = vld [vmem:[%s2986 + $0xf8] sm:$0xff]
    %3019 = vmatprep.subr.mxu0 %v2988
    %3020 = vmatpush1.msra.mxu0 %v2987
    %3021 = vmatprep.subr.mxu0 %v2990
    %3022 = vmatpush1.msra.mxu0 %v2989
    %3023 = vmatprep.subr.mxu0 %v2992
    %3024 = vmatpush1.msra.mxu0 %v2991
    %3025 = vmatprep.subr.mxu0 %v2994
    %3026 = vmatpush1.msra.mxu0 %v2993
    %3027 = vmatprep.subr.mxu0 %v2996
    %3028 = vmatpush1.msra.mxu0 %v2995
    %3029 = vmatprep.subr.mxu0 %v2998
    %3030 = vmatpush1.msra.mxu0 %v2997
    %3031 = vmatprep.subr.mxu0 %v3000
    %3032 = vmatpush1.msra.mxu0 %v2999
    %3033 = vmatprep.subr.mxu0 %v3002
    %3034 = vmatpush1.msra.mxu0 %v3001
    %3035 = vmatprep.subr.mxu0 %v3004
    %3036 = vmatpush1.msra.mxu0 %v3003
    %3037 = vmatprep.subr.mxu0 %v3006
    %3038 = vmatpush1.msra.mxu0 %v3005
    %3039 = vmatprep.subr.mxu0 %v3008
    %3040 = vmatpush1.msra.mxu0 %v3007
    %3041 = vmatprep.subr.mxu0 %v3010
    %3042 = vmatpush1.msra.mxu0 %v3009
    %3043 = vmatprep.subr.mxu0 %v3012
    %3044 = vmatpush1.msra.mxu0 %v3011
    %3045 = vmatprep.subr.mxu0 %v3014
    %3046 = vmatpush1.msra.mxu0 %v3013
    %3047 = vmatprep.subr.mxu0 %v3016
    %3048 = vmatpush1.msra.mxu0 %v3015
    %3049 = vmatprep.subr.mxu0 %v3018
    %3050 = vmatpush1.msra.mxu0 %v3017
    %3051 = vmatprep.subr.mxu0 0.0
    %3052 = vmatpush1.msra.mxu0 0.0
    %3053 = vmatprep.subr.mxu0 0.0
    %3054 = vmatpush1.msra.mxu0 0.0
    %3055 = vmatprep.subr.mxu0 0.0
    %3056 = vmatpush1.msra.mxu0 0.0
    %3057 = vmatprep.subr.mxu0 0.0
    %3058 = vmatpush1.msra.mxu0 0.0
    %3059 = vmatprep.subr.mxu0 0.0
    %3060 = vmatpush1.msra.mxu0 0.0
    %3061 = vmatprep.subr.mxu0 0.0
    %3062 = vmatpush1.msra.mxu0 0.0
    %3063 = vmatprep.subr.mxu0 0.0
    %3064 = vmatpush1.msra.mxu0 0.0
    %3065 = vmatprep.subr.mxu0 0.0
    %3066 = vmatpush1.msra.mxu0 0.0
    %3067 = vmatprep.subr.mxu0 0.0
    %3068 = vmatpush1.msra.mxu0 0.0
    %3069 = vmatprep.subr.mxu0 0.0
    %3070 = vmatpush1.msra.mxu0 0.0
    %3071 = vmatprep.subr.mxu0 0.0
    %3072 = vmatpush1.msra.mxu0 0.0
    %3073 = vmatprep.subr.mxu0 0.0
    %3074 = vmatpush1.msra.mxu0 0.0
    %3075 = vmatprep.subr.mxu0 0.0
    %3076 = vmatpush1.msra.mxu0 0.0
    %3077 = vmatprep.subr.mxu0 0.0
    %3078 = vmatpush1.msra.mxu0 0.0
    %3079 = vmatprep.subr.mxu0 0.0
    %3080 = vmatpush1.msra.mxu0 0.0
    %3081 = vmatprep.subr.mxu0 0.0
    %3082 = vmatpush1.msra.mxu0 0.0
    %3083 = vmatprep.mubr.f32.mxu0 0.0
    %3084 = vmatmul.mubr.f32.gmra.mrb[0].mxu0 %v2077
    %v3085 = vpop.f32.mrb[0].mxu0
    %v3086 = vadd.f32 0.0, %v3085
    %v3087 = vpop.f32.mrb[0].mxu0
    %v3088 = vadd.f32 0.0, %v3087
    %3089 = vmatprep.mubr.f32.mxu0 0.0
    %3090 = vmatmul.mubr.f32.gmra.mrb[0].mxu0 %v2078
    %v3091 = vpop.f32.mrb[0].mxu0
    %v3092 = vadd.f32 0.0, %v3091
    %v3093 = vpop.f32.mrb[0].mxu0
    %v3094 = vadd.f32 0.0, %v3093
    %3095 = vdwg.mxu0
    %v3096 = vsub.f32 0.0, %v3086
    %v3097 = vsub.f32 0.0, %v3092
    %v3098 = vmul.f32 %v3096, 1.442695
    %v3099 = vpow.pop %v3098
    %v3100 = vmul.f32 %v3097, 1.442695
    %v3101 = vpow.pop %v3100
    %v3102 = vadd.f32 %v3099, 1.0
    %v3103 = vadd.f32 %v3101, 1.0
    %v3104 = vrcp.pop %v3102
    %v3105 = vmul.f32 1.0, %v3104
    %v3106 = vrcp.pop %v3103
    %v3107 = vmul.f32 1.0, %v3106
    %v3108 = vmul.f32 %v3086, %v3105
    %v3109 = vmul.f32 %v3092, %v3107
    %v3110 = vmul.f32 %v3108, %v3088
    %v3111 = vmul.f32 %v3109, %v3094
    %s3112 = scalar_lea.vmem [#allocation10], 384
    %v3113 = vld [vmem:[%s3112] sm:$0xff]
    %v3114 = vld [vmem:[%s3112 + $0x8] sm:$0xff]
    %v3115 = vld [vmem:[%s3112 + $0x10] sm:$0xff]
    %v3116 = vld [vmem:[%s3112 + $0x18] sm:$0xff]
    %v3117 = vld [vmem:[%s3112 + $0x20] sm:$0xff]
    %v3118 = vld [vmem:[%s3112 + $0x28] sm:$0xff]
    %v3119 = vld [vmem:[%s3112 + $0x30] sm:$0xff]
    %v3120 = vld [vmem:[%s3112 + $0x38] sm:$0xff]
    %v3121 = vld [vmem:[%s3112 + $0x40] sm:$0xff]
    %v3122 = vld [vmem:[%s3112 + $0x48] sm:$0xff]
    %v3123 = vld [vmem:[%s3112 + $0x50] sm:$0xff]
    %v3124 = vld [vmem:[%s3112 + $0x58] sm:$0xff]
    %v3125 = vld [vmem:[%s3112 + $0x60] sm:$0xff]
    %v3126 = vld [vmem:[%s3112 + $0x68] sm:$0xff]
    %v3127 = vld [vmem:[%s3112 + $0x70] sm:$0xff]
    %v3128 = vld [vmem:[%s3112 + $0x78] sm:$0xff]
    %3129 = vmatprep.subr.mxu0 0.0
    %3130 = vmatpush1.msra.mxu0 %v3113
    %3131 = vmatprep.subr.mxu0 0.0
    %3132 = vmatpush1.msra.mxu0 %v3114
    %3133 = vmatprep.subr.mxu0 0.0
    %3134 = vmatpush1.msra.mxu0 %v3115
    %3135 = vmatprep.subr.mxu0 0.0
    %3136 = vmatpush1.msra.mxu0 %v3116
    %3137 = vmatprep.subr.mxu0 0.0
    %3138 = vmatpush1.msra.mxu0 %v3117
    %3139 = vmatprep.subr.mxu0 0.0
    %3140 = vmatpush1.msra.mxu0 %v3118
    %3141 = vmatprep.subr.mxu0 0.0
    %3142 = vmatpush1.msra.mxu0 %v3119
    %3143 = vmatprep.subr.mxu0 0.0
    %3144 = vmatpush1.msra.mxu0 %v3120
    %3145 = vmatprep.subr.mxu0 0.0
    %3146 = vmatpush1.msra.mxu0 %v3121
    %3147 = vmatprep.subr.mxu0 0.0
    %3148 = vmatpush1.msra.mxu0 %v3122
    %3149 = vmatprep.subr.mxu0 0.0
    %3150 = vmatpush1.msra.mxu0 %v3123
    %3151 = vmatprep.subr.mxu0 0.0
    %3152 = vmatpush1.msra.mxu0 %v3124
    %3153 = vmatprep.subr.mxu0 0.0
    %3154 = vmatpush1.msra.mxu0 %v3125
    %3155 = vmatprep.subr.mxu0 0.0
    %3156 = vmatpush1.msra.mxu0 %v3126
    %3157 = vmatprep.subr.mxu0 0.0
    %3158 = vmatpush1.msra.mxu0 %v3127
    %3159 = vmatprep.subr.mxu0 0.0
    %3160 = vmatpush1.msra.mxu0 %v3128
    %3161 = vmatprep.subr.mxu0 0.0
    %3162 = vmatpush1.msra.mxu0 0.0
    %3163 = vmatprep.subr.mxu0 0.0
    %3164 = vmatpush1.msra.mxu0 0.0
    %3165 = vmatprep.subr.mxu0 0.0
    %3166 = vmatpush1.msra.mxu0 0.0
    %3167 = vmatprep.subr.mxu0 0.0
    %3168 = vmatpush1.msra.mxu0 0.0
    %3169 = vmatprep.subr.mxu0 0.0
    %3170 = vmatpush1.msra.mxu0 0.0
    %3171 = vmatprep.subr.mxu0 0.0
    %3172 = vmatpush1.msra.mxu0 0.0
    %3173 = vmatprep.subr.mxu0 0.0
    %3174 = vmatpush1.msra.mxu0 0.0
    %3175 = vmatprep.subr.mxu0 0.0
    %3176 = vmatpush1.msra.mxu0 0.0
    %3177 = vmatprep.subr.mxu0 0.0
    %3178 = vmatpush1.msra.mxu0 0.0
    %3179 = vmatprep.subr.mxu0 0.0
    %3180 = vmatpush1.msra.mxu0 0.0
    %3181 = vmatprep.subr.mxu0 0.0
    %3182 = vmatpush1.msra.mxu0 0.0
    %3183 = vmatprep.subr.mxu0 0.0
    %3184 = vmatpush1.msra.mxu0 0.0
    %3185 = vmatprep.subr.mxu0 0.0
    %3186 = vmatpush1.msra.mxu0 0.0
    %3187 = vmatprep.subr.mxu0 0.0
    %3188 = vmatpush1.msra.mxu0 0.0
    %3189 = vmatprep.subr.mxu0 0.0
    %3190 = vmatpush1.msra.mxu0 0.0
    %3191 = vmatprep.subr.mxu0 0.0
    %3192 = vmatpush1.msra.mxu0 0.0
    %3193 = vmatprep.mubr.f32.mxu0 0.0
    %3194 = vmatmul.mubr.f32.gmra.mrb[0].mxu0 %v3110
    %v3195 = vpop.f32.mrb[0].mxu0
    %v3196 = vadd.f32 0.0, %v3195
    %v3197 = vpop.f32.mrb[0].mxu0
    %3198 = vmatprep.mubr.f32.mxu0 0.0
    %3199 = vmatmul.mubr.f32.gmra.mrb[0].mxu0 %v3111
    %v3200 = vpop.f32.mrb[0].mxu0
    %v3201 = vadd.f32 0.0, %v3200
    %v3202 = vpop.f32.mrb[0].mxu0
    %3203 = vdwg.mxu0
    %vm3204 = vcmp.eq.s32.totalorder %v374, 3
    %v3205 = vsel %vm3204, %v2292, 0.0
    %v3206 = vsel %vm3204, %v2294, 0.0
    %v3207 = vsel %vm2170, %v3205, 0.0
    %3208 = vadd.xlane.f32.xlu0 %v3207
    %v3209 = vpop.xlane.xlu0 %3208
    %v3210 = vsel %vm2170, %v3206, 0.0
    %3211 = vadd.xlane.f32.xlu0 %v3210
    %v3212 = vpop.xlane.xlu0 %3211
    %v3213 = vmul.f32 %v3209, %v3196
    %v3214 = vmul.f32 %v3212, %v3201
    %v3215 = vadd.f32 %v2984, %v3213
    %v3216 = vadd.f32 %v2985, %v3214
    %v3217 = vadd.f32 %v3215, %v2037
    %v3218 = vadd.f32 %v3216, %v2038
    %3219 = vst [vmem:[#allocation11] sm:$0xff] %v3217
    %3220 = vst [vmem:[#allocation11 + $0x8] sm:$0xff] %v3218
    // Predicated region
    $region70: #{tpu_custom_call.1} parent=1 // pred_check
      _
    $region71: #{tpu_custom_call.1} parent=1 // pred_check_branch
      %3222 = sbr.rel (0) target = $region73
    $region72: #{tpu_custom_call.1} parent=1 // pred_region
      %s3224 = ssub.s32 256, 256
      %3225 = vsyncadd [#allocation4], %s3224
      %s3226 = sshll.u32 [#allocation11], 4
      %s3227 = int_to_ptr.vmem [resolvable:$true] %s3226
      %3232 = dma.vmem_to_hbm [thread:$0]  %s3227, 256, %s12, [#allocation4], 128, 128, 8
    $region73: #{tpu_custom_call.1} parent=1 // pred_fallthru
      _
    // Predicated region
    $region74: #{tpu_custom_call.1} parent=1 // pred_check
      _
    $region75: #{tpu_custom_call.1} parent=1 // pred_check_branch
      %3234 = sbr.rel (0) target = $region77
    $region76: #{tpu_custom_call.1} parent=1 // pred_region
      %3235 = dma.done [#allocation4], 256
    $region77: #{tpu_custom_call.1} parent=1 // pred_fallthru
      _
    %3236 = vsyncpa [#allocation3], 1
    %3237 = vsyncpa [#allocation6], 1
    %3238 = vsyncpa [#allocation9], 1
    %3239 = vsyncpa [#allocation4], 1

</llo_original>
